<compile_context>
chip_gen: v7x
topology: tpu7x:2x2x1
jax: 0.10.0
libtpu: 0.0.40
codegen_flags: <defaults>
</compile_context>

<pallas_src>
import jax
import jax.numpy as jnp
from jax.experimental import pallas as pl
from jax.experimental.pallas import tpu as pltpu

_EPS = 1e-5
_VMEM_LIMIT = 32 * 1024 * 1024     # explicit budget; safe on v5e/v6e/v7x


# --------------------------------------------------------------------------
# in-kernel helpers
# --------------------------------------------------------------------------
def _zero_halo(pad_ref, Hh, Wh, C):
    """Zero only the 1-wide halo of the (Hh+2, Wh+2, C) padded scratch."""
    dt = pad_ref.dtype
    pad_ref[0:1, :, :] = jnp.zeros((1, Wh + 2, C), dt)
    pad_ref[Hh + 1:Hh + 2, :, :] = jnp.zeros((1, Wh + 2, C), dt)
    pad_ref[:, 0:1, :] = jnp.zeros((Hh + 2, 1, C), dt)
    pad_ref[:, Wh + 1:Wh + 2, :] = jnp.zeros((Hh + 2, 1, C), dt)


def _conv3x3_im2col(pad_ref, imcol_ref, w_ref, Hh, Wh, Cin):
    """Padded (Hh+2,Wh+2,Cin) bf16 -> im2col (M, 9*Cin) -> single MXU matmul.

    Returns the (M, Cout) float32 accumulator (no bias: cancelled by train-mode BN).
    """
    M = Hh * Wh
    for t in range(9):                       # 9 static taps, unrolled
        dy, dx = divmod(t, 3)
        patch = pad_ref[dy:dy + Hh, dx:dx + Wh, :].reshape(M, Cin)
        imcol_ref[:, t * Cin:(t + 1) * Cin] = patch
    return jnp.dot(imcol_ref[...], w_ref[...],
                   preferred_element_type=jnp.float32)


# --------------------------------------------------------------------------
# phase 1: maxpool(2) + conv1 (+ partial BN1 stats)
# --------------------------------------------------------------------------
def _pool_conv1_kernel(xw_ref, w1_ref, a1_ref, stat1_ref, pad_ref, imcol_ref):
    _, Hh, Wh, C4 = xw_ref.shape
    Cin = C4 // 4

    # 2x2 max-pool: the wrapper placed the (2,2) window on the lane axis.
    x = xw_ref[0]                                           # (Hh, Wh, 4*Cin) bf16
    pooled = jnp.maximum(
        jnp.maximum(x[:, :, 0 * Cin:1 * Cin], x[:, :, 1 * Cin:2 * Cin]),
        jnp.maximum(x[:, :, 2 * Cin:3 * Cin], x[:, :, 3 * Cin:4 * Cin]))

    _zero_halo(pad_ref, Hh, Wh, Cin)
    pad_ref[1:Hh + 1, 1:Wh + 1, :] = pooled

    acc = _conv3x3_im2col(pad_ref, imcol_ref, w1_ref, Hh, Wh, Cin)  # (M, Cmid) f32

    a1_ref[0] = acc
    stat1_ref[0, 0:1, :] = jnp.sum(acc, axis=0, keepdims=True)        # sum
    stat1_ref[0, 1:2, :] = jnp.sum(acc * acc, axis=0, keepdims=True)  # sum of squares


# --------------------------------------------------------------------------
# phase 2: folded BN1+ReLU + conv2 (+ partial BN2 stats)
# --------------------------------------------------------------------------
def _bn_conv2_kernel(a1_ref, aff1_ref, w2_ref, a2_ref, stat2_ref, pad_ref,
                     imcol_ref):
    Hh = pad_ref.shape[0] - 2
    Wh = pad_ref.shape[1] - 2
    Cmid = pad_ref.shape[2]

    a1 = a1_ref[0]                                          # (M, Cmid) f32
    y1 = jnp.maximum(a1 * aff1_ref[0:1, :] + aff1_ref[1:2, :], 0.0)
    y1 = y1.astype(jnp.bfloat16).reshape(Hh, Wh, Cmid)

    _zero_halo(pad_ref, Hh, Wh, Cmid)
    pad_ref[1:Hh + 1, 1:Wh + 1, :] = y1

    acc = _conv3x3_im2col(pad_ref, imcol_ref, w2_ref, Hh, Wh, Cmid)  # (M, Cout) f32

    a2_ref[0] = acc
    stat2_ref[0, 0:1, :] = jnp.sum(acc, axis=0, keepdims=True)
    stat2_ref[0, 1:2, :] = jnp.sum(acc * acc, axis=0, keepdims=True)


# --------------------------------------------------------------------------
# phase 3: folded BN2 + ReLU epilogue
# --------------------------------------------------------------------------
def _bn_relu_kernel(a2_ref, aff2_ref, out_ref):
    out_ref[0] = jnp.maximum(
        a2_ref[0] * aff2_ref[0:1, :] + aff2_ref[1:2, :], 0.0)


# --------------------------------------------------------------------------
# wrapper
# --------------------------------------------------------------------------
def _affine_from_stats(stat, gamma, beta, m_total):
    """stat: (N, 2, C) partial [sum, sumsq] -> folded BN scale/shift (2, C)."""
    tot = jnp.sum(stat, axis=0)                              # (2, C)
    mean = tot[0] / m_total
    var = jnp.maximum(tot[1] / m_total - mean * mean, 0.0)   # biased variance
    scale = gamma * jax.lax.rsqrt(var + _EPS)
    shift = beta - mean * scale
    return jnp.stack([scale, shift], axis=0)                 # (2, C)


@jax.jit
def down_forward(x_nchw, params):
    """x_nchw: (N, Cin, H, W) float32. Returns (N, Cout, H//2, W//2) float32."""
    w1, b1, g1, be1, w2, b2, g2, be2 = params   # w*: (3,3,Ci,Co) HWIO
    del b1, b2   # exactly cancelled by training-mode BatchNorm mean subtraction
    N, Cin, H, W = x_nchw.shape
    assert H % 2 == 0 and W % 2 == 0
    Hh, Wh = H // 2, W // 2
    Cmid = w1.shape[3]
    Cout = w2.shape[3]
    M = Hh * Wh
    m_total = N * M

    # Layout plumbing (wrapper side): put the 2x2 pool window on the lane axis.
    xw = (x_nchw.reshape(N, Cin, Hh, 2, Wh, 2)
          .transpose(0, 2, 4, 3, 5, 1)
          .reshape(N, Hh, Wh, 4 * Cin)
          .astype(jnp.bfloat16))

    # (3,3,Ci,Co) -> (9*Ci, Co), tap-major, matching the im2col column layout.
    w1f = w1.reshape(9 * Cin, Cmid).astype(jnp.bfloat16)
    w2f = w2.reshape(9 * Cmid, Cout).astype(jnp.bfloat16)

    cparams = pltpu.CompilerParams(
        dimension_semantics=("parallel",),           # batch tiles independent
        vmem_limit_bytes=_VMEM_LIMIT)

    # ---------------- phase 1: maxpool + conv1 ----------------
    a1, stat1 = pl.pallas_call(
        _pool_conv1_kernel,
        out_shape=(jax.ShapeDtypeStruct((N, M, Cmid), jnp.float32),
                   jax.ShapeDtypeStruct((N, 2, Cmid), jnp.float32)),
        grid_spec=pltpu.PrefetchScalarGridSpec(
            num_scalar_prefetch=0,
            grid=(N,),
            in_specs=[
                pl.BlockSpec((1, Hh, Wh, 4 * Cin), lambda i: (i, 0, 0, 0)),
                pl.BlockSpec((9 * Cin, Cmid), lambda i: (0, 0)),
            ],
            out_specs=[
                pl.BlockSpec((1, M, Cmid), lambda i: (i, 0, 0)),
                pl.BlockSpec((1, 2, Cmid), lambda i: (i, 0, 0)),
            ],
            scratch_shapes=[
                pltpu.VMEM((Hh + 2, Wh + 2, Cin), jnp.bfloat16),  # padded input
                pltpu.VMEM((M, 9 * Cin), jnp.bfloat16),           # im2col
            ]),
        compiler_params=cparams,
    )(xw, w1f)

    aff1 = _affine_from_stats(stat1, g1, be1, m_total)       # (2, Cmid)

    # ---------------- phase 2: BN1+ReLU -> conv2 ----------------
    a2, stat2 = pl.pallas_call(
        _bn_conv2_kernel,
        out_shape=(jax.ShapeDtypeStruct((N, M, Cout), jnp.float32),
                   jax.ShapeDtypeStruct((N, 2, Cout), jnp.float32)),
        grid_spec=pltpu.PrefetchScalarGridSpec(
            num_scalar_prefetch=0,
            grid=(N,),
            in_specs=[
                pl.BlockSpec((1, M, Cmid), lambda i: (i, 0, 0)),
                pl.BlockSpec((2, Cmid), lambda i: (0, 0)),
                pl.BlockSpec((9 * Cmid, Cout), lambda i: (0, 0)),
            ],
            out_specs=[
                pl.BlockSpec((1, M, Cout), lambda i: (i, 0, 0)),
                pl.BlockSpec((1, 2, Cout), lambda i: (i, 0, 0)),
            ],
            scratch_shapes=[
                pltpu.VMEM((Hh + 2, Wh + 2, Cmid), jnp.bfloat16),
                pltpu.VMEM((M, 9 * Cmid), jnp.bfloat16),
            ]),
        compiler_params=cparams,
    )(a1, aff1, w2f)

    aff2 = _affine_from_stats(stat2, g2, be2, m_total)       # (2, Cout)

    # ---------------- phase 3: BN2 + ReLU ----------------
    y = pl.pallas_call(
        _bn_relu_kernel,
        out_shape=jax.ShapeDtypeStruct((N, M, Cout), jnp.float32),
        grid_spec=pltpu.PrefetchScalarGridSpec(
            num_scalar_prefetch=0,
            grid=(N,),
            in_specs=[
                pl.BlockSpec((1, M, Cout), lambda i: (i, 0, 0)),
                pl.BlockSpec((2, Cout), lambda i: (0, 0)),
            ],
            out_specs=pl.BlockSpec((1, M, Cout), lambda i: (i, 0, 0))),
        compiler_params=cparams,
    )(a2, aff2)

    return jnp.transpose(y.reshape(N, Hh, Wh, Cout), (0, 3, 1, 2))  # NHWC -> NCHW


# --------------------------------------------------------------------------
# plain-JAX reference (full PyTorch semantics, f32, WITH conv bias)
# --------------------------------------------------------------------------
def _ref_down(x_nchw, params):
    w1, b1, g1, be1, w2, b2, g2, be2 = params
    x = jnp.transpose(x_nchw, (0, 2, 3, 1))
    N, H, W, C = x.shape
    pooled = jnp.max(x.reshape(N, H // 2, 2, W // 2, 2, C), axis=(2, 4))

    def conv_bn_relu(y, w, b, g, beta):
        Hh, Wh = y.shape[1], y.shape[2]
        Co = w.shape[3]
        yp = jnp.pad(y, ((0, 0), (1, 1), (1, 1), (0, 0)))
        acc = jnp.broadcast_to(b, (y.shape[0], Hh, Wh, Co)).astype(jnp.float32)
        for dy in range(3):
            for dx in range(3):
                acc = acc + jnp.einsum(
                    "nhwc,cd->nhwd",
                    yp[:, dy:dy + Hh, dx:dx + Wh, :], w[dy, dx],
                    preferred_element_type=jnp.float32)
        mean = jnp.mean(acc, axis=(0, 1, 2))
        var = jnp.mean((acc - mean) ** 2, axis=(0, 1, 2))   # biased (train mode)
        z = (acc - mean) * jax.lax.rsqrt(var + _EPS) * g + beta
        return jnp.maximum(z, 0.0)

    y1 = conv_bn_relu(pooled, w1, b1, g1, be1)
    y2 = conv_bn_relu(y1, w2, b2, g2, be2)
    return jnp.transpose(y2, (0, 3, 1, 2))


def _init_params(key, in_channels, out_channels):
    """Deterministic synthetic weights (Down: mid_channels == out_channels)."""
    cin, cmid, cout = in_channels, out_channels, out_channels
    ks = jax.random.split(key, 8)
    w1_oihw = 0.2 * jax.random.normal(ks[0], (cmid, cin, 3, 3), jnp.float32)
    w2_oihw = 0.2 * jax.random.normal(ks[1], (cout, cmid, 3, 3), jnp.float32)
    w1 = jnp.transpose(w1_oihw, (2, 3, 1, 0))    # (3,3,Cin,Cmid) HWIO
    w2 = jnp.transpose(w2_oihw, (2, 3, 1, 0))    # (3,3,Cmid,Cout) HWIO
    b1 = 0.1 * jax.random.normal(ks[2], (cmid,), jnp.float32)
    b2 = 0.1 * jax.random.normal(ks[3], (cout,), jnp.float32)
    g1 = 1.0 + 0.1 * jax.random.normal(ks[4], (cmid,), jnp.float32)
    g2 = 1.0 + 0.1 * jax.random.normal(ks[5], (cout,), jnp.float32)
    be1 = 0.1 * jax.random.normal(ks[6], (cmid,), jnp.float32)
    be2 = 0.1 * jax.random.normal(ks[7], (cout,), jnp.float32)
    return (w1, b1, g1, be1, w2, b2, g2, be2)


if __name__ == "__main__":
    key = jax.random.PRNGKey(0)
    k_x, k_p = jax.random.split(key)

    N, Cin, Cout, H, W = 2, 4, 8, 16, 16
    x = jax.random.normal(k_x, (N, Cin, H, W), jnp.float32)
    params = _init_params(k_p, Cin, Cout)

    out = jax.block_until_ready(down_forward(x, params))
    assert out.shape == (N, Cout, H // 2, W // 2), out.shape

    ref = _ref_down(x, params)
    max_err = float(jnp.max(jnp.abs(out - ref)))
    # bf16 matmul operands with f32 accumulation (per perf review); tolerance
    # sized for two stacked bf16 convs vs the all-f32 reference.
    assert max_err < 5e-2, f"mismatch vs reference: max abs err = {max_err}"

    print("KERNEL_OK")
</pallas_src>

<mosaic_0001>
module attributes {stable_mosaic.version = 11 : i64} {
  func.func @_pool_conv1_kernel(%arg0: i32, %arg1: memref<1x8x8x16xbf16, #tpu.memory_space<vmem>>, %arg2: memref<36x8xbf16, #tpu.memory_space<vmem>>, %arg3: memref<1x64x8xf32, #tpu.memory_space<vmem>>, %arg4: memref<1x2x8xf32, #tpu.memory_space<vmem>>, %arg5: memref<10x10x4xbf16, #tpu.memory_space<vmem>>, %arg6: memref<64x36xbf16, #tpu.memory_space<vmem>>) attributes {dimension_semantics = [#tpu.dimension_semantics<parallel>], iteration_bounds = array<i64: 2>, scalar_prefetch = 0 : i64, scratch_operands = 2 : i64, tpu.core_type = #tpu.core_type<tc>, window_params = [{transform_indices = @transform_0, window_bounds = array<i64: 1, 8, 8, 16>}, {pipeline_mode = #tpu.pipeline_mode<synchronous>, transform_indices = @transform_1, window_bounds = array<i64: 36, 8>}, {transform_indices = @transform_2, window_bounds = array<i64: 1, 64, 8>}, {transform_indices = @transform_3, window_bounds = array<i64: 1, 2, 8>}]} {
    %c0 = arith.constant 0 : index
    %c0_0 = arith.constant 0 : index
    %c0_1 = arith.constant 0 : index
    %c0_2 = arith.constant 0 : index
    %0 = vector.load %arg1[%c0, %c0_0, %c0_1, %c0_2] : memref<1x8x8x16xbf16, #tpu.memory_space<vmem>>, vector<1x8x8x16xbf16>
    %1 = vector.shape_cast %0 : vector<1x8x8x16xbf16> to vector<8x8x16xbf16>
    %2 = vector.extract_strided_slice %1 {offsets = [0, 0, 0], sizes = [8, 8, 4], strides = [1, 1, 1]} : vector<8x8x16xbf16> to vector<8x8x4xbf16>
    %3 = vector.extract_strided_slice %1 {offsets = [0, 0, 4], sizes = [8, 8, 4], strides = [1, 1, 1]} : vector<8x8x16xbf16> to vector<8x8x4xbf16>
    %4 = arith.maximumf %2, %3 : vector<8x8x4xbf16>
    %5 = vector.extract_strided_slice %1 {offsets = [0, 0, 8], sizes = [8, 8, 4], strides = [1, 1, 1]} : vector<8x8x16xbf16> to vector<8x8x4xbf16>
    %6 = vector.extract_strided_slice %1 {offsets = [0, 0, 12], sizes = [8, 8, 4], strides = [1, 1, 1]} : vector<8x8x16xbf16> to vector<8x8x4xbf16>
    %7 = arith.maximumf %5, %6 : vector<8x8x4xbf16>
    %8 = arith.maximumf %4, %7 : vector<8x8x4xbf16>
    %cst = arith.constant 0.000000e+00 : bf16
    %9 = vector.broadcast %cst : bf16 to vector<1x10x4xbf16>
    %c0_3 = arith.constant 0 : index
    %c0_4 = arith.constant 0 : index
    %c0_5 = arith.constant 0 : index
    %10 = vector.load %arg5[%c0_3, %c0_4, %c0_5] : memref<10x10x4xbf16, #tpu.memory_space<vmem>>, vector<1x10x4xbf16>
    tpu.vector_store %arg5[%c0_3, %c0_4, %c0_5], %9 {strides = array<i32>} : memref<10x10x4xbf16, #tpu.memory_space<vmem>>, vector<1x10x4xbf16>,
    %cst_6 = arith.constant 0.000000e+00 : bf16
    %11 = vector.broadcast %cst_6 : bf16 to vector<1x10x4xbf16>
    %c9 = arith.constant 9 : index
    %c0_7 = arith.constant 0 : index
    %c0_8 = arith.constant 0 : index
    %12 = vector.load %arg5[%c9, %c0_7, %c0_8] : memref<10x10x4xbf16, #tpu.memory_space<vmem>>, vector<1x10x4xbf16>
    tpu.vector_store %arg5[%c9, %c0_7, %c0_8], %11 {strides = array<i32>} : memref<10x10x4xbf16, #tpu.memory_space<vmem>>, vector<1x10x4xbf16>,
    %cst_9 = arith.constant 0.000000e+00 : bf16
    %13 = vector.broadcast %cst_9 : bf16 to vector<10x1x4xbf16>
    %c0_10 = arith.constant 0 : index
    %c0_11 = arith.constant 0 : index
    %c0_12 = arith.constant 0 : index
    %14 = vector.load %arg5[%c0_10, %c0_11, %c0_12] : memref<10x10x4xbf16, #tpu.memory_space<vmem>>, vector<10x1x4xbf16>
    tpu.vector_store %arg5[%c0_10, %c0_11, %c0_12], %13 {strides = array<i32>} : memref<10x10x4xbf16, #tpu.memory_space<vmem>>, vector<10x1x4xbf16>,
    %cst_13 = arith.constant 0.000000e+00 : bf16
    %15 = vector.broadcast %cst_13 : bf16 to vector<10x1x4xbf16>
    %c0_14 = arith.constant 0 : index
    %c9_15 = arith.constant 9 : index
    %c0_16 = arith.constant 0 : index
    %16 = vector.load %arg5[%c0_14, %c9_15, %c0_16] : memref<10x10x4xbf16, #tpu.memory_space<vmem>>, vector<10x1x4xbf16>
    tpu.vector_store %arg5[%c0_14, %c9_15, %c0_16], %15 {strides = array<i32>} : memref<10x10x4xbf16, #tpu.memory_space<vmem>>, vector<10x1x4xbf16>,
    %c1 = arith.constant 1 : index
    %c1_17 = arith.constant 1 : index
    %c0_18 = arith.constant 0 : index
    %17 = vector.load %arg5[%c1, %c1_17, %c0_18] : memref<10x10x4xbf16, #tpu.memory_space<vmem>>, vector<8x8x4xbf16>
    tpu.vector_store %arg5[%c1, %c1_17, %c0_18], %8 {strides = array<i32>} : memref<10x10x4xbf16, #tpu.memory_space<vmem>>, vector<8x8x4xbf16>,
    %c0_19 = arith.constant 0 : index
    %c0_20 = arith.constant 0 : index
    %c0_21 = arith.constant 0 : index
    %18 = vector.load %arg5[%c0_19, %c0_20, %c0_21] : memref<10x10x4xbf16, #tpu.memory_space<vmem>>, vector<8x8x4xbf16>
    %19 = vector.shape_cast %18 : vector<8x8x4xbf16> to vector<64x4xbf16>
    %c0_22 = arith.constant 0 : index
    %c0_23 = arith.constant 0 : index
    %20 = vector.load %arg6[%c0_22, %c0_23] : memref<64x36xbf16, #tpu.memory_space<vmem>>, vector<64x4xbf16>
    tpu.vector_store %arg6[%c0_22, %c0_23], %19 {strides = array<i32>} : memref<64x36xbf16, #tpu.memory_space<vmem>>, vector<64x4xbf16>,
    %c0_24 = arith.constant 0 : index
    %c1_25 = arith.constant 1 : index
    %c0_26 = arith.constant 0 : index
    %21 = vector.load %arg5[%c0_24, %c1_25, %c0_26] : memref<10x10x4xbf16, #tpu.memory_space<vmem>>, vector<8x8x4xbf16>
    %22 = vector.shape_cast %21 : vector<8x8x4xbf16> to vector<64x4xbf16>
    %c0_27 = arith.constant 0 : index
    %c4 = arith.constant 4 : index
    %23 = vector.load %arg6[%c0_27, %c4] : memref<64x36xbf16, #tpu.memory_space<vmem>>, vector<64x4xbf16>
    tpu.vector_store %arg6[%c0_27, %c4], %22 {strides = array<i32>} : memref<64x36xbf16, #tpu.memory_space<vmem>>, vector<64x4xbf16>,
    %c0_28 = arith.constant 0 : index
    %c2 = arith.constant 2 : index
    %c0_29 = arith.constant 0 : index
    %24 = vector.load %arg5[%c0_28, %c2, %c0_29] : memref<10x10x4xbf16, #tpu.memory_space<vmem>>, vector<8x8x4xbf16>
    %25 = vector.shape_cast %24 : vector<8x8x4xbf16> to vector<64x4xbf16>
    %c0_30 = arith.constant 0 : index
    %c8 = arith.constant 8 : index
    %26 = vector.load %arg6[%c0_30, %c8] : memref<64x36xbf16, #tpu.memory_space<vmem>>, vector<64x4xbf16>
    tpu.vector_store %arg6[%c0_30, %c8], %25 {strides = array<i32>} : memref<64x36xbf16, #tpu.memory_space<vmem>>, vector<64x4xbf16>,
    %c1_31 = arith.constant 1 : index
    %c0_32 = arith.constant 0 : index
    %c0_33 = arith.constant 0 : index
    %27 = vector.load %arg5[%c1_31, %c0_32, %c0_33] : memref<10x10x4xbf16, #tpu.memory_space<vmem>>, vector<8x8x4xbf16>
    %28 = vector.shape_cast %27 : vector<8x8x4xbf16> to vector<64x4xbf16>
    %c0_34 = arith.constant 0 : index
    %c12 = arith.constant 12 : index
    %29 = vector.load %arg6[%c0_34, %c12] : memref<64x36xbf16, #tpu.memory_space<vmem>>, vector<64x4xbf16>
    tpu.vector_store %arg6[%c0_34, %c12], %28 {strides = array<i32>} : memref<64x36xbf16, #tpu.memory_space<vmem>>, vector<64x4xbf16>,
    %c1_35 = arith.constant 1 : index
    %c1_36 = arith.constant 1 : index
    %c0_37 = arith.constant 0 : index
    %30 = vector.load %arg5[%c1_35, %c1_36, %c0_37] : memref<10x10x4xbf16, #tpu.memory_space<vmem>>, vector<8x8x4xbf16>
    %31 = vector.shape_cast %30 : vector<8x8x4xbf16> to vector<64x4xbf16>
    %c0_38 = arith.constant 0 : index
    %c16 = arith.constant 16 : index
    %32 = vector.load %arg6[%c0_38, %c16] : memref<64x36xbf16, #tpu.memory_space<vmem>>, vector<64x4xbf16>
    tpu.vector_store %arg6[%c0_38, %c16], %31 {strides = array<i32>} : memref<64x36xbf16, #tpu.memory_space<vmem>>, vector<64x4xbf16>,
    %c1_39 = arith.constant 1 : index
    %c2_40 = arith.constant 2 : index
    %c0_41 = arith.constant 0 : index
    %33 = vector.load %arg5[%c1_39, %c2_40, %c0_41] : memref<10x10x4xbf16, #tpu.memory_space<vmem>>, vector<8x8x4xbf16>
    %34 = vector.shape_cast %33 : vector<8x8x4xbf16> to vector<64x4xbf16>
    %c0_42 = arith.constant 0 : index
    %c20 = arith.constant 20 : index
    %35 = vector.load %arg6[%c0_42, %c20] : memref<64x36xbf16, #tpu.memory_space<vmem>>, vector<64x4xbf16>
    tpu.vector_store %arg6[%c0_42, %c20], %34 {strides = array<i32>} : memref<64x36xbf16, #tpu.memory_space<vmem>>, vector<64x4xbf16>,
    %c2_43 = arith.constant 2 : index
    %c0_44 = arith.constant 0 : index
    %c0_45 = arith.constant 0 : index
    %36 = vector.load %arg5[%c2_43, %c0_44, %c0_45] : memref<10x10x4xbf16, #tpu.memory_space<vmem>>, vector<8x8x4xbf16>
    %37 = vector.shape_cast %36 : vector<8x8x4xbf16> to vector<64x4xbf16>
    %c0_46 = arith.constant 0 : index
    %c24 = arith.constant 24 : index
    %38 = vector.load %arg6[%c0_46, %c24] : memref<64x36xbf16, #tpu.memory_space<vmem>>, vector<64x4xbf16>
    tpu.vector_store %arg6[%c0_46, %c24], %37 {strides = array<i32>} : memref<64x36xbf16, #tpu.memory_space<vmem>>, vector<64x4xbf16>,
    %c2_47 = arith.constant 2 : index
    %c1_48 = arith.constant 1 : index
    %c0_49 = arith.constant 0 : index
    %39 = vector.load %arg5[%c2_47, %c1_48, %c0_49] : memref<10x10x4xbf16, #tpu.memory_space<vmem>>, vector<8x8x4xbf16>
    %40 = vector.shape_cast %39 : vector<8x8x4xbf16> to vector<64x4xbf16>
    %c0_50 = arith.constant 0 : index
    %c28 = arith.constant 28 : index
    %41 = vector.load %arg6[%c0_50, %c28] : memref<64x36xbf16, #tpu.memory_space<vmem>>, vector<64x4xbf16>
    tpu.vector_store %arg6[%c0_50, %c28], %40 {strides = array<i32>} : memref<64x36xbf16, #tpu.memory_space<vmem>>, vector<64x4xbf16>,
    %c2_51 = arith.constant 2 : index
    %c2_52 = arith.constant 2 : index
    %c0_53 = arith.constant 0 : index
    %42 = vector.load %arg5[%c2_51, %c2_52, %c0_53] : memref<10x10x4xbf16, #tpu.memory_space<vmem>>, vector<8x8x4xbf16>
    %43 = vector.shape_cast %42 : vector<8x8x4xbf16> to vector<64x4xbf16>
    %c0_54 = arith.constant 0 : index
    %c32 = arith.constant 32 : index
    %44 = vector.load %arg6[%c0_54, %c32] : memref<64x36xbf16, #tpu.memory_space<vmem>>, vector<64x4xbf16>
    tpu.vector_store %arg6[%c0_54, %c32], %43 {strides = array<i32>} : memref<64x36xbf16, #tpu.memory_space<vmem>>, vector<64x4xbf16>,
    %c0_55 = arith.constant 0 : index
    %c0_56 = arith.constant 0 : index
    %45 = vector.load %arg6[%c0_55, %c0_56] : memref<64x36xbf16, #tpu.memory_space<vmem>>, vector<64x36xbf16>
    %c0_57 = arith.constant 0 : index
    %c0_58 = arith.constant 0 : index
    %46 = vector.load %arg2[%c0_57, %c0_58] : memref<36x8xbf16, #tpu.memory_space<vmem>>, vector<36x8xbf16>
    %cst_59 = arith.constant dense<0.000000e+00> : vector<64x8xf32>
    %47 = tpu.matmul %45, %46, %cst_59 {dimension_numbers = #tpu.dot_dimension_numbers<[1], [0], [0], [1], [0, 0, 1, 1], [], []>} : vector<64x36xbf16>, vector<36x8xbf16>, vector<64x8xf32> -> vector<64x8xf32>
    %c0_60 = arith.constant 0 : index
    %c0_61 = arith.constant 0 : index
    %c0_62 = arith.constant 0 : index
    %48 = vector.load %arg3[%c0_60, %c0_61, %c0_62] : memref<1x64x8xf32, #tpu.memory_space<vmem>>, vector<1x64x8xf32>
    %49 = vector.shape_cast %48 : vector<1x64x8xf32> to vector<64x8xf32>
    %50 = vector.shape_cast %47 : vector<64x8xf32> to vector<1x64x8xf32>
    tpu.vector_store %arg3[%c0_60, %c0_61, %c0_62], %50 {strides = array<i32>} : memref<1x64x8xf32, #tpu.memory_space<vmem>>, vector<1x64x8xf32>,
    %cst_63 = arith.constant dense<0.000000e+00> : vector<8xf32>
    %51 = vector.multi_reduction <add>, %47, %cst_63 [0] : vector<64x8xf32> to vector<8xf32>
    %52 = vector.shape_cast %51 : vector<8xf32> to vector<1x8xf32>
    %c0_64 = arith.constant 0 : index
    %c0_65 = arith.constant 0 : index
    %c0_66 = arith.constant 0 : index
    %53 = vector.load %arg4[%c0_64, %c0_65, %c0_66] : memref<1x2x8xf32, #tpu.memory_space<vmem>>, vector<1x1x8xf32>
    %54 = vector.shape_cast %53 : vector<1x1x8xf32> to vector<1x8xf32>
    %55 = vector.shape_cast %52 : vector<1x8xf32> to vector<1x1x8xf32>
    tpu.vector_store %arg4[%c0_64, %c0_65, %c0_66], %55 {strides = array<i32>} : memref<1x2x8xf32, #tpu.memory_space<vmem>>, vector<1x1x8xf32>,
    %56 = arith.mulf %47, %47 : vector<64x8xf32>
    %cst_67 = arith.constant dense<0.000000e+00> : vector<8xf32>
    %57 = vector.multi_reduction <add>, %56, %cst_67 [0] : vector<64x8xf32> to vector<8xf32>
    %58 = vector.shape_cast %57 : vector<8xf32> to vector<1x8xf32>
    %c0_68 = arith.constant 0 : index
    %c1_69 = arith.constant 1 : index
    %c0_70 = arith.constant 0 : index
    %59 = vector.load %arg4[%c0_68, %c1_69, %c0_70] : memref<1x2x8xf32, #tpu.memory_space<vmem>>, vector<1x1x8xf32>
    %60 = vector.shape_cast %59 : vector<1x1x8xf32> to vector<1x8xf32>
    %61 = vector.shape_cast %58 : vector<1x8xf32> to vector<1x1x8xf32>
    tpu.vector_store %arg4[%c0_68, %c1_69, %c0_70], %61 {strides = array<i32>} : memref<1x2x8xf32, #tpu.memory_space<vmem>>, vector<1x1x8xf32>,
    return
  }
  func.func @transform_0(%arg0: i32) -> (i32, i32, i32, i32) {
    %c0_i32 = arith.constant 0 : i32
    %c0_i32_0 = arith.constant 0 : i32
    %c0_i32_1 = arith.constant 0 : i32
    %c0_i32_2 = arith.constant 0 : i32
    return %arg0, %c0_i32, %c0_i32_0, %c0_i32_1 : i32, i32, i32, i32
  }
  func.func @transform_1(%arg0: i32) -> (i32, i32) {
    %c0_i32 = arith.constant 0 : i32
    %c0_i32_0 = arith.constant 0 : i32
    %c0_i32_1 = arith.constant 0 : i32
    return %c0_i32, %c0_i32_0 : i32, i32
  }
  func.func @transform_2(%arg0: i32) -> (i32, i32, i32) {
    %c0_i32 = arith.constant 0 : i32
    %c0_i32_0 = arith.constant 0 : i32
    %c0_i32_1 = arith.constant 0 : i32
    return %arg0, %c0_i32, %c0_i32_0 : i32, i32, i32
  }
  func.func @transform_3(%arg0: i32) -> (i32, i32, i32) {
    %c0_i32 = arith.constant 0 : i32
    %c0_i32_0 = arith.constant 0 : i32
    %c0_i32_1 = arith.constant 0 : i32
    return %arg0, %c0_i32, %c0_i32_0 : i32, i32, i32
  }
}

module attributes {stable_mosaic.version = 11 : i64} {
  func.func @_bn_relu_kernel(%arg0: i32, %arg1: memref<1x64x8xf32, #tpu.memory_space<vmem>>, %arg2: memref<2x8xf32, #tpu.memory_space<vmem>>, %arg3: memref<1x64x8xf32, #tpu.memory_space<vmem>>) attributes {dimension_semantics = [#tpu.dimension_semantics<parallel>], iteration_bounds = array<i64: 2>, scalar_prefetch = 0 : i64, scratch_operands = 0 : i64, tpu.core_type = #tpu.core_type<tc>, window_params = [{transform_indices = @transform_0, window_bounds = array<i64: 1, 64, 8>}, {pipeline_mode = #tpu.pipeline_mode<synchronous>, transform_indices = @transform_1, window_bounds = array<i64: 2, 8>}, {transform_indices = @transform_2, window_bounds = array<i64: 1, 64, 8>}]} {
    %c0 = arith.constant 0 : index
    %c0_0 = arith.constant 0 : index
    %c0_1 = arith.constant 0 : index
    %0 = vector.load %arg1[%c0, %c0_0, %c0_1] : memref<1x64x8xf32, #tpu.memory_space<vmem>>, vector<1x64x8xf32>
    %1 = vector.shape_cast %0 : vector<1x64x8xf32> to vector<64x8xf32>
    %c0_2 = arith.constant 0 : index
    %c0_3 = arith.constant 0 : index
    %2 = vector.load %arg2[%c0_2, %c0_3] : memref<2x8xf32, #tpu.memory_space<vmem>>, vector<1x8xf32>
    %3 = vector.broadcast %2 : vector<1x8xf32> to vector<64x8xf32>
    %4 = arith.mulf %1, %3 : vector<64x8xf32>
    %c1 = arith.constant 1 : index
    %c0_4 = arith.constant 0 : index
    %5 = vector.load %arg2[%c1, %c0_4] : memref<2x8xf32, #tpu.memory_space<vmem>>, vector<1x8xf32>
    %6 = vector.broadcast %5 : vector<1x8xf32> to vector<64x8xf32>
    %7 = arith.addf %4, %6 : vector<64x8xf32>
    %cst = arith.constant 0.000000e+00 : f32
    %8 = vector.broadcast %cst : f32 to vector<64x8xf32>
    %9 = arith.maximumf %7, %8 : vector<64x8xf32>
    %c0_5 = arith.constant 0 : index
    %c0_6 = arith.constant 0 : index
    %c0_7 = arith.constant 0 : index
    %10 = vector.load %arg3[%c0_5, %c0_6, %c0_7] : memref<1x64x8xf32, #tpu.memory_space<vmem>>, vector<1x64x8xf32>
    %11 = vector.shape_cast %10 : vector<1x64x8xf32> to vector<64x8xf32>
    %12 = vector.shape_cast %9 : vector<64x8xf32> to vector<1x64x8xf32>
    tpu.vector_store %arg3[%c0_5, %c0_6, %c0_7], %12 {strides = array<i32>} : memref<1x64x8xf32, #tpu.memory_space<vmem>>, vector<1x64x8xf32>,
    return
  }
  func.func @transform_0(%arg0: i32) -> (i32, i32, i32) {
    %c0_i32 = arith.constant 0 : i32
    %c0_i32_0 = arith.constant 0 : i32
    %c0_i32_1 = arith.constant 0 : i32
    return %arg0, %c0_i32, %c0_i32_0 : i32, i32, i32
  }
  func.func @transform_1(%arg0: i32) -> (i32, i32) {
    %c0_i32 = arith.constant 0 : i32
    %c0_i32_0 = arith.constant 0 : i32
    %c0_i32_1 = arith.constant 0 : i32
    return %c0_i32, %c0_i32_0 : i32, i32
  }
  func.func @transform_2(%arg0: i32) -> (i32, i32, i32) {
    %c0_i32 = arith.constant 0 : i32
    %c0_i32_0 = arith.constant 0 : i32
    %c0_i32_1 = arith.constant 0 : i32
    return %arg0, %c0_i32, %c0_i32_0 : i32, i32, i32
  }
}

module attributes {stable_mosaic.version = 11 : i64} {
  func.func @_bn_conv2_kernel(%arg0: i32, %arg1: memref<1x64x8xf32, #tpu.memory_space<vmem>>, %arg2: memref<2x8xf32, #tpu.memory_space<vmem>>, %arg3: memref<72x8xbf16, #tpu.memory_space<vmem>>, %arg4: memref<1x64x8xf32, #tpu.memory_space<vmem>>, %arg5: memref<1x2x8xf32, #tpu.memory_space<vmem>>, %arg6: memref<10x10x8xbf16, #tpu.memory_space<vmem>>, %arg7: memref<64x72xbf16, #tpu.memory_space<vmem>>) attributes {dimension_semantics = [#tpu.dimension_semantics<parallel>], iteration_bounds = array<i64: 2>, scalar_prefetch = 0 : i64, scratch_operands = 2 : i64, tpu.core_type = #tpu.core_type<tc>, window_params = [{transform_indices = @transform_0, window_bounds = array<i64: 1, 64, 8>}, {pipeline_mode = #tpu.pipeline_mode<synchronous>, transform_indices = @transform_1, window_bounds = array<i64: 2, 8>}, {pipeline_mode = #tpu.pipeline_mode<synchronous>, transform_indices = @transform_2, window_bounds = array<i64: 72, 8>}, {transform_indices = @transform_3, window_bounds = array<i64: 1, 64, 8>}, {transform_indices = @transform_4, window_bounds = array<i64: 1, 2, 8>}]} {
    %c0 = arith.constant 0 : index
    %c0_0 = arith.constant 0 : index
    %c0_1 = arith.constant 0 : index
    %0 = vector.load %arg1[%c0, %c0_0, %c0_1] : memref<1x64x8xf32, #tpu.memory_space<vmem>>, vector<1x64x8xf32>
    %1 = vector.shape_cast %0 : vector<1x64x8xf32> to vector<64x8xf32>
    %c0_2 = arith.constant 0 : index
    %c0_3 = arith.constant 0 : index
    %2 = vector.load %arg2[%c0_2, %c0_3] : memref<2x8xf32, #tpu.memory_space<vmem>>, vector<1x8xf32>
    %3 = vector.broadcast %2 : vector<1x8xf32> to vector<64x8xf32>
    %4 = arith.mulf %1, %3 : vector<64x8xf32>
    %c1 = arith.constant 1 : index
    %c0_4 = arith.constant 0 : index
    %5 = vector.load %arg2[%c1, %c0_4] : memref<2x8xf32, #tpu.memory_space<vmem>>, vector<1x8xf32>
    %6 = vector.broadcast %5 : vector<1x8xf32> to vector<64x8xf32>
    %7 = arith.addf %4, %6 : vector<64x8xf32>
    %cst = arith.constant 0.000000e+00 : f32
    %8 = vector.broadcast %cst : f32 to vector<64x8xf32>
    %9 = arith.maximumf %7, %8 : vector<64x8xf32>
    %10 = arith.truncf %9 : vector<64x8xf32> to vector<64x8xbf16>
    %11 = vector.shape_cast %10 : vector<64x8xbf16> to vector<8x8x8xbf16>
    %cst_5 = arith.constant 0.000000e+00 : bf16
    %12 = vector.broadcast %cst_5 : bf16 to vector<1x10x8xbf16>
    %c0_6 = arith.constant 0 : index
    %c0_7 = arith.constant 0 : index
    %c0_8 = arith.constant 0 : index
    %13 = vector.load %arg6[%c0_6, %c0_7, %c0_8] : memref<10x10x8xbf16, #tpu.memory_space<vmem>>, vector<1x10x8xbf16>
    tpu.vector_store %arg6[%c0_6, %c0_7, %c0_8], %12 {strides = array<i32>} : memref<10x10x8xbf16, #tpu.memory_space<vmem>>, vector<1x10x8xbf16>,
    %cst_9 = arith.constant 0.000000e+00 : bf16
    %14 = vector.broadcast %cst_9 : bf16 to vector<1x10x8xbf16>
    %c9 = arith.constant 9 : index
    %c0_10 = arith.constant 0 : index
    %c0_11 = arith.constant 0 : index
    %15 = vector.load %arg6[%c9, %c0_10, %c0_11] : memref<10x10x8xbf16, #tpu.memory_space<vmem>>, vector<1x10x8xbf16>
    tpu.vector_store %arg6[%c9, %c0_10, %c0_11], %14 {strides = array<i32>} : memref<10x10x8xbf16, #tpu.memory_space<vmem>>, vector<1x10x8xbf16>,
    %cst_12 = arith.constant 0.000000e+00 : bf16
    %16 = vector.broadcast %cst_12 : bf16 to vector<10x1x8xbf16>
    %c0_13 = arith.constant 0 : index
    %c0_14 = arith.constant 0 : index
    %c0_15 = arith.constant 0 : index
    %17 = vector.load %arg6[%c0_13, %c0_14, %c0_15] : memref<10x10x8xbf16, #tpu.memory_space<vmem>>, vector<10x1x8xbf16>
    tpu.vector_store %arg6[%c0_13, %c0_14, %c0_15], %16 {strides = array<i32>} : memref<10x10x8xbf16, #tpu.memory_space<vmem>>, vector<10x1x8xbf16>,
    %cst_16 = arith.constant 0.000000e+00 : bf16
    %18 = vector.broadcast %cst_16 : bf16 to vector<10x1x8xbf16>
    %c0_17 = arith.constant 0 : index
    %c9_18 = arith.constant 9 : index
    %c0_19 = arith.constant 0 : index
    %19 = vector.load %arg6[%c0_17, %c9_18, %c0_19] : memref<10x10x8xbf16, #tpu.memory_space<vmem>>, vector<10x1x8xbf16>
    tpu.vector_store %arg6[%c0_17, %c9_18, %c0_19], %18 {strides = array<i32>} : memref<10x10x8xbf16, #tpu.memory_space<vmem>>, vector<10x1x8xbf16>,
    %c1_20 = arith.constant 1 : index
    %c1_21 = arith.constant 1 : index
    %c0_22 = arith.constant 0 : index
    %20 = vector.load %arg6[%c1_20, %c1_21, %c0_22] : memref<10x10x8xbf16, #tpu.memory_space<vmem>>, vector<8x8x8xbf16>
    tpu.vector_store %arg6[%c1_20, %c1_21, %c0_22], %11 {strides = array<i32>} : memref<10x10x8xbf16, #tpu.memory_space<vmem>>, vector<8x8x8xbf16>,
    %c0_23 = arith.constant 0 : index
    %c0_24 = arith.constant 0 : index
    %c0_25 = arith.constant 0 : index
    %21 = vector.load %arg6[%c0_23, %c0_24, %c0_25] : memref<10x10x8xbf16, #tpu.memory_space<vmem>>, vector<8x8x8xbf16>
    %22 = vector.shape_cast %21 : vector<8x8x8xbf16> to vector<64x8xbf16>
    %c0_26 = arith.constant 0 : index
    %c0_27 = arith.constant 0 : index
    %23 = vector.load %arg7[%c0_26, %c0_27] : memref<64x72xbf16, #tpu.memory_space<vmem>>, vector<64x8xbf16>
    tpu.vector_store %arg7[%c0_26, %c0_27], %22 {strides = array<i32>} : memref<64x72xbf16, #tpu.memory_space<vmem>>, vector<64x8xbf16>,
    %c0_28 = arith.constant 0 : index
    %c1_29 = arith.constant 1 : index
    %c0_30 = arith.constant 0 : index
    %24 = vector.load %arg6[%c0_28, %c1_29, %c0_30] : memref<10x10x8xbf16, #tpu.memory_space<vmem>>, vector<8x8x8xbf16>
    %25 = vector.shape_cast %24 : vector<8x8x8xbf16> to vector<64x8xbf16>
    %c0_31 = arith.constant 0 : index
    %c8 = arith.constant 8 : index
    %26 = vector.load %arg7[%c0_31, %c8] : memref<64x72xbf16, #tpu.memory_space<vmem>>, vector<64x8xbf16>
    tpu.vector_store %arg7[%c0_31, %c8], %25 {strides = array<i32>} : memref<64x72xbf16, #tpu.memory_space<vmem>>, vector<64x8xbf16>,
    %c0_32 = arith.constant 0 : index
    %c2 = arith.constant 2 : index
    %c0_33 = arith.constant 0 : index
    %27 = vector.load %arg6[%c0_32, %c2, %c0_33] : memref<10x10x8xbf16, #tpu.memory_space<vmem>>, vector<8x8x8xbf16>
    %28 = vector.shape_cast %27 : vector<8x8x8xbf16> to vector<64x8xbf16>
    %c0_34 = arith.constant 0 : index
    %c16 = arith.constant 16 : index
    %29 = vector.load %arg7[%c0_34, %c16] : memref<64x72xbf16, #tpu.memory_space<vmem>>, vector<64x8xbf16>
    tpu.vector_store %arg7[%c0_34, %c16], %28 {strides = array<i32>} : memref<64x72xbf16, #tpu.memory_space<vmem>>, vector<64x8xbf16>,
    %c1_35 = arith.constant 1 : index
    %c0_36 = arith.constant 0 : index
    %c0_37 = arith.constant 0 : index
    %30 = vector.load %arg6[%c1_35, %c0_36, %c0_37] : memref<10x10x8xbf16, #tpu.memory_space<vmem>>, vector<8x8x8xbf16>
    %31 = vector.shape_cast %30 : vector<8x8x8xbf16> to vector<64x8xbf16>
    %c0_38 = arith.constant 0 : index
    %c24 = arith.constant 24 : index
    %32 = vector.load %arg7[%c0_38, %c24] : memref<64x72xbf16, #tpu.memory_space<vmem>>, vector<64x8xbf16>
    tpu.vector_store %arg7[%c0_38, %c24], %31 {strides = array<i32>} : memref<64x72xbf16, #tpu.memory_space<vmem>>, vector<64x8xbf16>,
    %c1_39 = arith.constant 1 : index
    %c1_40 = arith.constant 1 : index
    %c0_41 = arith.constant 0 : index
    %33 = vector.load %arg6[%c1_39, %c1_40, %c0_41] : memref<10x10x8xbf16, #tpu.memory_space<vmem>>, vector<8x8x8xbf16>
    %34 = vector.shape_cast %33 : vector<8x8x8xbf16> to vector<64x8xbf16>
    %c0_42 = arith.constant 0 : index
    %c32 = arith.constant 32 : index
    %35 = vector.load %arg7[%c0_42, %c32] : memref<64x72xbf16, #tpu.memory_space<vmem>>, vector<64x8xbf16>
    tpu.vector_store %arg7[%c0_42, %c32], %34 {strides = array<i32>} : memref<64x72xbf16, #tpu.memory_space<vmem>>, vector<64x8xbf16>,
    %c1_43 = arith.constant 1 : index
    %c2_44 = arith.constant 2 : index
    %c0_45 = arith.constant 0 : index
    %36 = vector.load %arg6[%c1_43, %c2_44, %c0_45] : memref<10x10x8xbf16, #tpu.memory_space<vmem>>, vector<8x8x8xbf16>
    %37 = vector.shape_cast %36 : vector<8x8x8xbf16> to vector<64x8xbf16>
    %c0_46 = arith.constant 0 : index
    %c40 = arith.constant 40 : index
    %38 = vector.load %arg7[%c0_46, %c40] : memref<64x72xbf16, #tpu.memory_space<vmem>>, vector<64x8xbf16>
    tpu.vector_store %arg7[%c0_46, %c40], %37 {strides = array<i32>} : memref<64x72xbf16, #tpu.memory_space<vmem>>, vector<64x8xbf16>,
    %c2_47 = arith.constant 2 : index
    %c0_48 = arith.constant 0 : index
    %c0_49 = arith.constant 0 : index
    %39 = vector.load %arg6[%c2_47, %c0_48, %c0_49] : memref<10x10x8xbf16, #tpu.memory_space<vmem>>, vector<8x8x8xbf16>
    %40 = vector.shape_cast %39 : vector<8x8x8xbf16> to vector<64x8xbf16>
    %c0_50 = arith.constant 0 : index
    %c48 = arith.constant 48 : index
    %41 = vector.load %arg7[%c0_50, %c48] : memref<64x72xbf16, #tpu.memory_space<vmem>>, vector<64x8xbf16>
    tpu.vector_store %arg7[%c0_50, %c48], %40 {strides = array<i32>} : memref<64x72xbf16, #tpu.memory_space<vmem>>, vector<64x8xbf16>,
    %c2_51 = arith.constant 2 : index
    %c1_52 = arith.constant 1 : index
    %c0_53 = arith.constant 0 : index
    %42 = vector.load %arg6[%c2_51, %c1_52, %c0_53] : memref<10x10x8xbf16, #tpu.memory_space<vmem>>, vector<8x8x8xbf16>
    %43 = vector.shape_cast %42 : vector<8x8x8xbf16> to vector<64x8xbf16>
    %c0_54 = arith.constant 0 : index
    %c56 = arith.constant 56 : index
    %44 = vector.load %arg7[%c0_54, %c56] : memref<64x72xbf16, #tpu.memory_space<vmem>>, vector<64x8xbf16>
    tpu.vector_store %arg7[%c0_54, %c56], %43 {strides = array<i32>} : memref<64x72xbf16, #tpu.memory_space<vmem>>, vector<64x8xbf16>,
    %c2_55 = arith.constant 2 : index
    %c2_56 = arith.constant 2 : index
    %c0_57 = arith.constant 0 : index
    %45 = vector.load %arg6[%c2_55, %c2_56, %c0_57] : memref<10x10x8xbf16, #tpu.memory_space<vmem>>, vector<8x8x8xbf16>
    %46 = vector.shape_cast %45 : vector<8x8x8xbf16> to vector<64x8xbf16>
    %c0_58 = arith.constant 0 : index
    %c64 = arith.constant 64 : index
    %47 = vector.load %arg7[%c0_58, %c64] : memref<64x72xbf16, #tpu.memory_space<vmem>>, vector<64x8xbf16>
    tpu.vector_store %arg7[%c0_58, %c64], %46 {strides = array<i32>} : memref<64x72xbf16, #tpu.memory_space<vmem>>, vector<64x8xbf16>,
    %c0_59 = arith.constant 0 : index
    %c0_60 = arith.constant 0 : index
    %48 = vector.load %arg7[%c0_59, %c0_60] : memref<64x72xbf16, #tpu.memory_space<vmem>>, vector<64x72xbf16>
    %c0_61 = arith.constant 0 : index
    %c0_62 = arith.constant 0 : index
    %49 = vector.load %arg3[%c0_61, %c0_62] : memref<72x8xbf16, #tpu.memory_space<vmem>>, vector<72x8xbf16>
    %cst_63 = arith.constant dense<0.000000e+00> : vector<64x8xf32>
    %50 = tpu.matmul %48, %49, %cst_63 {dimension_numbers = #tpu.dot_dimension_numbers<[1], [0], [0], [1], [0, 0, 1, 1], [], []>} : vector<64x72xbf16>, vector<72x8xbf16>, vector<64x8xf32> -> vector<64x8xf32>
    %c0_64 = arith.constant 0 : index
    %c0_65 = arith.constant 0 : index
    %c0_66 = arith.constant 0 : index
    %51 = vector.load %arg4[%c0_64, %c0_65, %c0_66] : memref<1x64x8xf32, #tpu.memory_space<vmem>>, vector<1x64x8xf32>
    %52 = vector.shape_cast %51 : vector<1x64x8xf32> to vector<64x8xf32>
    %53 = vector.shape_cast %50 : vector<64x8xf32> to vector<1x64x8xf32>
    tpu.vector_store %arg4[%c0_64, %c0_65, %c0_66], %53 {strides = array<i32>} : memref<1x64x8xf32, #tpu.memory_space<vmem>>, vector<1x64x8xf32>,
    %cst_67 = arith.constant dense<0.000000e+00> : vector<8xf32>
    %54 = vector.multi_reduction <add>, %50, %cst_67 [0] : vector<64x8xf32> to vector<8xf32>
    %55 = vector.shape_cast %54 : vector<8xf32> to vector<1x8xf32>
    %c0_68 = arith.constant 0 : index
    %c0_69 = arith.constant 0 : index
    %c0_70 = arith.constant 0 : index
    %56 = vector.load %arg5[%c0_68, %c0_69, %c0_70] : memref<1x2x8xf32, #tpu.memory_space<vmem>>, vector<1x1x8xf32>
    %57 = vector.shape_cast %56 : vector<1x1x8xf32> to vector<1x8xf32>
    %58 = vector.shape_cast %55 : vector<1x8xf32> to vector<1x1x8xf32>
    tpu.vector_store %arg5[%c0_68, %c0_69, %c0_70], %58 {strides = array<i32>} : memref<1x2x8xf32, #tpu.memory_space<vmem>>, vector<1x1x8xf32>,
    %59 = arith.mulf %50, %50 : vector<64x8xf32>
    %cst_71 = arith.constant dense<0.000000e+00> : vector<8xf32>
    %60 = vector.multi_reduction <add>, %59, %cst_71 [0] : vector<64x8xf32> to vector<8xf32>
    %61 = vector.shape_cast %60 : vector<8xf32> to vector<1x8xf32>
    %c0_72 = arith.constant 0 : index
    %c1_73 = arith.constant 1 : index
    %c0_74 = arith.constant 0 : index
    %62 = vector.load %arg5[%c0_72, %c1_73, %c0_74] : memref<1x2x8xf32, #tpu.memory_space<vmem>>, vector<1x1x8xf32>
    %63 = vector.shape_cast %62 : vector<1x1x8xf32> to vector<1x8xf32>
    %64 = vector.shape_cast %61 : vector<1x8xf32> to vector<1x1x8xf32>
    tpu.vector_store %arg5[%c0_72, %c1_73, %c0_74], %64 {strides = array<i32>} : memref<1x2x8xf32, #tpu.memory_space<vmem>>, vector<1x1x8xf32>,
    return
  }
  func.func @transform_0(%arg0: i32) -> (i32, i32, i32) {
    %c0_i32 = arith.constant 0 : i32
    %c0_i32_0 = arith.constant 0 : i32
    %c0_i32_1 = arith.constant 0 : i32
    return %arg0, %c0_i32, %c0_i32_0 : i32, i32, i32
  }
  func.func @transform_1(%arg0: i32) -> (i32, i32) {
    %c0_i32 = arith.constant 0 : i32
    %c0_i32_0 = arith.constant 0 : i32
    %c0_i32_1 = arith.constant 0 : i32
    return %c0_i32, %c0_i32_0 : i32, i32
  }
  func.func @transform_2(%arg0: i32) -> (i32, i32) {
    %c0_i32 = arith.constant 0 : i32
    %c0_i32_0 = arith.constant 0 : i32
    %c0_i32_1 = arith.constant 0 : i32
    return %c0_i32, %c0_i32_0 : i32, i32
  }
  func.func @transform_3(%arg0: i32) -> (i32, i32, i32) {
    %c0_i32 = arith.constant 0 : i32
    %c0_i32_0 = arith.constant 0 : i32
    %c0_i32_1 = arith.constant 0 : i32
    return %arg0, %c0_i32, %c0_i32_0 : i32, i32, i32
  }
  func.func @transform_4(%arg0: i32) -> (i32, i32, i32) {
    %c0_i32 = arith.constant 0 : i32
    %c0_i32_0 = arith.constant 0 : i32
    %c0_i32_1 = arith.constant 0 : i32
    return %arg0, %c0_i32, %c0_i32_0 : i32, i32, i32
  }
}

</mosaic_0001>

<llo_original>
// kernel: down_forward.5
$region0: #{down_forward.5}
  #allocation0 [shape = 'u32[]', space=smem, size = 0x4, offset = 0x4, fixed_abs, tag = 'smem constant byte address 0x4 - core index']
  #allocation1 [shape = 'u32[144,128]{1,0:T(1,128)}', space=vmem, size = 0x12000, scoped, tag = 'internal scratch']
  %s0 = inlined_call_operand.vmem [shape: f32[2,64,8], index: 0, kind: input, shape index: {}]
  %s1 = inlined_call_operand.vmem [shape: f32[2,8], index: 1, kind: input, shape index: {}]
  %s2 = inlined_call_operand.vmem [shape: f32[2,64,8], index: 2, kind: output, shape index: {}]
  %s3 = sld [smem:[#allocation0]]
  $region41: #{down_forward.5} parent=0
    _
  %s5 = ssub.s32 1, %s3
  %s6 = scalar_select 0, %s5, %s3
  loop: start=0, step=1, limit=4
  $region2: #{down_forward.5} parent=0 // loop_pre_header
    _
  $region3: #{down_forward.5} parent=0 // loop_header
    %s8 = sphi 0, %s12
    %p9 = scmp.ge.s32.totalorder %s8, 4
    %s18 = sphi 0, %s20
    %s21 = sphi 0, %s18
    %s22 = sphi 0, %s21
    %s38 = sphi 0, %s22
    %s42 = sphi 0, %s42
    %s44 = sphi 0, %s42
    %s45 = sphi 0, %s44
    %s59 = sphi 0, %s45
    %s65 = sphi 0, %s67
    %s68 = sphi 0, %s65
    %s69 = sphi 0, %s68
    %s85 = sphi 0, %s69
  $region4: #{down_forward.5} parent=0 // loop_header_branch
    %11 = sbr.rel (%p9) target = $region8
  $region5: #{down_forward.5} parent=0 // loop_body
    %s13 = ssub.s32 %s8, 1
    %s14 = ssub.s32 %s8, 2
    %s15 = sadd.s32 %s8, 1
    %s16 = ssub.s32 %s8, %s15
    %p17 = scmp.eq.s32.totalorder %s16, 0
    %s19 = sadd.s32 %s18, 1
    %s20 = scalar_select %p17, %s18, %s19
    %p23 = pneg %p17
    %p24 = scmp.eq.s32.totalorder %s8, 1
    %p25 = por %p23, %p24
    %p26 = scmp.ne.s32.totalorder %s18, %s21
    %p27 = scmp.eq.s32.totalorder %s8, 0
    %p28 = por %p26, %p27
    %p29 = scmp.ne.s32.totalorder %s18, %s21
    %p30 = scmp.eq.s32.totalorder %s13, 1
    %p31 = por %p29, %p30
    %p32 = scmp.ne.s32.totalorder %s21, %s22
    %p33 = scmp.eq.s32.totalorder %s13, 0
    %p34 = por %p32, %p33
    %p35 = scmp.ne.s32.totalorder %s21, %s22
    %p36 = scmp.eq.s32.totalorder %s14, 1
    %p37 = por %p35, %p36
    %p39 = scmp.ne.s32.totalorder %s22, %s38
    %p40 = scmp.eq.s32.totalorder %s14, 0
    %p41 = por %p39, %p40
    %s43 = sadd.s32 %s42, 1
    %p46 = scmp.eq.s32.totalorder %s8, 1
    %p47 = scmp.ne.s32.totalorder %s42, %s44
    %p48 = scmp.eq.s32.totalorder %s8, 0
    %p49 = por %p47, %p48
    %p50 = scmp.ne.s32.totalorder %s42, %s44
    %p51 = scmp.eq.s32.totalorder %s13, 1
    %p52 = por %p50, %p51
    %p53 = scmp.ne.s32.totalorder %s44, %s45
    %p54 = scmp.eq.s32.totalorder %s13, 0
    %p55 = por %p53, %p54
    %p56 = scmp.ne.s32.totalorder %s44, %s45
    %p57 = scmp.eq.s32.totalorder %s14, 1
    %p58 = por %p56, %p57
    %p60 = scmp.ne.s32.totalorder %s45, %s59
    %p61 = scmp.eq.s32.totalorder %s14, 0
    %p62 = por %p60, %p61
    %s63 = ssub.s32 %s8, %s15
    %p64 = scmp.eq.s32.totalorder %s63, 0
    %s66 = sadd.s32 %s65, 1
    %s67 = scalar_select %p64, %s65, %s66
    %p70 = pneg %p64
    %p71 = scmp.eq.s32.totalorder %s8, 1
    %p72 = por %p70, %p71
    %p73 = scmp.ne.s32.totalorder %s65, %s68
    %p74 = scmp.eq.s32.totalorder %s8, 0
    %p75 = por %p73, %p74
    %p76 = scmp.ne.s32.totalorder %s65, %s68
    %p77 = scmp.eq.s32.totalorder %s13, 1
    %p78 = por %p76, %p77
    %p79 = scmp.ne.s32.totalorder %s68, %s69
    %p80 = scmp.eq.s32.totalorder %s13, 0
    %p81 = por %p79, %p80
    %p82 = scmp.ne.s32.totalorder %s68, %s69
    %p83 = scmp.eq.s32.totalorder %s14, 1
    %p84 = por %p82, %p83
    %p86 = scmp.ne.s32.totalorder %s69, %s85
    %p87 = scmp.eq.s32.totalorder %s14, 0
    %p88 = por %p86, %p87
    %p89 = scmp.le.s32.totalorder 1, %s8
    %p90 = scmp.lt.s32.totalorder %s8, 3
    %p91 = pnand %p89, %p90
    %p92 = pneg %p91
    // Predicated region
    $region9: #{down_forward.5} parent=5 // pred_check
      _
    $region10: #{down_forward.5} parent=5 // pred_check_branch
      %94 = sbr.rel (%p91) target = $region12
    $region11: #{down_forward.5} parent=5 // pred_region
      %s95 = ssub.s32 %s8, 1
      // Predicated region
      $region13: #{down_forward.5} parent=11 // pred_check
        %p96 = pneg %p55
      $region14: #{down_forward.5} parent=11 // pred_check_branch
        %98 = sbr.rel (%p96) target = $region16
      $region15: #{down_forward.5} parent=11 // pred_region
        _
      $region16: #{down_forward.5} parent=11 // pred_fallthru
        _
    $region12: #{down_forward.5} parent=5 // pred_fallthru
      _
    %p99 = scmp.lt.s32.totalorder %s8, 2
    // Predicated region
    $region17: #{down_forward.5} parent=5 // pred_check
      %p100 = pneg %p99
    $region18: #{down_forward.5} parent=5 // pred_check_branch
      %102 = sbr.rel (%p100) target = $region20
    $region19: #{down_forward.5} parent=5 // pred_region
      // Predicated region
      $region21: #{down_forward.5} parent=19 // pred_check
        %p103 = pneg %p28
      $region22: #{down_forward.5} parent=19 // pred_check_branch
        %105 = sbr.rel (%p103) target = $region24
      $region23: #{down_forward.5} parent=19 // pred_region
        %p106 = scmp.lt.s32.totalorder %s8, 1
        %s107 = scalar_select %p106, %s8, 1
        %s108 = smul.addr %s107, 8
        %s109 = smul.addr %s108, 8
        %s110 = scalar_lea.vmem %s0, %s109
      $region24: #{down_forward.5} parent=19 // pred_fallthru
        _
    $region20: #{down_forward.5} parent=5 // pred_fallthru
      _
    %p111 = scmp.le.s32.totalorder 1, %s8
    %p112 = scmp.lt.s32.totalorder %s8, 3
    %p113 = pnand %p111, %p112
    %p114 = pneg %p113
    // Predicated region
    $region25: #{down_forward.5} parent=5 // pred_check
      _
    $region26: #{down_forward.5} parent=5 // pred_check_branch
      %116 = sbr.rel (%p113) target = $region28
    $region27: #{down_forward.5} parent=5 // pred_region
      %s117 = ssub.s32 %s8, 1
      %p118 = scmp.lt.s32.totalorder %s13, 1
      %s119 = scalar_select %p118, %s13, 1
      %s120 = smul.addr %s119, 8
      %s121 = smul.addr %s120, 8
      %s122 = scalar_lea.vmem %s0, %s121
      %p123 = pneg %p34
      %p124 = pneg %p31
      %p125 = pneg %p55
      %p126 = pneg %p52
      %p127 = pneg %p81
      %p128 = pneg %p78
      %p129 = scmp.lt.s32.totalorder %s13, 1
      %s130 = scalar_select %p129, %s13, 1
      %s131 = smul.addr %s130, 8
      %s132 = smul.addr %s131, 8
      %s133 = scalar_lea.vmem %s2, %s132
      %p134 = scmp.lt.s32.totalorder %s13, 1
      %s135 = scalar_select %p134, %s13, 1
      %s136 = smul.addr %s135, 8
      %s137 = smul.addr %s136, 8
      %s138 = scalar_lea.vmem %s0, %s137
      %p139 = scmp.lt.s32.totalorder %s13, 1
      %s140 = scalar_select %p139, %s13, 1
      %s141 = smul.addr %s140, 8
      %s142 = smul.addr %s141, 8
      %s143 = scalar_lea.vmem %s2, %s142
      %v144 = vld [vmem:[%s138] sm:$0xff]
      %v145 = vld [vmem:[%s138 + $0x8] sm:$0xff]
      %v146 = vld [vmem:[%s138 + $0x10] sm:$0xff]
      %v147 = vld [vmem:[%s138 + $0x18] sm:$0xff]
      %v148 = vld [vmem:[%s138 + $0x20] sm:$0xff]
      %v149 = vld [vmem:[%s138 + $0x28] sm:$0xff]
      %v150 = vld [vmem:[%s138 + $0x30] sm:$0xff]
      %v151 = vld [vmem:[%s138 + $0x38] sm:$0xff]
      %v152 = vld [vmem:[%s1] sm:$0x1]
      %v153 = vlaneseq
      %v154 = vshrl.u32 %v153, 7
      %v155 = vsub.s32 0, %v154
      %v156 = vrot.slane %v152, %v155
      %v157 = vmul.f32 %v144, %v156
      %v158 = vmul.f32 %v145, %v156
      %v159 = vmul.f32 %v146, %v156
      %v160 = vmul.f32 %v147, %v156
      %v161 = vmul.f32 %v148, %v156
      %v162 = vmul.f32 %v149, %v156
      %v163 = vmul.f32 %v150, %v156
      %v164 = vmul.f32 %v151, %v156
      %v165 = vld [vmem:[%s1 + $0x1] sm:$0x1]
      %v166 = vlaneseq
      %v167 = vshrl.u32 %v166, 7
      %v168 = vsub.s32 0, %v167
      %v169 = vrot.slane %v165, %v168
      %v170 = vadd.f32 %v157, %v169
      %v171 = vadd.f32 %v158, %v169
      %v172 = vadd.f32 %v159, %v169
      %v173 = vadd.f32 %v160, %v169
      %v174 = vadd.f32 %v161, %v169
      %v175 = vadd.f32 %v162, %v169
      %v176 = vadd.f32 %v163, %v169
      %v177 = vadd.f32 %v164, %v169
      %v178 = vmax.f32 %v170, 0.0
      %v179 = vmax.f32 %v171, 0.0
      %v180 = vmax.f32 %v172, 0.0
      %v181 = vmax.f32 %v173, 0.0
      %v182 = vmax.f32 %v174, 0.0
      %v183 = vmax.f32 %v175, 0.0
      %v184 = vmax.f32 %v176, 0.0
      %v185 = vmax.f32 %v177, 0.0
      %vm186 = vcmask 64512
      %187 = vst.msk [vmem:[%s143] sm:$0xff] %vm186, %v178
      %188 = vst.msk [vmem:[%s143 + $0x8] sm:$0xff] %vm186, %v179
      %189 = vst.msk [vmem:[%s143 + $0x10] sm:$0xff] %vm186, %v180
      %190 = vst.msk [vmem:[%s143 + $0x18] sm:$0xff] %vm186, %v181
      %191 = vst.msk [vmem:[%s143 + $0x20] sm:$0xff] %vm186, %v182
      %192 = vst.msk [vmem:[%s143 + $0x28] sm:$0xff] %vm186, %v183
      %193 = vst.msk [vmem:[%s143 + $0x30] sm:$0xff] %vm186, %v184
      %194 = vst.msk [vmem:[%s143 + $0x38] sm:$0xff] %vm186, %v185
      %p195 = scmp.lt.s32.totalorder %s13, 1
      %s196 = scalar_select %p195, %s13, 1
      %s197 = smul.addr %s196, 8
      %s198 = smul.addr %s197, 8
      %s199 = scalar_lea.vmem %s2, %s198
      // Predicated region
      $region29: #{down_forward.5} parent=27 // pred_check
        %p200 = pneg %p78
      $region30: #{down_forward.5} parent=27 // pred_check_branch
        %202 = sbr.rel (%p200) target = $region32
      $region31: #{down_forward.5} parent=27 // pred_region
        _
      $region32: #{down_forward.5} parent=27 // pred_fallthru
        _
    $region28: #{down_forward.5} parent=5 // pred_fallthru
      _
    %p203 = scmp.le.s32.totalorder 2, %s8
    // Predicated region
    $region33: #{down_forward.5} parent=5 // pred_check
      %p204 = pneg %p203
    $region34: #{down_forward.5} parent=5 // pred_check_branch
      %206 = sbr.rel (%p204) target = $region36
    $region35: #{down_forward.5} parent=5 // pred_region
      %s207 = ssub.s32 %s8, 2
      // Predicated region
      $region37: #{down_forward.5} parent=35 // pred_check
        %p208 = pneg %p84
      $region38: #{down_forward.5} parent=35 // pred_check_branch
        %210 = sbr.rel (%p208) target = $region40
      $region39: #{down_forward.5} parent=35 // pred_region
        %p211 = scmp.lt.s32.totalorder %s14, 1
        %s212 = scalar_select %p211, %s14, 1
        %s213 = smul.addr %s212, 8
        %s214 = smul.addr %s213, 8
        %s215 = scalar_lea.vmem %s2, %s214
      $region40: #{down_forward.5} parent=35 // pred_fallthru
        _
    $region36: #{down_forward.5} parent=5 // pred_fallthru
      _
  $region6: #{down_forward.5} parent=0 // loop_footer
    %s12 = sadd.s32 1, %s8
  $region7: #{down_forward.5} parent=0 // loop_footer_branch
    %7 = sbr.rel target = $region3
  $region8: #{down_forward.5} parent=0 // loop_exit
    _

// kernel: down_forward.4
$region0: #{down_forward.4}
  #allocation0 [shape = 'u32[]', space=smem, size = 0x4, offset = 0x4, fixed_abs, tag = 'smem constant byte address 0x4 - core index']
  #allocation1 [shape = 'u32[144,128]{1,0:T(1,128)}', space=vmem, size = 0x12000, scoped, tag = 'internal scratch']
  #allocation2 [shape = 'bf16[10,10,8]{2,1,0:T(8,128)(2,1)}', space=vmem, size = 0xa000, scoped, tag = 'scratch operand']
  #allocation3 [shape = 'bf16[64,72]{1,0:T(16,128)(2,1)}', space=vmem, size = 0x4000, scoped, tag = 'scratch operand']
  %s0 = inlined_call_operand.vmem [shape: f32[2,64,8], index: 0, kind: input, shape index: {}]
  %s1 = inlined_call_operand.vmem [shape: f32[2,8], index: 1, kind: input, shape index: {}]
  %s2 = inlined_call_operand.vmem [shape: bf16[72,8], index: 2, kind: input, shape index: {}]
  %s3 = inlined_call_operand.vmem [shape: f32[2,64,8], index: 3, kind: output, shape index: {0}]
  %s4 = inlined_call_operand.vmem [shape: f32[2,2,8], index: 4, kind: output, shape index: {1}]
  %5 = xla_tuple %s3, %s4
  %s6 = sld [smem:[#allocation0]]
  $region53: #{down_forward.4} parent=0
    _
  %s8 = ssub.s32 1, %s6
  %s9 = scalar_select 0, %s8, %s6
  loop: start=0, step=1, limit=4
  $region2: #{down_forward.4} parent=0 // loop_pre_header
    _
  $region3: #{down_forward.4} parent=0 // loop_header
    %s11 = sphi 0, %s15
    %p12 = scmp.ge.s32.totalorder %s11, 4
    %s21 = sphi 0, %s23
    %s24 = sphi 0, %s21
    %s25 = sphi 0, %s24
    %s41 = sphi 0, %s25
    %s45 = sphi 0, %s45
    %s47 = sphi 0, %s45
    %s48 = sphi 0, %s47
    %s62 = sphi 0, %s48
    %s66 = sphi 0, %s66
    %s68 = sphi 0, %s66
    %s69 = sphi 0, %s68
    %s83 = sphi 0, %s69
    %s89 = sphi 0, %s91
    %s92 = sphi 0, %s89
    %s93 = sphi 0, %s92
    %s109 = sphi 0, %s93
    %s115 = sphi 0, %s117
    %s118 = sphi 0, %s115
    %s119 = sphi 0, %s118
    %s135 = sphi 0, %s119
  $region4: #{down_forward.4} parent=0 // loop_header_branch
    %14 = sbr.rel (%p12) target = $region8
  $region5: #{down_forward.4} parent=0 // loop_body
    %s16 = ssub.s32 %s11, 1
    %s17 = ssub.s32 %s11, 2
    %s18 = sadd.s32 %s11, 1
    %s19 = ssub.s32 %s11, %s18
    %p20 = scmp.eq.s32.totalorder %s19, 0
    %s22 = sadd.s32 %s21, 1
    %s23 = scalar_select %p20, %s21, %s22
    %p26 = pneg %p20
    %p27 = scmp.eq.s32.totalorder %s11, 1
    %p28 = por %p26, %p27
    %p29 = scmp.ne.s32.totalorder %s21, %s24
    %p30 = scmp.eq.s32.totalorder %s11, 0
    %p31 = por %p29, %p30
    %p32 = scmp.ne.s32.totalorder %s21, %s24
    %p33 = scmp.eq.s32.totalorder %s16, 1
    %p34 = por %p32, %p33
    %p35 = scmp.ne.s32.totalorder %s24, %s25
    %p36 = scmp.eq.s32.totalorder %s16, 0
    %p37 = por %p35, %p36
    %p38 = scmp.ne.s32.totalorder %s24, %s25
    %p39 = scmp.eq.s32.totalorder %s17, 1
    %p40 = por %p38, %p39
    %p42 = scmp.ne.s32.totalorder %s25, %s41
    %p43 = scmp.eq.s32.totalorder %s17, 0
    %p44 = por %p42, %p43
    %s46 = sadd.s32 %s45, 1
    %p49 = scmp.eq.s32.totalorder %s11, 1
    %p50 = scmp.ne.s32.totalorder %s45, %s47
    %p51 = scmp.eq.s32.totalorder %s11, 0
    %p52 = por %p50, %p51
    %p53 = scmp.ne.s32.totalorder %s45, %s47
    %p54 = scmp.eq.s32.totalorder %s16, 1
    %p55 = por %p53, %p54
    %p56 = scmp.ne.s32.totalorder %s47, %s48
    %p57 = scmp.eq.s32.totalorder %s16, 0
    %p58 = por %p56, %p57
    %p59 = scmp.ne.s32.totalorder %s47, %s48
    %p60 = scmp.eq.s32.totalorder %s17, 1
    %p61 = por %p59, %p60
    %p63 = scmp.ne.s32.totalorder %s48, %s62
    %p64 = scmp.eq.s32.totalorder %s17, 0
    %p65 = por %p63, %p64
    %s67 = sadd.s32 %s66, 1
    %p70 = scmp.eq.s32.totalorder %s11, 1
    %p71 = scmp.ne.s32.totalorder %s66, %s68
    %p72 = scmp.eq.s32.totalorder %s11, 0
    %p73 = por %p71, %p72
    %p74 = scmp.ne.s32.totalorder %s66, %s68
    %p75 = scmp.eq.s32.totalorder %s16, 1
    %p76 = por %p74, %p75
    %p77 = scmp.ne.s32.totalorder %s68, %s69
    %p78 = scmp.eq.s32.totalorder %s16, 0
    %p79 = por %p77, %p78
    %p80 = scmp.ne.s32.totalorder %s68, %s69
    %p81 = scmp.eq.s32.totalorder %s17, 1
    %p82 = por %p80, %p81
    %p84 = scmp.ne.s32.totalorder %s69, %s83
    %p85 = scmp.eq.s32.totalorder %s17, 0
    %p86 = por %p84, %p85
    %s87 = ssub.s32 %s11, %s18
    %p88 = scmp.eq.s32.totalorder %s87, 0
    %s90 = sadd.s32 %s89, 1
    %s91 = scalar_select %p88, %s89, %s90
    %p94 = pneg %p88
    %p95 = scmp.eq.s32.totalorder %s11, 1
    %p96 = por %p94, %p95
    %p97 = scmp.ne.s32.totalorder %s89, %s92
    %p98 = scmp.eq.s32.totalorder %s11, 0
    %p99 = por %p97, %p98
    %p100 = scmp.ne.s32.totalorder %s89, %s92
    %p101 = scmp.eq.s32.totalorder %s16, 1
    %p102 = por %p100, %p101
    %p103 = scmp.ne.s32.totalorder %s92, %s93
    %p104 = scmp.eq.s32.totalorder %s16, 0
    %p105 = por %p103, %p104
    %p106 = scmp.ne.s32.totalorder %s92, %s93
    %p107 = scmp.eq.s32.totalorder %s17, 1
    %p108 = por %p106, %p107
    %p110 = scmp.ne.s32.totalorder %s93, %s109
    %p111 = scmp.eq.s32.totalorder %s17, 0
    %p112 = por %p110, %p111
    %s113 = ssub.s32 %s11, %s18
    %p114 = scmp.eq.s32.totalorder %s113, 0
    %s116 = sadd.s32 %s115, 1
    %s117 = scalar_select %p114, %s115, %s116
    %p120 = pneg %p114
    %p121 = scmp.eq.s32.totalorder %s11, 1
    %p122 = por %p120, %p121
    %p123 = scmp.ne.s32.totalorder %s115, %s118
    %p124 = scmp.eq.s32.totalorder %s11, 0
    %p125 = por %p123, %p124
    %p126 = scmp.ne.s32.totalorder %s115, %s118
    %p127 = scmp.eq.s32.totalorder %s16, 1
    %p128 = por %p126, %p127
    %p129 = scmp.ne.s32.totalorder %s118, %s119
    %p130 = scmp.eq.s32.totalorder %s16, 0
    %p131 = por %p129, %p130
    %p132 = scmp.ne.s32.totalorder %s118, %s119
    %p133 = scmp.eq.s32.totalorder %s17, 1
    %p134 = por %p132, %p133
    %p136 = scmp.ne.s32.totalorder %s119, %s135
    %p137 = scmp.eq.s32.totalorder %s17, 0
    %p138 = por %p136, %p137
    %p139 = scmp.le.s32.totalorder 1, %s11
    %p140 = scmp.lt.s32.totalorder %s11, 3
    %p141 = pnand %p139, %p140
    %p142 = pneg %p141
    // Predicated region
    $region9: #{down_forward.4} parent=5 // pred_check
      _
    $region10: #{down_forward.4} parent=5 // pred_check_branch
      %144 = sbr.rel (%p141) target = $region12
    $region11: #{down_forward.4} parent=5 // pred_region
      %s145 = ssub.s32 %s11, 1
      // Predicated region
      $region13: #{down_forward.4} parent=11 // pred_check
        %p146 = pneg %p58
      $region14: #{down_forward.4} parent=11 // pred_check_branch
        %148 = sbr.rel (%p146) target = $region16
      $region15: #{down_forward.4} parent=11 // pred_region
        _
      $region16: #{down_forward.4} parent=11 // pred_fallthru
        _
      // Predicated region
      $region17: #{down_forward.4} parent=11 // pred_check
        %p149 = pneg %p79
      $region18: #{down_forward.4} parent=11 // pred_check_branch
        %151 = sbr.rel (%p149) target = $region20
      $region19: #{down_forward.4} parent=11 // pred_region
        _
      $region20: #{down_forward.4} parent=11 // pred_fallthru
        _
    $region12: #{down_forward.4} parent=5 // pred_fallthru
      _
    %p152 = scmp.lt.s32.totalorder %s11, 2
    // Predicated region
    $region21: #{down_forward.4} parent=5 // pred_check
      %p153 = pneg %p152
    $region22: #{down_forward.4} parent=5 // pred_check_branch
      %155 = sbr.rel (%p153) target = $region24
    $region23: #{down_forward.4} parent=5 // pred_region
      // Predicated region
      $region25: #{down_forward.4} parent=23 // pred_check
        %p156 = pneg %p31
      $region26: #{down_forward.4} parent=23 // pred_check_branch
        %158 = sbr.rel (%p156) target = $region28
      $region27: #{down_forward.4} parent=23 // pred_region
        %p159 = scmp.lt.s32.totalorder %s11, 1
        %s160 = scalar_select %p159, %s11, 1
        %s161 = smul.addr %s160, 8
        %s162 = smul.addr %s161, 8
        %s163 = scalar_lea.vmem %s0, %s162
      $region28: #{down_forward.4} parent=23 // pred_fallthru
        _
    $region24: #{down_forward.4} parent=5 // pred_fallthru
      _
    %p164 = scmp.le.s32.totalorder 1, %s11
    %p165 = scmp.lt.s32.totalorder %s11, 3
    %p166 = pnand %p164, %p165
    %p167 = pneg %p166
    // Predicated region
    $region29: #{down_forward.4} parent=5 // pred_check
      _
    $region30: #{down_forward.4} parent=5 // pred_check_branch
      %169 = sbr.rel (%p166) target = $region32
    $region31: #{down_forward.4} parent=5 // pred_region
      %s170 = ssub.s32 %s11, 1
      %p171 = scmp.lt.s32.totalorder %s16, 1
      %s172 = scalar_select %p171, %s16, 1
      %s173 = smul.addr %s172, 8
      %s174 = smul.addr %s173, 8
      %s175 = scalar_lea.vmem %s0, %s174
      %p176 = pneg %p37
      %p177 = pneg %p34
      %p178 = pneg %p58
      %p179 = pneg %p55
      %p180 = pneg %p79
      %p181 = pneg %p76
      %p182 = pneg %p105
      %p183 = pneg %p102
      %p184 = scmp.lt.s32.totalorder %s16, 1
      %s185 = scalar_select %p184, %s16, 1
      %s186 = smul.addr %s185, 8
      %s187 = smul.addr %s186, 8
      %s188 = scalar_lea.vmem %s3, %s187
      %p189 = pneg %p131
      %p190 = pneg %p128
      %p191 = scmp.lt.s32.totalorder %s16, 1
      %s192 = scalar_select %p191, %s16, 1
      %s193 = smul.addr %s192, 2
      %s194 = scalar_lea.vmem %s4, %s193
      %p195 = scmp.lt.s32.totalorder %s16, 1
      %s196 = scalar_select %p195, %s16, 1
      %s197 = smul.addr %s196, 8
      %s198 = smul.addr %s197, 8
      %s199 = scalar_lea.vmem %s0, %s198
      %p200 = scmp.lt.s32.totalorder %s16, 1
      %s201 = scalar_select %p200, %s16, 1
      %s202 = smul.addr %s201, 8
      %s203 = smul.addr %s202, 8
      %s204 = scalar_lea.vmem %s3, %s203
      %p205 = scmp.lt.s32.totalorder %s16, 1
      %s206 = scalar_select %p205, %s16, 1
      %s207 = smul.addr %s206, 2
      %s208 = scalar_lea.vmem %s4, %s207
      %v210 = vld [vmem:[%s199] sm:$0xff]
      %v211 = vld [vmem:[%s199 + $0x8] sm:$0xff]
      %v212 = vld [vmem:[%s199 + $0x10] sm:$0xff]
      %v213 = vld [vmem:[%s199 + $0x18] sm:$0xff]
      %v214 = vld [vmem:[%s199 + $0x20] sm:$0xff]
      %v215 = vld [vmem:[%s199 + $0x28] sm:$0xff]
      %v216 = vld [vmem:[%s199 + $0x30] sm:$0xff]
      %v217 = vld [vmem:[%s199 + $0x38] sm:$0xff]
      %v218 = vld [vmem:[%s1] sm:$0x1]
      %v219 = vlaneseq
      %v220 = vshrl.u32 %v219, 7
      %v221 = vsub.s32 0, %v220
      %v222 = vrot.slane %v218, %v221
      %v223 = vmul.f32 %v210, %v222
      %v224 = vmul.f32 %v211, %v222
      %v225 = vmul.f32 %v212, %v222
      %v226 = vmul.f32 %v213, %v222
      %v227 = vmul.f32 %v214, %v222
      %v228 = vmul.f32 %v215, %v222
      %v229 = vmul.f32 %v216, %v222
      %v230 = vmul.f32 %v217, %v222
      %v231 = vld [vmem:[%s1 + $0x1] sm:$0x1]
      %v232 = vlaneseq
      %v233 = vshrl.u32 %v232, 7
      %v234 = vsub.s32 0, %v233
      %v235 = vrot.slane %v231, %v234
      %v236 = vadd.f32 %v223, %v235
      %v237 = vadd.f32 %v224, %v235
      %v238 = vadd.f32 %v225, %v235
      %v239 = vadd.f32 %v226, %v235
      %v240 = vadd.f32 %v227, %v235
      %v241 = vadd.f32 %v228, %v235
      %v242 = vadd.f32 %v229, %v235
      %v243 = vadd.f32 %v230, %v235
      %v244 = vmax.f32 %v236, 0.0
      %v245 = vmax.f32 %v237, 0.0
      %v246 = vmax.f32 %v238, 0.0
      %v247 = vmax.f32 %v239, 0.0
      %v248 = vmax.f32 %v240, 0.0
      %v249 = vmax.f32 %v241, 0.0
      %v250 = vmax.f32 %v242, 0.0
      %v251 = vmax.f32 %v243, 0.0
      %v252 = vpack.c.bf16 %v245, %v244
      %v253 = vpack.c.bf16 %v247, %v246
      %v254 = vpack.c.bf16 %v249, %v248
      %v255 = vpack.c.bf16 %v251, %v250
      %v260 = vunpack.c.l.b16 %v252
      %v261 = vunpack.c.h.b16 %v252
      %v262 = vunpack.c.l.b16 %v253
      %v263 = vunpack.c.h.b16 %v253
      %v264 = vunpack.c.l.b16 %v254
      %v265 = vunpack.c.h.b16 %v254
      %v266 = vunpack.c.l.b16 %v255
      %v267 = vunpack.c.h.b16 %v255
      %v268 = vpack.c.b16 %v260, %v260
      %v269 = vpack.c.b16 %v261, %v261
      %v270 = vpack.c.b16 %v262, %v262
      %v271 = vpack.c.b16 %v263, %v263
      %v272 = vpack.c.b16 %v264, %v264
      %v273 = vpack.c.b16 %v265, %v265
      %v274 = vpack.c.b16 %v266, %v266
      %v275 = vpack.c.b16 %v267, %v267
      %vm276 = vcmask 60416
      %277 = vst.msk [vmem:[#allocation2] sm:$0xf] %vm276, 0
      %vm278 = vcmask 57344
      %279 = vst.msk [vmem:[#allocation2 + $0x4] sm:$0x1] %vm278, 0
      %s280 = scalar_lea.vmem [#allocation2], 72
      %281 = vst.msk [vmem:[%s280] sm:$0xf] %vm276, 0
      %282 = vst.msk [vmem:[%s280 + $0x4] sm:$0x1] %vm278, 0
      %vm283 = vcmask 57344
      %vm284 = vsmask.f32 256
      %vm285 = vmand %vm283, %vm284
      %v286 = vld [vmem:[#allocation2] sm:$0x1]
      %v287 = vsel %vm285, 0, %v286
      %288 = vst [vmem:[#allocation2] sm:$0x1] %v287
      %v289 = vld [vmem:[#allocation2 + $0x8] sm:$0x1]
      %v290 = vsel %vm285, 0, %v289
      %291 = vst [vmem:[#allocation2 + $0x8] sm:$0x1] %v290
      %v292 = vld [vmem:[#allocation2 + $0x10] sm:$0x1]
      %v293 = vsel %vm285, 0, %v292
      %294 = vst [vmem:[#allocation2 + $0x10] sm:$0x1] %v293
      %v295 = vld [vmem:[#allocation2 + $0x18] sm:$0x1]
      %v296 = vsel %vm285, 0, %v295
      %297 = vst [vmem:[#allocation2 + $0x18] sm:$0x1] %v296
      %v298 = vld [vmem:[#allocation2 + $0x20] sm:$0x1]
      %v299 = vsel %vm285, 0, %v298
      %300 = vst [vmem:[#allocation2 + $0x20] sm:$0x1] %v299
      %v301 = vld [vmem:[#allocation2 + $0x28] sm:$0x1]
      %v302 = vsel %vm285, 0, %v301
      %303 = vst [vmem:[#allocation2 + $0x28] sm:$0x1] %v302
      %v304 = vld [vmem:[#allocation2 + $0x30] sm:$0x1]
      %v305 = vsel %vm285, 0, %v304
      %306 = vst [vmem:[#allocation2 + $0x30] sm:$0x1] %v305
      %v307 = vld [vmem:[#allocation2 + $0x38] sm:$0x1]
      %v308 = vsel %vm285, 0, %v307
      %309 = vst [vmem:[#allocation2 + $0x38] sm:$0x1] %v308
      %v310 = vld [vmem:[#allocation2 + $0x40] sm:$0x1]
      %v311 = vsel %vm285, 0, %v310
      %312 = vst [vmem:[#allocation2 + $0x40] sm:$0x1] %v311
      %v313 = vld [vmem:[#allocation2 + $0x48] sm:$0x1]
      %v314 = vsel %vm285, 0, %v313
      %315 = vst [vmem:[#allocation2 + $0x48] sm:$0x1] %v314
      %vm316 = vsmask.f32 7938
      %vm317 = vmand %vm283, %vm316
      %v318 = vld [vmem:[#allocation2 + $0x4] sm:$0x1]
      %v319 = vsel %vm317, 0, %v318
      %320 = vst [vmem:[#allocation2 + $0x4] sm:$0x1] %v319
      %v321 = vld [vmem:[#allocation2 + $0xc] sm:$0x1]
      %v322 = vsel %vm317, 0, %v321
      %323 = vst [vmem:[#allocation2 + $0xc] sm:$0x1] %v322
      %v324 = vld [vmem:[#allocation2 + $0x14] sm:$0x1]
      %v325 = vsel %vm317, 0, %v324
      %326 = vst [vmem:[#allocation2 + $0x14] sm:$0x1] %v325
      %v327 = vld [vmem:[#allocation2 + $0x1c] sm:$0x1]
      %v328 = vsel %vm317, 0, %v327
      %329 = vst [vmem:[#allocation2 + $0x1c] sm:$0x1] %v328
      %v330 = vld [vmem:[#allocation2 + $0x24] sm:$0x1]
      %v331 = vsel %vm317, 0, %v330
      %332 = vst [vmem:[#allocation2 + $0x24] sm:$0x1] %v331
      %v333 = vld [vmem:[#allocation2 + $0x2c] sm:$0x1]
      %v334 = vsel %vm317, 0, %v333
      %335 = vst [vmem:[#allocation2 + $0x2c] sm:$0x1] %v334
      %v336 = vld [vmem:[#allocation2 + $0x34] sm:$0x1]
      %v337 = vsel %vm317, 0, %v336
      %338 = vst [vmem:[#allocation2 + $0x34] sm:$0x1] %v337
      %v339 = vld [vmem:[#allocation2 + $0x3c] sm:$0x1]
      %v340 = vsel %vm317, 0, %v339
      %341 = vst [vmem:[#allocation2 + $0x3c] sm:$0x1] %v340
      %v342 = vld [vmem:[#allocation2 + $0x44] sm:$0x1]
      %v343 = vsel %vm317, 0, %v342
      %344 = vst [vmem:[#allocation2 + $0x44] sm:$0x1] %v343
      %v345 = vld [vmem:[#allocation2 + $0x4c] sm:$0x1]
      %v346 = vsel %vm317, 0, %v345
      %347 = vst [vmem:[#allocation2 + $0x4c] sm:$0x1] %v346
      %v349 = vshrl.u32 %v268, 16
      %v351 = vrot.slane %v349, 7
      %v352 = vshll.u32 %v268, 16
      %v354 = vor.u32 %v351, %v352
      %v355 = vrot.slane %v351, 4
      %v357 = vshrl.u32 %v269, 16
      %v359 = vrot.slane %v357, 7
      %v360 = vshll.u32 %v269, 16
      %v362 = vor.u32 %v359, %v360
      %v363 = vrot.slane %v359, 4
      %v365 = vshrl.u32 %v270, 16
      %v367 = vrot.slane %v365, 7
      %v368 = vshll.u32 %v270, 16
      %v370 = vor.u32 %v367, %v368
      %v371 = vrot.slane %v367, 4
      %v373 = vshrl.u32 %v271, 16
      %v375 = vrot.slane %v373, 7
      %v376 = vshll.u32 %v271, 16
      %v378 = vor.u32 %v375, %v376
      %v379 = vrot.slane %v375, 4
      %v381 = vshrl.u32 %v272, 16
      %v383 = vrot.slane %v381, 7
      %v384 = vshll.u32 %v272, 16
      %v386 = vor.u32 %v383, %v384
      %v387 = vrot.slane %v383, 4
      %v389 = vshrl.u32 %v273, 16
      %v391 = vrot.slane %v389, 7
      %v392 = vshll.u32 %v273, 16
      %v394 = vor.u32 %v391, %v392
      %v395 = vrot.slane %v391, 4
      %v397 = vshrl.u32 %v274, 16
      %v399 = vrot.slane %v397, 7
      %v400 = vshll.u32 %v274, 16
      %v402 = vor.u32 %v399, %v400
      %v403 = vrot.slane %v399, 4
      %v405 = vshrl.u32 %v275, 16
      %v407 = vrot.slane %v405, 7
      %v408 = vshll.u32 %v275, 16
      %v410 = vor.u32 %v407, %v408
      %v411 = vrot.slane %v407, 4
      %s428 = scalar_lea.vmem [#allocation2], 8
      %vm429 = vcmask 60416
      %vm430 = vmand %vm429, %vm316
      %v431 = vld [vmem:[%s428] sm:$0xf]
      %v432 = vsel %vm430, %v354, %v431
      %433 = vst [vmem:[%s428] sm:$0xf] %v432
      %v434 = vld [vmem:[%s428 + $0x4] sm:$0x1]
      %v435 = vsel %vm285, %v355, %v434
      %436 = vst [vmem:[%s428 + $0x4] sm:$0x1] %v435
      %v437 = vld [vmem:[%s428 + $0x8] sm:$0xf]
      %v438 = vsel %vm430, %v362, %v437
      %439 = vst [vmem:[%s428 + $0x8] sm:$0xf] %v438
      %v440 = vld [vmem:[%s428 + $0xc] sm:$0x1]
      %v441 = vsel %vm285, %v363, %v440
      %442 = vst [vmem:[%s428 + $0xc] sm:$0x1] %v441
      %v443 = vld [vmem:[%s428 + $0x10] sm:$0xf]
      %v444 = vsel %vm430, %v370, %v443
      %445 = vst [vmem:[%s428 + $0x10] sm:$0xf] %v444
      %v446 = vld [vmem:[%s428 + $0x14] sm:$0x1]
      %v447 = vsel %vm285, %v371, %v446
      %448 = vst [vmem:[%s428 + $0x14] sm:$0x1] %v447
      %v449 = vld [vmem:[%s428 + $0x18] sm:$0xf]
      %v450 = vsel %vm430, %v378, %v449
      %451 = vst [vmem:[%s428 + $0x18] sm:$0xf] %v450
      %v452 = vld [vmem:[%s428 + $0x1c] sm:$0x1]
      %v453 = vsel %vm285, %v379, %v452
      %454 = vst [vmem:[%s428 + $0x1c] sm:$0x1] %v453
      %v455 = vld [vmem:[%s428 + $0x20] sm:$0xf]
      %v456 = vsel %vm430, %v386, %v455
      %457 = vst [vmem:[%s428 + $0x20] sm:$0xf] %v456
      %v458 = vld [vmem:[%s428 + $0x24] sm:$0x1]
      %v459 = vsel %vm285, %v387, %v458
      %460 = vst [vmem:[%s428 + $0x24] sm:$0x1] %v459
      %v461 = vld [vmem:[%s428 + $0x28] sm:$0xf]
      %v462 = vsel %vm430, %v394, %v461
      %463 = vst [vmem:[%s428 + $0x28] sm:$0xf] %v462
      %v464 = vld [vmem:[%s428 + $0x2c] sm:$0x1]
      %v465 = vsel %vm285, %v395, %v464
      %466 = vst [vmem:[%s428 + $0x2c] sm:$0x1] %v465
      %v467 = vld [vmem:[%s428 + $0x30] sm:$0xf]
      %v468 = vsel %vm430, %v402, %v467
      %469 = vst [vmem:[%s428 + $0x30] sm:$0xf] %v468
      %v470 = vld [vmem:[%s428 + $0x34] sm:$0x1]
      %v471 = vsel %vm285, %v403, %v470
      %472 = vst [vmem:[%s428 + $0x34] sm:$0x1] %v471
      %v473 = vld [vmem:[%s428 + $0x38] sm:$0xf]
      %v474 = vsel %vm430, %v410, %v473
      %475 = vst [vmem:[%s428 + $0x38] sm:$0xf] %v474
      %v476 = vld [vmem:[%s428 + $0x3c] sm:$0x1]
      %v477 = vsel %vm285, %v411, %v476
      %478 = vst [vmem:[%s428 + $0x3c] sm:$0x1] %v477
      %v479 = vld [vmem:[#allocation2] sm:$0xf]
      %v480 = vld [vmem:[#allocation2 + $0x8] sm:$0xf]
      %v481 = vld [vmem:[#allocation2 + $0x10] sm:$0xf]
      %v482 = vld [vmem:[#allocation2 + $0x18] sm:$0xf]
      %v483 = vld [vmem:[#allocation2 + $0x20] sm:$0xf]
      %v484 = vld [vmem:[#allocation2 + $0x28] sm:$0xf]
      %v485 = vld [vmem:[#allocation2 + $0x30] sm:$0xf]
      %v486 = vld [vmem:[#allocation2 + $0x38] sm:$0xf]
      %v495 = vunpack.c.l.b16 %v479
      %v496 = vunpack.c.l.b16 %v480
      %v497 = vunpack.c.l.b16 %v481
      %v498 = vunpack.c.l.b16 %v482
      %v499 = vunpack.c.l.b16 %v483
      %v500 = vunpack.c.l.b16 %v484
      %v501 = vunpack.c.l.b16 %v485
      %v502 = vunpack.c.l.b16 %v486
      %v503 = vpack.c.b16 %v496, %v495
      %v504 = vpack.c.b16 %v498, %v497
      %v505 = vpack.c.b16 %v500, %v499
      %v506 = vpack.c.b16 %v502, %v501
      %vm511 = vcmask 64512
      %512 = vst.msk [vmem:[#allocation3] sm:$0xff] %vm511, %v503
      %513 = vst.msk [vmem:[#allocation3 + $0x8] sm:$0xff] %vm511, %v504
      %514 = vst.msk [vmem:[#allocation3 + $0x10] sm:$0xff] %vm511, %v505
      %515 = vst.msk [vmem:[#allocation3 + $0x18] sm:$0xff] %vm511, %v506
      %v516 = vld [vmem:[#allocation2] sm:$0xf]
      %v517 = vld [vmem:[#allocation2 + $0x4] sm:$0x1]
      %v518 = vld [vmem:[#allocation2 + $0x8] sm:$0xf]
      %v519 = vld [vmem:[#allocation2 + $0xc] sm:$0x1]
      %v520 = vld [vmem:[#allocation2 + $0x10] sm:$0xf]
      %v521 = vld [vmem:[#allocation2 + $0x14] sm:$0x1]
      %v522 = vld [vmem:[#allocation2 + $0x18] sm:$0xf]
      %v523 = vld [vmem:[#allocation2 + $0x1c] sm:$0x1]
      %v524 = vld [vmem:[#allocation2 + $0x20] sm:$0xf]
      %v525 = vld [vmem:[#allocation2 + $0x24] sm:$0x1]
      %v526 = vld [vmem:[#allocation2 + $0x28] sm:$0xf]
      %v527 = vld [vmem:[#allocation2 + $0x2c] sm:$0x1]
      %v528 = vld [vmem:[#allocation2 + $0x30] sm:$0xf]
      %v529 = vld [vmem:[#allocation2 + $0x34] sm:$0x1]
      %v530 = vld [vmem:[#allocation2 + $0x38] sm:$0xf]
      %v531 = vld [vmem:[#allocation2 + $0x3c] sm:$0x1]
      %vm532 = vsmask.f32 3328
      %vm533 = vsmask.f32 7440
      %vm534 = vmor %vm532, %vm533
      %v536 = vshrl.u32 %v516, 16
      %v538 = vrot.slane %v536, 4
      %v539 = vshll.u32 %v516, 16
      %v541 = vrot.slane %v539, 5
      %v542 = vor.u32 %v538, %v541
      %v543 = vrot.slane %v542, 4
      %v545 = vshll.u32 %v517, 16
      %v547 = vrot.slane %v545, 5
      %v548 = vsel %vm534, %v543, %v547
      %v550 = vshrl.u32 %v518, 16
      %v552 = vrot.slane %v550, 4
      %v553 = vshll.u32 %v518, 16
      %v555 = vrot.slane %v553, 5
      %v556 = vor.u32 %v552, %v555
      %v557 = vrot.slane %v556, 4
      %v559 = vshll.u32 %v519, 16
      %v561 = vrot.slane %v559, 5
      %v562 = vsel %vm534, %v557, %v561
      %v564 = vshrl.u32 %v520, 16
      %v566 = vrot.slane %v564, 4
      %v567 = vshll.u32 %v520, 16
      %v569 = vrot.slane %v567, 5
      %v570 = vor.u32 %v566, %v569
      %v571 = vrot.slane %v570, 4
      %v573 = vshll.u32 %v521, 16
      %v575 = vrot.slane %v573, 5
      %v576 = vsel %vm534, %v571, %v575
      %v578 = vshrl.u32 %v522, 16
      %v580 = vrot.slane %v578, 4
      %v581 = vshll.u32 %v522, 16
      %v583 = vrot.slane %v581, 5
      %v584 = vor.u32 %v580, %v583
      %v585 = vrot.slane %v584, 4
      %v587 = vshll.u32 %v523, 16
      %v589 = vrot.slane %v587, 5
      %v590 = vsel %vm534, %v585, %v589
      %v592 = vshrl.u32 %v524, 16
      %v594 = vrot.slane %v592, 4
      %v595 = vshll.u32 %v524, 16
      %v597 = vrot.slane %v595, 5
      %v598 = vor.u32 %v594, %v597
      %v599 = vrot.slane %v598, 4
      %v601 = vshll.u32 %v525, 16
      %v603 = vrot.slane %v601, 5
      %v604 = vsel %vm534, %v599, %v603
      %v606 = vshrl.u32 %v526, 16
      %v608 = vrot.slane %v606, 4
      %v609 = vshll.u32 %v526, 16
      %v611 = vrot.slane %v609, 5
      %v612 = vor.u32 %v608, %v611
      %v613 = vrot.slane %v612, 4
      %v615 = vshll.u32 %v527, 16
      %v617 = vrot.slane %v615, 5
      %v618 = vsel %vm534, %v613, %v617
      %v620 = vshrl.u32 %v528, 16
      %v622 = vrot.slane %v620, 4
      %v623 = vshll.u32 %v528, 16
      %v625 = vrot.slane %v623, 5
      %v626 = vor.u32 %v622, %v625
      %v627 = vrot.slane %v626, 4
      %v629 = vshll.u32 %v529, 16
      %v631 = vrot.slane %v629, 5
      %v632 = vsel %vm534, %v627, %v631
      %v634 = vshrl.u32 %v530, 16
      %v636 = vrot.slane %v634, 4
      %v637 = vshll.u32 %v530, 16
      %v639 = vrot.slane %v637, 5
      %v640 = vor.u32 %v636, %v639
      %v641 = vrot.slane %v640, 4
      %v643 = vshll.u32 %v531, 16
      %v645 = vrot.slane %v643, 5
      %v646 = vsel %vm534, %v641, %v645
      %v647 = vunpack.c.l.b16 %v548
      %v648 = vunpack.c.l.b16 %v562
      %v649 = vunpack.c.l.b16 %v576
      %v650 = vunpack.c.l.b16 %v590
      %v651 = vunpack.c.l.b16 %v604
      %v652 = vunpack.c.l.b16 %v618
      %v653 = vunpack.c.l.b16 %v632
      %v654 = vunpack.c.l.b16 %v646
      %v655 = vpack.c.b16 %v648, %v647
      %v656 = vpack.c.b16 %v650, %v649
      %v657 = vpack.c.b16 %v652, %v651
      %v658 = vpack.c.b16 %v654, %v653
      %659 = vrot.lane.b32.xlu0 %v655, 8
      %v660 = vpop.permute.xlu0 %659
      %661 = vrot.lane.b32.xlu0 %v656, 8
      %v662 = vpop.permute.xlu0 %661
      %663 = vrot.lane.b32.xlu0 %v657, 8
      %v664 = vpop.permute.xlu0 %663
      %665 = vrot.lane.b32.xlu0 %v658, 8
      %v666 = vpop.permute.xlu0 %665
      %vm671 = vcmask 130112
      %672 = vst.msk [vmem:[#allocation3] sm:$0xff] %vm671, %v660
      %673 = vst.msk [vmem:[#allocation3 + $0x8] sm:$0xff] %vm671, %v662
      %674 = vst.msk [vmem:[#allocation3 + $0x10] sm:$0xff] %vm671, %v664
      %675 = vst.msk [vmem:[#allocation3 + $0x18] sm:$0xff] %vm671, %v666
      %v676 = vld [vmem:[#allocation2] sm:$0xe]
      %v677 = vld [vmem:[#allocation2 + $0x4] sm:$0x1]
      %v678 = vld [vmem:[#allocation2 + $0x8] sm:$0xe]
      %v679 = vld [vmem:[#allocation2 + $0xc] sm:$0x1]
      %v680 = vld [vmem:[#allocation2 + $0x10] sm:$0xe]
      %v681 = vld [vmem:[#allocation2 + $0x14] sm:$0x1]
      %v682 = vld [vmem:[#allocation2 + $0x18] sm:$0xe]
      %v683 = vld [vmem:[#allocation2 + $0x1c] sm:$0x1]
      %v684 = vld [vmem:[#allocation2 + $0x20] sm:$0xe]
      %v685 = vld [vmem:[#allocation2 + $0x24] sm:$0x1]
      %v686 = vld [vmem:[#allocation2 + $0x28] sm:$0xe]
      %v687 = vld [vmem:[#allocation2 + $0x2c] sm:$0x1]
      %v688 = vld [vmem:[#allocation2 + $0x30] sm:$0xe]
      %v689 = vld [vmem:[#allocation2 + $0x34] sm:$0x1]
      %v690 = vld [vmem:[#allocation2 + $0x38] sm:$0xe]
      %v691 = vld [vmem:[#allocation2 + $0x3c] sm:$0x1]
      %vm708 = vcmask 1042432
      %vm709 = vcmask 1046532
      %vm710 = vmor %vm708, %vm709
      %v711 = vrot.slane %v676, 5
      %v712 = vrot.slane %v711, 4
      %v713 = vrot.slane %v677, 5
      %v714 = vsel %vm710, %v712, %v713
      %v715 = vrot.slane %v678, 5
      %v716 = vrot.slane %v715, 4
      %v717 = vrot.slane %v679, 5
      %v718 = vsel %vm710, %v716, %v717
      %v719 = vrot.slane %v680, 5
      %v720 = vrot.slane %v719, 4
      %v721 = vrot.slane %v681, 5
      %v722 = vsel %vm710, %v720, %v721
      %v723 = vrot.slane %v682, 5
      %v724 = vrot.slane %v723, 4
      %v725 = vrot.slane %v683, 5
      %v726 = vsel %vm710, %v724, %v725
      %v727 = vrot.slane %v684, 5
      %v728 = vrot.slane %v727, 4
      %v729 = vrot.slane %v685, 5
      %v730 = vsel %vm710, %v728, %v729
      %v731 = vrot.slane %v686, 5
      %v732 = vrot.slane %v731, 4
      %v733 = vrot.slane %v687, 5
      %v734 = vsel %vm710, %v732, %v733
      %v735 = vrot.slane %v688, 5
      %v736 = vrot.slane %v735, 4
      %v737 = vrot.slane %v689, 5
      %v738 = vsel %vm710, %v736, %v737
      %v739 = vrot.slane %v690, 5
      %v740 = vrot.slane %v739, 4
      %v741 = vrot.slane %v691, 5
      %v742 = vsel %vm710, %v740, %v741
      %v743 = vunpack.c.l.b16 %v714
      %v744 = vunpack.c.l.b16 %v718
      %v745 = vunpack.c.l.b16 %v722
      %v746 = vunpack.c.l.b16 %v726
      %v747 = vunpack.c.l.b16 %v730
      %v748 = vunpack.c.l.b16 %v734
      %v749 = vunpack.c.l.b16 %v738
      %v750 = vunpack.c.l.b16 %v742
      %v751 = vpack.c.b16 %v744, %v743
      %v752 = vpack.c.b16 %v746, %v745
      %v753 = vpack.c.b16 %v748, %v747
      %v754 = vpack.c.b16 %v750, %v749
      %755 = vrot.lane.b32.xlu0 %v751, 16
      %v756 = vpop.permute.xlu0 %755
      %757 = vrot.lane.b32.xlu0 %v752, 16
      %v758 = vpop.permute.xlu0 %757
      %759 = vrot.lane.b32.xlu0 %v753, 16
      %v760 = vpop.permute.xlu0 %759
      %761 = vrot.lane.b32.xlu0 %v754, 16
      %v762 = vpop.permute.xlu0 %761
      %vm767 = vcmask 195712
      %768 = vst.msk [vmem:[#allocation3] sm:$0xff] %vm767, %v756
      %769 = vst.msk [vmem:[#allocation3 + $0x8] sm:$0xff] %vm767, %v758
      %770 = vst.msk [vmem:[#allocation3 + $0x10] sm:$0xff] %vm767, %v760
      %771 = vst.msk [vmem:[#allocation3 + $0x18] sm:$0xff] %vm767, %v762
      %v772 = vld [vmem:[%s428] sm:$0xf]
      %v773 = vld [vmem:[%s428 + $0x8] sm:$0xf]
      %v774 = vld [vmem:[%s428 + $0x10] sm:$0xf]
      %v775 = vld [vmem:[%s428 + $0x18] sm:$0xf]
      %v776 = vld [vmem:[%s428 + $0x20] sm:$0xf]
      %v777 = vld [vmem:[%s428 + $0x28] sm:$0xf]
      %v778 = vld [vmem:[%s428 + $0x30] sm:$0xf]
      %v779 = vld [vmem:[%s428 + $0x38] sm:$0xf]
      %v788 = vunpack.c.l.b16 %v772
      %v789 = vunpack.c.l.b16 %v773
      %v790 = vunpack.c.l.b16 %v774
      %v791 = vunpack.c.l.b16 %v775
      %v792 = vunpack.c.l.b16 %v776
      %v793 = vunpack.c.l.b16 %v777
      %v794 = vunpack.c.l.b16 %v778
      %v795 = vunpack.c.l.b16 %v779
      %v796 = vpack.c.b16 %v789, %v788
      %v797 = vpack.c.b16 %v791, %v790
      %v798 = vpack.c.b16 %v793, %v792
      %v799 = vpack.c.b16 %v795, %v794
      %800 = vrot.lane.b32.xlu0 %v796, 24
      %v801 = vpop.permute.xlu0 %800
      %802 = vrot.lane.b32.xlu0 %v797, 24
      %v803 = vpop.permute.xlu0 %802
      %804 = vrot.lane.b32.xlu0 %v798, 24
      %v805 = vpop.permute.xlu0 %804
      %806 = vrot.lane.b32.xlu0 %v799, 24
      %v807 = vpop.permute.xlu0 %806
      %vm812 = vcmask 261312
      %813 = vst.msk [vmem:[#allocation3] sm:$0xff] %vm812, %v801
      %814 = vst.msk [vmem:[#allocation3 + $0x8] sm:$0xff] %vm812, %v803
      %815 = vst.msk [vmem:[#allocation3 + $0x10] sm:$0xff] %vm812, %v805
      %816 = vst.msk [vmem:[#allocation3 + $0x18] sm:$0xff] %vm812, %v807
      %v817 = vld [vmem:[%s428] sm:$0xf]
      %v818 = vld [vmem:[%s428 + $0x4] sm:$0x1]
      %v819 = vld [vmem:[%s428 + $0x8] sm:$0xf]
      %v820 = vld [vmem:[%s428 + $0xc] sm:$0x1]
      %v821 = vld [vmem:[%s428 + $0x10] sm:$0xf]
      %v822 = vld [vmem:[%s428 + $0x14] sm:$0x1]
      %v823 = vld [vmem:[%s428 + $0x18] sm:$0xf]
      %v824 = vld [vmem:[%s428 + $0x1c] sm:$0x1]
      %v825 = vld [vmem:[%s428 + $0x20] sm:$0xf]
      %v826 = vld [vmem:[%s428 + $0x24] sm:$0x1]
      %v827 = vld [vmem:[%s428 + $0x28] sm:$0xf]
      %v828 = vld [vmem:[%s428 + $0x2c] sm:$0x1]
      %v829 = vld [vmem:[%s428 + $0x30] sm:$0xf]
      %v830 = vld [vmem:[%s428 + $0x34] sm:$0x1]
      %v831 = vld [vmem:[%s428 + $0x38] sm:$0xf]
      %v832 = vld [vmem:[%s428 + $0x3c] sm:$0x1]
      %v834 = vshrl.u32 %v817, 16
      %v836 = vrot.slane %v834, 4
      %v837 = vshll.u32 %v817, 16
      %v839 = vrot.slane %v837, 5
      %v840 = vor.u32 %v836, %v839
      %v841 = vrot.slane %v840, 4
      %v843 = vshll.u32 %v818, 16
      %v845 = vrot.slane %v843, 5
      %v846 = vsel %vm534, %v841, %v845
      %v848 = vshrl.u32 %v819, 16
      %v850 = vrot.slane %v848, 4
      %v851 = vshll.u32 %v819, 16
      %v853 = vrot.slane %v851, 5
      %v854 = vor.u32 %v850, %v853
      %v855 = vrot.slane %v854, 4
      %v857 = vshll.u32 %v820, 16
      %v859 = vrot.slane %v857, 5
      %v860 = vsel %vm534, %v855, %v859
      %v862 = vshrl.u32 %v821, 16
      %v864 = vrot.slane %v862, 4
      %v865 = vshll.u32 %v821, 16
      %v867 = vrot.slane %v865, 5
      %v868 = vor.u32 %v864, %v867
      %v869 = vrot.slane %v868, 4
      %v871 = vshll.u32 %v822, 16
      %v873 = vrot.slane %v871, 5
      %v874 = vsel %vm534, %v869, %v873
      %v876 = vshrl.u32 %v823, 16
      %v878 = vrot.slane %v876, 4
      %v879 = vshll.u32 %v823, 16
      %v881 = vrot.slane %v879, 5
      %v882 = vor.u32 %v878, %v881
      %v883 = vrot.slane %v882, 4
      %v885 = vshll.u32 %v824, 16
      %v887 = vrot.slane %v885, 5
      %v888 = vsel %vm534, %v883, %v887
      %v890 = vshrl.u32 %v825, 16
      %v892 = vrot.slane %v890, 4
      %v893 = vshll.u32 %v825, 16
      %v895 = vrot.slane %v893, 5
      %v896 = vor.u32 %v892, %v895
      %v897 = vrot.slane %v896, 4
      %v899 = vshll.u32 %v826, 16
      %v901 = vrot.slane %v899, 5
      %v902 = vsel %vm534, %v897, %v901
      %v904 = vshrl.u32 %v827, 16
      %v906 = vrot.slane %v904, 4
      %v907 = vshll.u32 %v827, 16
      %v909 = vrot.slane %v907, 5
      %v910 = vor.u32 %v906, %v909
      %v911 = vrot.slane %v910, 4
      %v913 = vshll.u32 %v828, 16
      %v915 = vrot.slane %v913, 5
      %v916 = vsel %vm534, %v911, %v915
      %v918 = vshrl.u32 %v829, 16
      %v920 = vrot.slane %v918, 4
      %v921 = vshll.u32 %v829, 16
      %v923 = vrot.slane %v921, 5
      %v924 = vor.u32 %v920, %v923
      %v925 = vrot.slane %v924, 4
      %v927 = vshll.u32 %v830, 16
      %v929 = vrot.slane %v927, 5
      %v930 = vsel %vm534, %v925, %v929
      %v932 = vshrl.u32 %v831, 16
      %v934 = vrot.slane %v932, 4
      %v935 = vshll.u32 %v831, 16
      %v937 = vrot.slane %v935, 5
      %v938 = vor.u32 %v934, %v937
      %v939 = vrot.slane %v938, 4
      %v941 = vshll.u32 %v832, 16
      %v943 = vrot.slane %v941, 5
      %v944 = vsel %vm534, %v939, %v943
      %v945 = vunpack.c.l.b16 %v846
      %v946 = vunpack.c.l.b16 %v860
      %v947 = vunpack.c.l.b16 %v874
      %v948 = vunpack.c.l.b16 %v888
      %v949 = vunpack.c.l.b16 %v902
      %v950 = vunpack.c.l.b16 %v916
      %v951 = vunpack.c.l.b16 %v930
      %v952 = vunpack.c.l.b16 %v944
      %v953 = vpack.c.b16 %v946, %v945
      %v954 = vpack.c.b16 %v948, %v947
      %v955 = vpack.c.b16 %v950, %v949
      %v956 = vpack.c.b16 %v952, %v951
      %957 = vrot.lane.b32.xlu0 %v953, 32
      %v958 = vpop.permute.xlu0 %957
      %959 = vrot.lane.b32.xlu0 %v954, 32
      %v960 = vpop.permute.xlu0 %959
      %961 = vrot.lane.b32.xlu0 %v955, 32
      %v962 = vpop.permute.xlu0 %961
      %963 = vrot.lane.b32.xlu0 %v956, 32
      %v964 = vpop.permute.xlu0 %963
      %vm969 = vcmask 326912
      %970 = vst.msk [vmem:[#allocation3] sm:$0xff] %vm969, %v958
      %971 = vst.msk [vmem:[#allocation3 + $0x8] sm:$0xff] %vm969, %v960
      %972 = vst.msk [vmem:[#allocation3 + $0x10] sm:$0xff] %vm969, %v962
      %973 = vst.msk [vmem:[#allocation3 + $0x18] sm:$0xff] %vm969, %v964
      %v974 = vld [vmem:[%s428] sm:$0xe]
      %v975 = vld [vmem:[%s428 + $0x4] sm:$0x1]
      %v976 = vld [vmem:[%s428 + $0x8] sm:$0xe]
      %v977 = vld [vmem:[%s428 + $0xc] sm:$0x1]
      %v978 = vld [vmem:[%s428 + $0x10] sm:$0xe]
      %v979 = vld [vmem:[%s428 + $0x14] sm:$0x1]
      %v980 = vld [vmem:[%s428 + $0x18] sm:$0xe]
      %v981 = vld [vmem:[%s428 + $0x1c] sm:$0x1]
      %v982 = vld [vmem:[%s428 + $0x20] sm:$0xe]
      %v983 = vld [vmem:[%s428 + $0x24] sm:$0x1]
      %v984 = vld [vmem:[%s428 + $0x28] sm:$0xe]
      %v985 = vld [vmem:[%s428 + $0x2c] sm:$0x1]
      %v986 = vld [vmem:[%s428 + $0x30] sm:$0xe]
      %v987 = vld [vmem:[%s428 + $0x34] sm:$0x1]
      %v988 = vld [vmem:[%s428 + $0x38] sm:$0xe]
      %v989 = vld [vmem:[%s428 + $0x3c] sm:$0x1]
      %v1006 = vrot.slane %v974, 5
      %v1007 = vrot.slane %v1006, 4
      %v1008 = vrot.slane %v975, 5
      %v1009 = vsel %vm710, %v1007, %v1008
      %v1010 = vrot.slane %v976, 5
      %v1011 = vrot.slane %v1010, 4
      %v1012 = vrot.slane %v977, 5
      %v1013 = vsel %vm710, %v1011, %v1012
      %v1014 = vrot.slane %v978, 5
      %v1015 = vrot.slane %v1014, 4
      %v1016 = vrot.slane %v979, 5
      %v1017 = vsel %vm710, %v1015, %v1016
      %v1018 = vrot.slane %v980, 5
      %v1019 = vrot.slane %v1018, 4
      %v1020 = vrot.slane %v981, 5
      %v1021 = vsel %vm710, %v1019, %v1020
      %v1022 = vrot.slane %v982, 5
      %v1023 = vrot.slane %v1022, 4
      %v1024 = vrot.slane %v983, 5
      %v1025 = vsel %vm710, %v1023, %v1024
      %v1026 = vrot.slane %v984, 5
      %v1027 = vrot.slane %v1026, 4
      %v1028 = vrot.slane %v985, 5
      %v1029 = vsel %vm710, %v1027, %v1028
      %v1030 = vrot.slane %v986, 5
      %v1031 = vrot.slane %v1030, 4
      %v1032 = vrot.slane %v987, 5
      %v1033 = vsel %vm710, %v1031, %v1032
      %v1034 = vrot.slane %v988, 5
      %v1035 = vrot.slane %v1034, 4
      %v1036 = vrot.slane %v989, 5
      %v1037 = vsel %vm710, %v1035, %v1036
      %v1038 = vunpack.c.l.b16 %v1009
      %v1039 = vunpack.c.l.b16 %v1013
      %v1040 = vunpack.c.l.b16 %v1017
      %v1041 = vunpack.c.l.b16 %v1021
      %v1042 = vunpack.c.l.b16 %v1025
      %v1043 = vunpack.c.l.b16 %v1029
      %v1044 = vunpack.c.l.b16 %v1033
      %v1045 = vunpack.c.l.b16 %v1037
      %v1046 = vpack.c.b16 %v1039, %v1038
      %v1047 = vpack.c.b16 %v1041, %v1040
      %v1048 = vpack.c.b16 %v1043, %v1042
      %v1049 = vpack.c.b16 %v1045, %v1044
      %1050 = vrot.lane.b32.xlu0 %v1046, 40
      %v1051 = vpop.permute.xlu0 %1050
      %1052 = vrot.lane.b32.xlu0 %v1047, 40
      %v1053 = vpop.permute.xlu0 %1052
      %1054 = vrot.lane.b32.xlu0 %v1048, 40
      %v1055 = vpop.permute.xlu0 %1054
      %1056 = vrot.lane.b32.xlu0 %v1049, 40
      %v1057 = vpop.permute.xlu0 %1056
      %vm1062 = vcmask 392512
      %1063 = vst.msk [vmem:[#allocation3] sm:$0xff] %vm1062, %v1051
      %1064 = vst.msk [vmem:[#allocation3 + $0x8] sm:$0xff] %vm1062, %v1053
      %1065 = vst.msk [vmem:[#allocation3 + $0x10] sm:$0xff] %vm1062, %v1055
      %1066 = vst.msk [vmem:[#allocation3 + $0x18] sm:$0xff] %vm1062, %v1057
      %s1067 = scalar_lea.vmem [#allocation2], 16
      %v1068 = vld [vmem:[%s1067] sm:$0xf]
      %v1069 = vld [vmem:[%s1067 + $0x8] sm:$0xf]
      %v1070 = vld [vmem:[%s1067 + $0x10] sm:$0xf]
      %v1071 = vld [vmem:[%s1067 + $0x18] sm:$0xf]
      %v1072 = vld [vmem:[%s1067 + $0x20] sm:$0xf]
      %v1073 = vld [vmem:[%s1067 + $0x28] sm:$0xf]
      %v1074 = vld [vmem:[%s1067 + $0x30] sm:$0xf]
      %v1075 = vld [vmem:[%s1067 + $0x38] sm:$0xf]
      %v1084 = vunpack.c.l.b16 %v1068
      %v1085 = vunpack.c.l.b16 %v1069
      %v1086 = vunpack.c.l.b16 %v1070
      %v1087 = vunpack.c.l.b16 %v1071
      %v1088 = vunpack.c.l.b16 %v1072
      %v1089 = vunpack.c.l.b16 %v1073
      %v1090 = vunpack.c.l.b16 %v1074
      %v1091 = vunpack.c.l.b16 %v1075
      %v1092 = vpack.c.b16 %v1085, %v1084
      %v1093 = vpack.c.b16 %v1087, %v1086
      %v1094 = vpack.c.b16 %v1089, %v1088
      %v1095 = vpack.c.b16 %v1091, %v1090
      %1096 = vrot.lane.b32.xlu0 %v1092, 48
      %v1097 = vpop.permute.xlu0 %1096
      %1098 = vrot.lane.b32.xlu0 %v1093, 48
      %v1099 = vpop.permute.xlu0 %1098
      %1100 = vrot.lane.b32.xlu0 %v1094, 48
      %v1101 = vpop.permute.xlu0 %1100
      %1102 = vrot.lane.b32.xlu0 %v1095, 48
      %v1103 = vpop.permute.xlu0 %1102
      %vm1108 = vcmask 458112
      %1109 = vst.msk [vmem:[#allocation3] sm:$0xff] %vm1108, %v1097
      %1110 = vst.msk [vmem:[#allocation3 + $0x8] sm:$0xff] %vm1108, %v1099
      %1111 = vst.msk [vmem:[#allocation3 + $0x10] sm:$0xff] %vm1108, %v1101
      %1112 = vst.msk [vmem:[#allocation3 + $0x18] sm:$0xff] %vm1108, %v1103
      %v1113 = vld [vmem:[%s1067] sm:$0xf]
      %v1114 = vld [vmem:[%s1067 + $0x4] sm:$0x1]
      %v1115 = vld [vmem:[%s1067 + $0x8] sm:$0xf]
      %v1116 = vld [vmem:[%s1067 + $0xc] sm:$0x1]
      %v1117 = vld [vmem:[%s1067 + $0x10] sm:$0xf]
      %v1118 = vld [vmem:[%s1067 + $0x14] sm:$0x1]
      %v1119 = vld [vmem:[%s1067 + $0x18] sm:$0xf]
      %v1120 = vld [vmem:[%s1067 + $0x1c] sm:$0x1]
      %v1121 = vld [vmem:[%s1067 + $0x20] sm:$0xf]
      %v1122 = vld [vmem:[%s1067 + $0x24] sm:$0x1]
      %v1123 = vld [vmem:[%s1067 + $0x28] sm:$0xf]
      %v1124 = vld [vmem:[%s1067 + $0x2c] sm:$0x1]
      %v1125 = vld [vmem:[%s1067 + $0x30] sm:$0xf]
      %v1126 = vld [vmem:[%s1067 + $0x34] sm:$0x1]
      %v1127 = vld [vmem:[%s1067 + $0x38] sm:$0xf]
      %v1128 = vld [vmem:[%s1067 + $0x3c] sm:$0x1]
      %v1130 = vshrl.u32 %v1113, 16
      %v1132 = vrot.slane %v1130, 4
      %v1133 = vshll.u32 %v1113, 16
      %v1135 = vrot.slane %v1133, 5
      %v1136 = vor.u32 %v1132, %v1135
      %v1137 = vrot.slane %v1136, 4
      %v1139 = vshll.u32 %v1114, 16
      %v1141 = vrot.slane %v1139, 5
      %v1142 = vsel %vm534, %v1137, %v1141
      %v1144 = vshrl.u32 %v1115, 16
      %v1146 = vrot.slane %v1144, 4
      %v1147 = vshll.u32 %v1115, 16
      %v1149 = vrot.slane %v1147, 5
      %v1150 = vor.u32 %v1146, %v1149
      %v1151 = vrot.slane %v1150, 4
      %v1153 = vshll.u32 %v1116, 16
      %v1155 = vrot.slane %v1153, 5
      %v1156 = vsel %vm534, %v1151, %v1155
      %v1158 = vshrl.u32 %v1117, 16
      %v1160 = vrot.slane %v1158, 4
      %v1161 = vshll.u32 %v1117, 16
      %v1163 = vrot.slane %v1161, 5
      %v1164 = vor.u32 %v1160, %v1163
      %v1165 = vrot.slane %v1164, 4
      %v1167 = vshll.u32 %v1118, 16
      %v1169 = vrot.slane %v1167, 5
      %v1170 = vsel %vm534, %v1165, %v1169
      %v1172 = vshrl.u32 %v1119, 16
      %v1174 = vrot.slane %v1172, 4
      %v1175 = vshll.u32 %v1119, 16
      %v1177 = vrot.slane %v1175, 5
      %v1178 = vor.u32 %v1174, %v1177
      %v1179 = vrot.slane %v1178, 4
      %v1181 = vshll.u32 %v1120, 16
      %v1183 = vrot.slane %v1181, 5
      %v1184 = vsel %vm534, %v1179, %v1183
      %v1186 = vshrl.u32 %v1121, 16
      %v1188 = vrot.slane %v1186, 4
      %v1189 = vshll.u32 %v1121, 16
      %v1191 = vrot.slane %v1189, 5
      %v1192 = vor.u32 %v1188, %v1191
      %v1193 = vrot.slane %v1192, 4
      %v1195 = vshll.u32 %v1122, 16
      %v1197 = vrot.slane %v1195, 5
      %v1198 = vsel %vm534, %v1193, %v1197
      %v1200 = vshrl.u32 %v1123, 16
      %v1202 = vrot.slane %v1200, 4
      %v1203 = vshll.u32 %v1123, 16
      %v1205 = vrot.slane %v1203, 5
      %v1206 = vor.u32 %v1202, %v1205
      %v1207 = vrot.slane %v1206, 4
      %v1209 = vshll.u32 %v1124, 16
      %v1211 = vrot.slane %v1209, 5
      %v1212 = vsel %vm534, %v1207, %v1211
      %v1214 = vshrl.u32 %v1125, 16
      %v1216 = vrot.slane %v1214, 4
      %v1217 = vshll.u32 %v1125, 16
      %v1219 = vrot.slane %v1217, 5
      %v1220 = vor.u32 %v1216, %v1219
      %v1221 = vrot.slane %v1220, 4
      %v1223 = vshll.u32 %v1126, 16
      %v1225 = vrot.slane %v1223, 5
      %v1226 = vsel %vm534, %v1221, %v1225
      %v1228 = vshrl.u32 %v1127, 16
      %v1230 = vrot.slane %v1228, 4
      %v1231 = vshll.u32 %v1127, 16
      %v1233 = vrot.slane %v1231, 5
      %v1234 = vor.u32 %v1230, %v1233
      %v1235 = vrot.slane %v1234, 4
      %v1237 = vshll.u32 %v1128, 16
      %v1239 = vrot.slane %v1237, 5
      %v1240 = vsel %vm534, %v1235, %v1239
      %v1241 = vunpack.c.l.b16 %v1142
      %v1242 = vunpack.c.l.b16 %v1156
      %v1243 = vunpack.c.l.b16 %v1170
      %v1244 = vunpack.c.l.b16 %v1184
      %v1245 = vunpack.c.l.b16 %v1198
      %v1246 = vunpack.c.l.b16 %v1212
      %v1247 = vunpack.c.l.b16 %v1226
      %v1248 = vunpack.c.l.b16 %v1240
      %v1249 = vpack.c.b16 %v1242, %v1241
      %v1250 = vpack.c.b16 %v1244, %v1243
      %v1251 = vpack.c.b16 %v1246, %v1245
      %v1252 = vpack.c.b16 %v1248, %v1247
      %1253 = vrot.lane.b32.xlu0 %v1249, 56
      %v1254 = vpop.permute.xlu0 %1253
      %1255 = vrot.lane.b32.xlu0 %v1250, 56
      %v1256 = vpop.permute.xlu0 %1255
      %1257 = vrot.lane.b32.xlu0 %v1251, 56
      %v1258 = vpop.permute.xlu0 %1257
      %1259 = vrot.lane.b32.xlu0 %v1252, 56
      %v1260 = vpop.permute.xlu0 %1259
      %vm1265 = vcmask 523712
      %1266 = vst.msk [vmem:[#allocation3] sm:$0xff] %vm1265, %v1254
      %1267 = vst.msk [vmem:[#allocation3 + $0x8] sm:$0xff] %vm1265, %v1256
      %1268 = vst.msk [vmem:[#allocation3 + $0x10] sm:$0xff] %vm1265, %v1258
      %1269 = vst.msk [vmem:[#allocation3 + $0x18] sm:$0xff] %vm1265, %v1260
      %v1270 = vld [vmem:[%s1067] sm:$0xe]
      %v1271 = vld [vmem:[%s1067 + $0x4] sm:$0x1]
      %v1272 = vld [vmem:[%s1067 + $0x8] sm:$0xe]
      %v1273 = vld [vmem:[%s1067 + $0xc] sm:$0x1]
      %v1274 = vld [vmem:[%s1067 + $0x10] sm:$0xe]
      %v1275 = vld [vmem:[%s1067 + $0x14] sm:$0x1]
      %v1276 = vld [vmem:[%s1067 + $0x18] sm:$0xe]
      %v1277 = vld [vmem:[%s1067 + $0x1c] sm:$0x1]
      %v1278 = vld [vmem:[%s1067 + $0x20] sm:$0xe]
      %v1279 = vld [vmem:[%s1067 + $0x24] sm:$0x1]
      %v1280 = vld [vmem:[%s1067 + $0x28] sm:$0xe]
      %v1281 = vld [vmem:[%s1067 + $0x2c] sm:$0x1]
      %v1282 = vld [vmem:[%s1067 + $0x30] sm:$0xe]
      %v1283 = vld [vmem:[%s1067 + $0x34] sm:$0x1]
      %v1284 = vld [vmem:[%s1067 + $0x38] sm:$0xe]
      %v1285 = vld [vmem:[%s1067 + $0x3c] sm:$0x1]
      %v1302 = vrot.slane %v1270, 5
      %v1303 = vrot.slane %v1302, 4
      %v1304 = vrot.slane %v1271, 5
      %v1305 = vsel %vm710, %v1303, %v1304
      %v1306 = vrot.slane %v1272, 5
      %v1307 = vrot.slane %v1306, 4
      %v1308 = vrot.slane %v1273, 5
      %v1309 = vsel %vm710, %v1307, %v1308
      %v1310 = vrot.slane %v1274, 5
      %v1311 = vrot.slane %v1310, 4
      %v1312 = vrot.slane %v1275, 5
      %v1313 = vsel %vm710, %v1311, %v1312
      %v1314 = vrot.slane %v1276, 5
      %v1315 = vrot.slane %v1314, 4
      %v1316 = vrot.slane %v1277, 5
      %v1317 = vsel %vm710, %v1315, %v1316
      %v1318 = vrot.slane %v1278, 5
      %v1319 = vrot.slane %v1318, 4
      %v1320 = vrot.slane %v1279, 5
      %v1321 = vsel %vm710, %v1319, %v1320
      %v1322 = vrot.slane %v1280, 5
      %v1323 = vrot.slane %v1322, 4
      %v1324 = vrot.slane %v1281, 5
      %v1325 = vsel %vm710, %v1323, %v1324
      %v1326 = vrot.slane %v1282, 5
      %v1327 = vrot.slane %v1326, 4
      %v1328 = vrot.slane %v1283, 5
      %v1329 = vsel %vm710, %v1327, %v1328
      %v1330 = vrot.slane %v1284, 5
      %v1331 = vrot.slane %v1330, 4
      %v1332 = vrot.slane %v1285, 5
      %v1333 = vsel %vm710, %v1331, %v1332
      %v1334 = vunpack.c.l.b16 %v1305
      %v1335 = vunpack.c.l.b16 %v1309
      %v1336 = vunpack.c.l.b16 %v1313
      %v1337 = vunpack.c.l.b16 %v1317
      %v1338 = vunpack.c.l.b16 %v1321
      %v1339 = vunpack.c.l.b16 %v1325
      %v1340 = vunpack.c.l.b16 %v1329
      %v1341 = vunpack.c.l.b16 %v1333
      %v1342 = vpack.c.b16 %v1335, %v1334
      %v1343 = vpack.c.b16 %v1337, %v1336
      %v1344 = vpack.c.b16 %v1339, %v1338
      %v1345 = vpack.c.b16 %v1341, %v1340
      %1346 = vrot.lane.b32.xlu0 %v1342, 64
      %v1347 = vpop.permute.xlu0 %1346
      %1348 = vrot.lane.b32.xlu0 %v1343, 64
      %v1349 = vpop.permute.xlu0 %1348
      %1350 = vrot.lane.b32.xlu0 %v1344, 64
      %v1351 = vpop.permute.xlu0 %1350
      %1352 = vrot.lane.b32.xlu0 %v1345, 64
      %v1353 = vpop.permute.xlu0 %1352
      %vm1358 = vcmask 589312
      %1359 = vst.msk [vmem:[#allocation3] sm:$0xff] %vm1358, %v1347
      %1360 = vst.msk [vmem:[#allocation3 + $0x8] sm:$0xff] %vm1358, %v1349
      %1361 = vst.msk [vmem:[#allocation3 + $0x10] sm:$0xff] %vm1358, %v1351
      %1362 = vst.msk [vmem:[#allocation3 + $0x18] sm:$0xff] %vm1358, %v1353
      %v1363 = vld [vmem:[#allocation3] sm:$0xff]
      %v1364 = vld [vmem:[#allocation3 + $0x8] sm:$0xff]
      %v1365 = vld [vmem:[#allocation3 + $0x10] sm:$0xff]
      %v1366 = vld [vmem:[#allocation3 + $0x18] sm:$0xff]
      %v1367 = vld [vmem:[%s2] sm:$0xf]
      %v1368 = vld [vmem:[%s2 + $0x4] sm:$0xf]
      %v1369 = vld [vmem:[%s2 + $0x8] sm:$0xf]
      %v1370 = vld [vmem:[%s2 + $0xc] sm:$0xf]
      %v1371 = vld [vmem:[%s2 + $0x10] sm:$0xf]
      %v1372 = vld [vmem:[%s2 + $0x14] sm:$0xf]
      %v1373 = vld [vmem:[%s2 + $0x18] sm:$0xf]
      %v1374 = vld [vmem:[%s2 + $0x1c] sm:$0xf]
      %v1375 = vld [vmem:[%s2 + $0x20] sm:$0xf]
      %v1385 = vunpack.c.l.b16 %v1367
      %v1386 = vunpack.c.l.b16 %v1368
      %v1387 = vunpack.c.l.b16 %v1369
      %v1388 = vunpack.c.l.b16 %v1370
      %v1389 = vunpack.c.l.b16 %v1371
      %v1390 = vunpack.c.l.b16 %v1372
      %v1391 = vunpack.c.l.b16 %v1373
      %v1392 = vunpack.c.l.b16 %v1374
      %v1393 = vunpack.c.l.b16 %v1375
      %v1394 = vpack.c.b16 %v1386, %v1385
      %v1395 = vpack.c.b16 %v1388, %v1387
      %v1396 = vpack.c.b16 %v1390, %v1389
      %v1397 = vpack.c.b16 %v1392, %v1391
      %v1398 = vpack.c.b16 %v1393, %v1393
      %vm1403 = vcmask 588800
      %v1405 = vsel %vm1403, %v1363, 0
      %v1408 = vsel %vm1403, %v1364, 0
      %v1411 = vsel %vm1403, %v1365, 0
      %v1414 = vsel %vm1403, %v1366, 0
      %vm1416 = vcmask 1043456
      %v1418 = vsel %vm1416, %v1398, 0
      %1420 = vmatprep.subr.bf16.mxu0 0
      %1421 = vmatpush1.bf16.msra.mxu0 %v1394
      %1422 = vmatprep.subr.bf16.mxu0 0
      %1423 = vmatpush1.bf16.msra.mxu0 %v1395
      %1424 = vmatprep.subr.bf16.mxu0 0
      %1425 = vmatpush1.bf16.msra.mxu0 %v1396
      %1426 = vmatprep.subr.bf16.mxu0 0
      %1427 = vmatpush1.bf16.msra.mxu0 %v1397
      %1428 = vmatprep.subr.bf16.mxu0 0
      %1429 = vmatpush1.bf16.msra.mxu0 %v1418
      %1430 = vmatprep.subr.bf16.mxu0 0
      %1431 = vmatpush1.bf16.msra.mxu0 0
      %1432 = vmatprep.subr.bf16.mxu0 0
      %1433 = vmatpush1.bf16.msra.mxu0 0
      %1434 = vmatprep.subr.bf16.mxu0 0
      %1435 = vmatpush1.bf16.msra.mxu0 0
      %1436 = vmatprep.subr.bf16.mxu0 0
      %1437 = vmatpush1.bf16.msra.mxu0 0
      %1438 = vmatprep.subr.bf16.mxu0 0
      %1439 = vmatpush1.bf16.msra.mxu0 0
      %1440 = vmatprep.subr.bf16.mxu0 0
      %1441 = vmatpush1.bf16.msra.mxu0 0
      %1442 = vmatprep.subr.bf16.mxu0 0
      %1443 = vmatpush1.bf16.msra.mxu0 0
      %1444 = vmatprep.subr.bf16.mxu0 0
      %1445 = vmatpush1.bf16.msra.mxu0 0
      %1446 = vmatprep.subr.bf16.mxu0 0
      %1447 = vmatpush1.bf16.msra.mxu0 0
      %1448 = vmatprep.subr.bf16.mxu0 0
      %1449 = vmatpush1.bf16.msra.mxu0 0
      %1450 = vmatprep.subr.bf16.mxu0 0
      %1451 = vmatpush1.bf16.msra.mxu0 0
      %1452 = vmatprep.mubr.bf16.mxu0 0
      %1453 = vmatmul.mubr.bf16.gmra.mrb[0].mxu0 %v1405
      %v1454 = vpop.f32.mrb[0].mxu0
      %v1455 = vadd.f32 0.0, %v1454
      %v1456 = vpop.f32.mrb[0].mxu0
      %v1457 = vpop.f32.mrb[0].mxu0
      %v1458 = vadd.f32 0.0, %v1457
      %v1459 = vpop.f32.mrb[0].mxu0
      %1460 = vmatprep.mubr.bf16.mxu0 0
      %1461 = vmatmul.mubr.bf16.gmra.mrb[0].mxu0 %v1408
      %v1462 = vpop.f32.mrb[0].mxu0
      %v1463 = vadd.f32 0.0, %v1462
      %v1464 = vpop.f32.mrb[0].mxu0
      %v1465 = vpop.f32.mrb[0].mxu0
      %v1466 = vadd.f32 0.0, %v1465
      %v1467 = vpop.f32.mrb[0].mxu0
      %1468 = vmatprep.mubr.bf16.mxu0 0
      %1469 = vmatmul.mubr.bf16.gmra.mrb[0].mxu0 %v1411
      %v1470 = vpop.f32.mrb[0].mxu0
      %v1471 = vadd.f32 0.0, %v1470
      %v1472 = vpop.f32.mrb[0].mxu0
      %v1473 = vpop.f32.mrb[0].mxu0
      %v1474 = vadd.f32 0.0, %v1473
      %v1475 = vpop.f32.mrb[0].mxu0
      %1476 = vmatprep.mubr.bf16.mxu0 0
      %1477 = vmatmul.mubr.bf16.gmra.mrb[0].mxu0 %v1414
      %v1478 = vpop.f32.mrb[0].mxu0
      %v1479 = vadd.f32 0.0, %v1478
      %v1480 = vpop.f32.mrb[0].mxu0
      %v1481 = vpop.f32.mrb[0].mxu0
      %v1482 = vadd.f32 0.0, %v1481
      %v1483 = vpop.f32.mrb[0].mxu0
      %1484 = vdwg.mxu0
      %1485 = vst.msk [vmem:[%s204] sm:$0xff] %vm511, %v1455
      %1486 = vst.msk [vmem:[%s204 + $0x8] sm:$0xff] %vm511, %v1458
      %1487 = vst.msk [vmem:[%s204 + $0x10] sm:$0xff] %vm511, %v1463
      %1488 = vst.msk [vmem:[%s204 + $0x18] sm:$0xff] %vm511, %v1466
      %1489 = vst.msk [vmem:[%s204 + $0x20] sm:$0xff] %vm511, %v1471
      %1490 = vst.msk [vmem:[%s204 + $0x28] sm:$0xff] %vm511, %v1474
      %1491 = vst.msk [vmem:[%s204 + $0x30] sm:$0xff] %vm511, %v1479
      %1492 = vst.msk [vmem:[%s204 + $0x38] sm:$0xff] %vm511, %v1482
      %v1493 = vsel %vm511, %v1455, 0.0
      %v1494 = vsel %vm511, %v1458, 0.0
      %v1495 = vadd.f32 %v1493, %v1494
      %v1496 = vsel %vm511, %v1463, 0.0
      %v1497 = vadd.f32 %v1495, %v1496
      %v1498 = vsel %vm511, %v1466, 0.0
      %v1499 = vadd.f32 %v1497, %v1498
      %v1500 = vsel %vm511, %v1471, 0.0
      %v1501 = vadd.f32 %v1499, %v1500
      %v1502 = vsel %vm511, %v1474, 0.0
      %v1503 = vadd.f32 %v1501, %v1502
      %v1504 = vsel %vm511, %v1479, 0.0
      %v1505 = vadd.f32 %v1503, %v1504
      %v1506 = vsel %vm511, %v1482, 0.0
      %v1507 = vadd.f32 %v1505, %v1506
      %v1508 = vrot.slane %v1507, 4
      %v1509 = vadd.f32 %v1507, %v1508
      %v1510 = vrot.slane %v1509, 2
      %v1511 = vadd.f32 %v1509, %v1510
      %v1512 = vrot.slane %v1511, 1
      %v1513 = vadd.f32 %v1511, %v1512
      %1514 = vst.msk [vmem:[%s208] sm:$0x1] %vm278, %v1513
      %v1515 = vmul.f32 %v1455, %v1455
      %v1516 = vmul.f32 %v1458, %v1458
      %v1517 = vmul.f32 %v1463, %v1463
      %v1518 = vmul.f32 %v1466, %v1466
      %v1519 = vmul.f32 %v1471, %v1471
      %v1520 = vmul.f32 %v1474, %v1474
      %v1521 = vmul.f32 %v1479, %v1479
      %v1522 = vmul.f32 %v1482, %v1482
      %v1523 = vsel %vm511, %v1515, 0.0
      %v1524 = vsel %vm511, %v1516, 0.0
      %v1525 = vadd.f32 %v1523, %v1524
      %v1526 = vsel %vm511, %v1517, 0.0
      %v1527 = vadd.f32 %v1525, %v1526
      %v1528 = vsel %vm511, %v1518, 0.0
      %v1529 = vadd.f32 %v1527, %v1528
      %v1530 = vsel %vm511, %v1519, 0.0
      %v1531 = vadd.f32 %v1529, %v1530
      %v1532 = vsel %vm511, %v1520, 0.0
      %v1533 = vadd.f32 %v1531, %v1532
      %v1534 = vsel %vm511, %v1521, 0.0
      %v1535 = vadd.f32 %v1533, %v1534
      %v1536 = vsel %vm511, %v1522, 0.0
      %v1537 = vadd.f32 %v1535, %v1536
      %v1538 = vrot.slane %v1537, 4
      %v1539 = vadd.f32 %v1537, %v1538
      %v1540 = vrot.slane %v1539, 2
      %v1541 = vadd.f32 %v1539, %v1540
      %v1542 = vrot.slane %v1541, 1
      %v1543 = vadd.f32 %v1541, %v1542
      %1544 = vst.msk [vmem:[%s208 + $0x1] sm:$0x1] %vm278, %v1543
      %p1545 = scmp.lt.s32.totalorder %s16, 1
      %s1546 = scalar_select %p1545, %s16, 1
      %s1547 = smul.addr %s1546, 8
      %s1548 = smul.addr %s1547, 8
      %s1549 = scalar_lea.vmem %s3, %s1548
      %p1550 = scmp.lt.s32.totalorder %s16, 1
      %s1551 = scalar_select %p1550, %s16, 1
      %s1552 = smul.addr %s1551, 2
      %s1553 = scalar_lea.vmem %s4, %s1552
      // Predicated region
      $region33: #{down_forward.4} parent=31 // pred_check
        %p1554 = pneg %p102
      $region34: #{down_forward.4} parent=31 // pred_check_branch
        %1556 = sbr.rel (%p1554) target = $region36
      $region35: #{down_forward.4} parent=31 // pred_region
        _
      $region36: #{down_forward.4} parent=31 // pred_fallthru
        _
      // Predicated region
      $region37: #{down_forward.4} parent=31 // pred_check
        %p1557 = pneg %p128
      $region38: #{down_forward.4} parent=31 // pred_check_branch
        %1559 = sbr.rel (%p1557) target = $region40
      $region39: #{down_forward.4} parent=31 // pred_region
        _
      $region40: #{down_forward.4} parent=31 // pred_fallthru
        _
    $region32: #{down_forward.4} parent=5 // pred_fallthru
      _
    %p1560 = scmp.le.s32.totalorder 2, %s11
    // Predicated region
    $region41: #{down_forward.4} parent=5 // pred_check
      %p1561 = pneg %p1560
    $region42: #{down_forward.4} parent=5 // pred_check_branch
      %1563 = sbr.rel (%p1561) target = $region44
    $region43: #{down_forward.4} parent=5 // pred_region
      %s1564 = ssub.s32 %s11, 2
      // Predicated region
      $region45: #{down_forward.4} parent=43 // pred_check
        %p1565 = pneg %p108
      $region46: #{down_forward.4} parent=43 // pred_check_branch
        %1567 = sbr.rel (%p1565) target = $region48
      $region47: #{down_forward.4} parent=43 // pred_region
        %p1568 = scmp.lt.s32.totalorder %s17, 1
        %s1569 = scalar_select %p1568, %s17, 1
        %s1570 = smul.addr %s1569, 8
        %s1571 = smul.addr %s1570, 8
        %s1572 = scalar_lea.vmem %s3, %s1571
      $region48: #{down_forward.4} parent=43 // pred_fallthru
        _
      // Predicated region
      $region49: #{down_forward.4} parent=43 // pred_check
        %p1573 = pneg %p134
      $region50: #{down_forward.4} parent=43 // pred_check_branch
        %1575 = sbr.rel (%p1573) target = $region52
      $region51: #{down_forward.4} parent=43 // pred_region
        %p1576 = scmp.lt.s32.totalorder %s17, 1
        %s1577 = scalar_select %p1576, %s17, 1
        %s1578 = smul.addr %s1577, 2
        %s1579 = scalar_lea.vmem %s4, %s1578
      $region52: #{down_forward.4} parent=43 // pred_fallthru
        _
    $region44: #{down_forward.4} parent=5 // pred_fallthru
      _
  $region6: #{down_forward.4} parent=0 // loop_footer
    %s15 = sadd.s32 1, %s11
  $region7: #{down_forward.4} parent=0 // loop_footer_branch
    %10 = sbr.rel target = $region3
  $region8: #{down_forward.4} parent=0 // loop_exit
    _

// kernel: down_forward.3
$region0: #{down_forward.3}
  #allocation0 [shape = 'u32[]', space=smem, size = 0x4, offset = 0x4, fixed_abs, tag = 'smem constant byte address 0x4 - core index']
  #allocation1 [shape = 'u32[144,128]{1,0:T(1,128)}', space=vmem, size = 0x12000, scoped, tag = 'internal scratch']
  #allocation2 [shape = 'bf16[10,10,4]{2,1,0:T(8,128)(2,1)}', space=vmem, size = 0xa000, scoped, tag = 'scratch operand']
  #allocation3 [shape = 'bf16[64,36]{1,0:T(16,128)(2,1)}', space=vmem, size = 0x4000, scoped, tag = 'scratch operand']
  %s0 = inlined_call_operand.vmem [shape: bf16[2,8,8,16], index: 0, kind: input, shape index: {}]
  %s1 = inlined_call_operand.vmem [shape: bf16[36,8], index: 1, kind: input, shape index: {}]
  %s2 = inlined_call_operand.vmem [shape: f32[2,64,8], index: 2, kind: output, shape index: {0}]
  %s3 = inlined_call_operand.vmem [shape: f32[2,2,8], index: 3, kind: output, shape index: {1}]
  %4 = xla_tuple %s2, %s3
  %s5 = sld [smem:[#allocation0]]
  $region49: #{down_forward.3} parent=0
    _
  %s7 = ssub.s32 1, %s5
  %s8 = scalar_select 0, %s7, %s5
  loop: start=0, step=1, limit=4
  $region2: #{down_forward.3} parent=0 // loop_pre_header
    _
  $region3: #{down_forward.3} parent=0 // loop_header
    %s10 = sphi 0, %s14
    %p11 = scmp.ge.s32.totalorder %s10, 4
    %s20 = sphi 0, %s22
    %s23 = sphi 0, %s20
    %s24 = sphi 0, %s23
    %s40 = sphi 0, %s24
    %s44 = sphi 0, %s44
    %s46 = sphi 0, %s44
    %s47 = sphi 0, %s46
    %s61 = sphi 0, %s47
    %s67 = sphi 0, %s69
    %s70 = sphi 0, %s67
    %s71 = sphi 0, %s70
    %s87 = sphi 0, %s71
    %s93 = sphi 0, %s95
    %s96 = sphi 0, %s93
    %s97 = sphi 0, %s96
    %s113 = sphi 0, %s97
  $region4: #{down_forward.3} parent=0 // loop_header_branch
    %13 = sbr.rel (%p11) target = $region8
  $region5: #{down_forward.3} parent=0 // loop_body
    %s15 = ssub.s32 %s10, 1
    %s16 = ssub.s32 %s10, 2
    %s17 = sadd.s32 %s10, 1
    %s18 = ssub.s32 %s10, %s17
    %p19 = scmp.eq.s32.totalorder %s18, 0
    %s21 = sadd.s32 %s20, 1
    %s22 = scalar_select %p19, %s20, %s21
    %p25 = pneg %p19
    %p26 = scmp.eq.s32.totalorder %s10, 1
    %p27 = por %p25, %p26
    %p28 = scmp.ne.s32.totalorder %s20, %s23
    %p29 = scmp.eq.s32.totalorder %s10, 0
    %p30 = por %p28, %p29
    %p31 = scmp.ne.s32.totalorder %s20, %s23
    %p32 = scmp.eq.s32.totalorder %s15, 1
    %p33 = por %p31, %p32
    %p34 = scmp.ne.s32.totalorder %s23, %s24
    %p35 = scmp.eq.s32.totalorder %s15, 0
    %p36 = por %p34, %p35
    %p37 = scmp.ne.s32.totalorder %s23, %s24
    %p38 = scmp.eq.s32.totalorder %s16, 1
    %p39 = por %p37, %p38
    %p41 = scmp.ne.s32.totalorder %s24, %s40
    %p42 = scmp.eq.s32.totalorder %s16, 0
    %p43 = por %p41, %p42
    %s45 = sadd.s32 %s44, 1
    %p48 = scmp.eq.s32.totalorder %s10, 1
    %p49 = scmp.ne.s32.totalorder %s44, %s46
    %p50 = scmp.eq.s32.totalorder %s10, 0
    %p51 = por %p49, %p50
    %p52 = scmp.ne.s32.totalorder %s44, %s46
    %p53 = scmp.eq.s32.totalorder %s15, 1
    %p54 = por %p52, %p53
    %p55 = scmp.ne.s32.totalorder %s46, %s47
    %p56 = scmp.eq.s32.totalorder %s15, 0
    %p57 = por %p55, %p56
    %p58 = scmp.ne.s32.totalorder %s46, %s47
    %p59 = scmp.eq.s32.totalorder %s16, 1
    %p60 = por %p58, %p59
    %p62 = scmp.ne.s32.totalorder %s47, %s61
    %p63 = scmp.eq.s32.totalorder %s16, 0
    %p64 = por %p62, %p63
    %s65 = ssub.s32 %s10, %s17
    %p66 = scmp.eq.s32.totalorder %s65, 0
    %s68 = sadd.s32 %s67, 1
    %s69 = scalar_select %p66, %s67, %s68
    %p72 = pneg %p66
    %p73 = scmp.eq.s32.totalorder %s10, 1
    %p74 = por %p72, %p73
    %p75 = scmp.ne.s32.totalorder %s67, %s70
    %p76 = scmp.eq.s32.totalorder %s10, 0
    %p77 = por %p75, %p76
    %p78 = scmp.ne.s32.totalorder %s67, %s70
    %p79 = scmp.eq.s32.totalorder %s15, 1
    %p80 = por %p78, %p79
    %p81 = scmp.ne.s32.totalorder %s70, %s71
    %p82 = scmp.eq.s32.totalorder %s15, 0
    %p83 = por %p81, %p82
    %p84 = scmp.ne.s32.totalorder %s70, %s71
    %p85 = scmp.eq.s32.totalorder %s16, 1
    %p86 = por %p84, %p85
    %p88 = scmp.ne.s32.totalorder %s71, %s87
    %p89 = scmp.eq.s32.totalorder %s16, 0
    %p90 = por %p88, %p89
    %s91 = ssub.s32 %s10, %s17
    %p92 = scmp.eq.s32.totalorder %s91, 0
    %s94 = sadd.s32 %s93, 1
    %s95 = scalar_select %p92, %s93, %s94
    %p98 = pneg %p92
    %p99 = scmp.eq.s32.totalorder %s10, 1
    %p100 = por %p98, %p99
    %p101 = scmp.ne.s32.totalorder %s93, %s96
    %p102 = scmp.eq.s32.totalorder %s10, 0
    %p103 = por %p101, %p102
    %p104 = scmp.ne.s32.totalorder %s93, %s96
    %p105 = scmp.eq.s32.totalorder %s15, 1
    %p106 = por %p104, %p105
    %p107 = scmp.ne.s32.totalorder %s96, %s97
    %p108 = scmp.eq.s32.totalorder %s15, 0
    %p109 = por %p107, %p108
    %p110 = scmp.ne.s32.totalorder %s96, %s97
    %p111 = scmp.eq.s32.totalorder %s16, 1
    %p112 = por %p110, %p111
    %p114 = scmp.ne.s32.totalorder %s97, %s113
    %p115 = scmp.eq.s32.totalorder %s16, 0
    %p116 = por %p114, %p115
    %p117 = scmp.le.s32.totalorder 1, %s10
    %p118 = scmp.lt.s32.totalorder %s10, 3
    %p119 = pnand %p117, %p118
    %p120 = pneg %p119
    // Predicated region
    $region9: #{down_forward.3} parent=5 // pred_check
      _
    $region10: #{down_forward.3} parent=5 // pred_check_branch
      %122 = sbr.rel (%p119) target = $region12
    $region11: #{down_forward.3} parent=5 // pred_region
      %s123 = ssub.s32 %s10, 1
      // Predicated region
      $region13: #{down_forward.3} parent=11 // pred_check
        %p124 = pneg %p57
      $region14: #{down_forward.3} parent=11 // pred_check_branch
        %126 = sbr.rel (%p124) target = $region16
      $region15: #{down_forward.3} parent=11 // pred_region
        _
      $region16: #{down_forward.3} parent=11 // pred_fallthru
        _
    $region12: #{down_forward.3} parent=5 // pred_fallthru
      _
    %p127 = scmp.lt.s32.totalorder %s10, 2
    // Predicated region
    $region17: #{down_forward.3} parent=5 // pred_check
      %p128 = pneg %p127
    $region18: #{down_forward.3} parent=5 // pred_check_branch
      %130 = sbr.rel (%p128) target = $region20
    $region19: #{down_forward.3} parent=5 // pred_region
      // Predicated region
      $region21: #{down_forward.3} parent=19 // pred_check
        %p131 = pneg %p30
      $region22: #{down_forward.3} parent=19 // pred_check_branch
        %133 = sbr.rel (%p131) target = $region24
      $region23: #{down_forward.3} parent=19 // pred_region
        %p134 = scmp.lt.s32.totalorder %s10, 1
        %s135 = scalar_select %p134, %s10, 1
        %s136 = smul.addr %s135, 8
        %s137 = smul.addr %s136, 4
        %s138 = scalar_lea.vmem %s0, %s137
      $region24: #{down_forward.3} parent=19 // pred_fallthru
        _
    $region20: #{down_forward.3} parent=5 // pred_fallthru
      _
    %p139 = scmp.le.s32.totalorder 1, %s10
    %p140 = scmp.lt.s32.totalorder %s10, 3
    %p141 = pnand %p139, %p140
    %p142 = pneg %p141
    // Predicated region
    $region25: #{down_forward.3} parent=5 // pred_check
      _
    $region26: #{down_forward.3} parent=5 // pred_check_branch
      %144 = sbr.rel (%p141) target = $region28
    $region27: #{down_forward.3} parent=5 // pred_region
      %s145 = ssub.s32 %s10, 1
      %p146 = scmp.lt.s32.totalorder %s15, 1
      %s147 = scalar_select %p146, %s15, 1
      %s148 = smul.addr %s147, 8
      %s149 = smul.addr %s148, 4
      %s150 = scalar_lea.vmem %s0, %s149
      %p151 = pneg %p36
      %p152 = pneg %p33
      %p153 = pneg %p57
      %p154 = pneg %p54
      %p155 = pneg %p83
      %p156 = pneg %p80
      %p157 = scmp.lt.s32.totalorder %s15, 1
      %s158 = scalar_select %p157, %s15, 1
      %s159 = smul.addr %s158, 8
      %s160 = smul.addr %s159, 8
      %s161 = scalar_lea.vmem %s2, %s160
      %p162 = pneg %p109
      %p163 = pneg %p106
      %p164 = scmp.lt.s32.totalorder %s15, 1
      %s165 = scalar_select %p164, %s15, 1
      %s166 = smul.addr %s165, 2
      %s167 = scalar_lea.vmem %s3, %s166
      %p168 = scmp.lt.s32.totalorder %s15, 1
      %s169 = scalar_select %p168, %s15, 1
      %s170 = smul.addr %s169, 8
      %s171 = smul.addr %s170, 4
      %s172 = scalar_lea.vmem %s0, %s171
      %p173 = scmp.lt.s32.totalorder %s15, 1
      %s174 = scalar_select %p173, %s15, 1
      %s175 = smul.addr %s174, 8
      %s176 = smul.addr %s175, 8
      %s177 = scalar_lea.vmem %s2, %s176
      %p178 = scmp.lt.s32.totalorder %s15, 1
      %s179 = scalar_select %p178, %s15, 1
      %s180 = smul.addr %s179, 2
      %s181 = scalar_lea.vmem %s3, %s180
      %v183 = vld [vmem:[%s172] sm:$0xf]
      %v184 = vld [vmem:[%s172 + $0x4] sm:$0xf]
      %v185 = vld [vmem:[%s172 + $0x8] sm:$0xf]
      %v186 = vld [vmem:[%s172 + $0xc] sm:$0xf]
      %v187 = vld [vmem:[%s172 + $0x10] sm:$0xf]
      %v188 = vld [vmem:[%s172 + $0x14] sm:$0xf]
      %v189 = vld [vmem:[%s172 + $0x18] sm:$0xf]
      %v190 = vld [vmem:[%s172 + $0x1c] sm:$0xf]
      %199 = vrot.lane.b32.xlu0 %v183, 124
      %v200 = vpop.permute.xlu0 %199
      %201 = vrot.lane.b32.xlu0 %v184, 124
      %v202 = vpop.permute.xlu0 %201
      %203 = vrot.lane.b32.xlu0 %v185, 124
      %v204 = vpop.permute.xlu0 %203
      %205 = vrot.lane.b32.xlu0 %v186, 124
      %v206 = vpop.permute.xlu0 %205
      %207 = vrot.lane.b32.xlu0 %v187, 124
      %v208 = vpop.permute.xlu0 %207
      %209 = vrot.lane.b32.xlu0 %v188, 124
      %v210 = vpop.permute.xlu0 %209
      %211 = vrot.lane.b32.xlu0 %v189, 124
      %v212 = vpop.permute.xlu0 %211
      %213 = vrot.lane.b32.xlu0 %v190, 124
      %v214 = vpop.permute.xlu0 %213
      %v223 = vmax.bf16 %v183, %v200
      %v224 = vmax.bf16 %v184, %v202
      %v225 = vmax.bf16 %v185, %v204
      %v226 = vmax.bf16 %v186, %v206
      %v227 = vmax.bf16 %v187, %v208
      %v228 = vmax.bf16 %v188, %v210
      %v229 = vmax.bf16 %v189, %v212
      %v230 = vmax.bf16 %v190, %v214
      %239 = vrot.lane.b32.xlu0 %v223, 120
      %v240 = vpop.permute.xlu0 %239
      %241 = vrot.lane.b32.xlu0 %v224, 120
      %v242 = vpop.permute.xlu0 %241
      %243 = vrot.lane.b32.xlu0 %v225, 120
      %v244 = vpop.permute.xlu0 %243
      %245 = vrot.lane.b32.xlu0 %v226, 120
      %v246 = vpop.permute.xlu0 %245
      %247 = vrot.lane.b32.xlu0 %v227, 120
      %v248 = vpop.permute.xlu0 %247
      %249 = vrot.lane.b32.xlu0 %v228, 120
      %v250 = vpop.permute.xlu0 %249
      %251 = vrot.lane.b32.xlu0 %v229, 120
      %v252 = vpop.permute.xlu0 %251
      %253 = vrot.lane.b32.xlu0 %v230, 120
      %v254 = vpop.permute.xlu0 %253
      %v263 = vmax.bf16 %v223, %v240
      %v264 = vmax.bf16 %v224, %v242
      %v265 = vmax.bf16 %v225, %v244
      %v266 = vmax.bf16 %v226, %v246
      %v267 = vmax.bf16 %v227, %v248
      %v268 = vmax.bf16 %v228, %v250
      %v269 = vmax.bf16 %v229, %v252
      %v270 = vmax.bf16 %v230, %v254
      %vm271 = vcmask 27648
      %272 = vst.msk [vmem:[#allocation2] sm:$0xf] %vm271, 0
      %vm273 = vcmask 24576
      %274 = vst.msk [vmem:[#allocation2 + $0x4] sm:$0x1] %vm273, 0
      %s275 = scalar_lea.vmem [#allocation2], 72
      %276 = vst.msk [vmem:[%s275] sm:$0xf] %vm271, 0
      %277 = vst.msk [vmem:[%s275 + $0x4] sm:$0x1] %vm273, 0
      %vm278 = vcmask 24576
      %vm279 = vsmask.f32 256
      %vm280 = vmand %vm278, %vm279
      %v281 = vld [vmem:[#allocation2] sm:$0x1]
      %v282 = vsel %vm280, 0, %v281
      %283 = vst [vmem:[#allocation2] sm:$0x1] %v282
      %v284 = vld [vmem:[#allocation2 + $0x8] sm:$0x1]
      %v285 = vsel %vm280, 0, %v284
      %286 = vst [vmem:[#allocation2 + $0x8] sm:$0x1] %v285
      %v287 = vld [vmem:[#allocation2 + $0x10] sm:$0x1]
      %v288 = vsel %vm280, 0, %v287
      %289 = vst [vmem:[#allocation2 + $0x10] sm:$0x1] %v288
      %v290 = vld [vmem:[#allocation2 + $0x18] sm:$0x1]
      %v291 = vsel %vm280, 0, %v290
      %292 = vst [vmem:[#allocation2 + $0x18] sm:$0x1] %v291
      %v293 = vld [vmem:[#allocation2 + $0x20] sm:$0x1]
      %v294 = vsel %vm280, 0, %v293
      %295 = vst [vmem:[#allocation2 + $0x20] sm:$0x1] %v294
      %v296 = vld [vmem:[#allocation2 + $0x28] sm:$0x1]
      %v297 = vsel %vm280, 0, %v296
      %298 = vst [vmem:[#allocation2 + $0x28] sm:$0x1] %v297
      %v299 = vld [vmem:[#allocation2 + $0x30] sm:$0x1]
      %v300 = vsel %vm280, 0, %v299
      %301 = vst [vmem:[#allocation2 + $0x30] sm:$0x1] %v300
      %v302 = vld [vmem:[#allocation2 + $0x38] sm:$0x1]
      %v303 = vsel %vm280, 0, %v302
      %304 = vst [vmem:[#allocation2 + $0x38] sm:$0x1] %v303
      %v305 = vld [vmem:[#allocation2 + $0x40] sm:$0x1]
      %v306 = vsel %vm280, 0, %v305
      %307 = vst [vmem:[#allocation2 + $0x40] sm:$0x1] %v306
      %v308 = vld [vmem:[#allocation2 + $0x48] sm:$0x1]
      %v309 = vsel %vm280, 0, %v308
      %310 = vst [vmem:[#allocation2 + $0x48] sm:$0x1] %v309
      %vm311 = vsmask.f32 7938
      %vm312 = vmand %vm278, %vm311
      %v313 = vld [vmem:[#allocation2 + $0x4] sm:$0x1]
      %v314 = vsel %vm312, 0, %v313
      %315 = vst [vmem:[#allocation2 + $0x4] sm:$0x1] %v314
      %v316 = vld [vmem:[#allocation2 + $0xc] sm:$0x1]
      %v317 = vsel %vm312, 0, %v316
      %318 = vst [vmem:[#allocation2 + $0xc] sm:$0x1] %v317
      %v319 = vld [vmem:[#allocation2 + $0x14] sm:$0x1]
      %v320 = vsel %vm312, 0, %v319
      %321 = vst [vmem:[#allocation2 + $0x14] sm:$0x1] %v320
      %v322 = vld [vmem:[#allocation2 + $0x1c] sm:$0x1]
      %v323 = vsel %vm312, 0, %v322
      %324 = vst [vmem:[#allocation2 + $0x1c] sm:$0x1] %v323
      %v325 = vld [vmem:[#allocation2 + $0x24] sm:$0x1]
      %v326 = vsel %vm312, 0, %v325
      %327 = vst [vmem:[#allocation2 + $0x24] sm:$0x1] %v326
      %v328 = vld [vmem:[#allocation2 + $0x2c] sm:$0x1]
      %v329 = vsel %vm312, 0, %v328
      %330 = vst [vmem:[#allocation2 + $0x2c] sm:$0x1] %v329
      %v331 = vld [vmem:[#allocation2 + $0x34] sm:$0x1]
      %v332 = vsel %vm312, 0, %v331
      %333 = vst [vmem:[#allocation2 + $0x34] sm:$0x1] %v332
      %v334 = vld [vmem:[#allocation2 + $0x3c] sm:$0x1]
      %v335 = vsel %vm312, 0, %v334
      %336 = vst [vmem:[#allocation2 + $0x3c] sm:$0x1] %v335
      %v337 = vld [vmem:[#allocation2 + $0x44] sm:$0x1]
      %v338 = vsel %vm312, 0, %v337
      %339 = vst [vmem:[#allocation2 + $0x44] sm:$0x1] %v338
      %v340 = vld [vmem:[#allocation2 + $0x4c] sm:$0x1]
      %v341 = vsel %vm312, 0, %v340
      %342 = vst [vmem:[#allocation2 + $0x4c] sm:$0x1] %v341
      %v344 = vshrl.u32 %v263, 16
      %v346 = vrot.slane %v344, 7
      %v347 = vshll.u32 %v263, 16
      %v349 = vor.u32 %v346, %v347
      %v350 = vrot.slane %v346, 4
      %v352 = vshrl.u32 %v264, 16
      %v354 = vrot.slane %v352, 7
      %v355 = vshll.u32 %v264, 16
      %v357 = vor.u32 %v354, %v355
      %v358 = vrot.slane %v354, 4
      %v360 = vshrl.u32 %v265, 16
      %v362 = vrot.slane %v360, 7
      %v363 = vshll.u32 %v265, 16
      %v365 = vor.u32 %v362, %v363
      %v366 = vrot.slane %v362, 4
      %v368 = vshrl.u32 %v266, 16
      %v370 = vrot.slane %v368, 7
      %v371 = vshll.u32 %v266, 16
      %v373 = vor.u32 %v370, %v371
      %v374 = vrot.slane %v370, 4
      %v376 = vshrl.u32 %v267, 16
      %v378 = vrot.slane %v376, 7
      %v379 = vshll.u32 %v267, 16
      %v381 = vor.u32 %v378, %v379
      %v382 = vrot.slane %v378, 4
      %v384 = vshrl.u32 %v268, 16
      %v386 = vrot.slane %v384, 7
      %v387 = vshll.u32 %v268, 16
      %v389 = vor.u32 %v386, %v387
      %v390 = vrot.slane %v386, 4
      %v392 = vshrl.u32 %v269, 16
      %v394 = vrot.slane %v392, 7
      %v395 = vshll.u32 %v269, 16
      %v397 = vor.u32 %v394, %v395
      %v398 = vrot.slane %v394, 4
      %v400 = vshrl.u32 %v270, 16
      %v402 = vrot.slane %v400, 7
      %v403 = vshll.u32 %v270, 16
      %v405 = vor.u32 %v402, %v403
      %v406 = vrot.slane %v402, 4
      %s423 = scalar_lea.vmem [#allocation2], 8
      %vm424 = vcmask 27648
      %vm425 = vmand %vm424, %vm311
      %v426 = vld [vmem:[%s423] sm:$0xf]
      %v427 = vsel %vm425, %v349, %v426
      %428 = vst [vmem:[%s423] sm:$0xf] %v427
      %v429 = vld [vmem:[%s423 + $0x4] sm:$0x1]
      %v430 = vsel %vm280, %v350, %v429
      %431 = vst [vmem:[%s423 + $0x4] sm:$0x1] %v430
      %v432 = vld [vmem:[%s423 + $0x8] sm:$0xf]
      %v433 = vsel %vm425, %v357, %v432
      %434 = vst [vmem:[%s423 + $0x8] sm:$0xf] %v433
      %v435 = vld [vmem:[%s423 + $0xc] sm:$0x1]
      %v436 = vsel %vm280, %v358, %v435
      %437 = vst [vmem:[%s423 + $0xc] sm:$0x1] %v436
      %v438 = vld [vmem:[%s423 + $0x10] sm:$0xf]
      %v439 = vsel %vm425, %v365, %v438
      %440 = vst [vmem:[%s423 + $0x10] sm:$0xf] %v439
      %v441 = vld [vmem:[%s423 + $0x14] sm:$0x1]
      %v442 = vsel %vm280, %v366, %v441
      %443 = vst [vmem:[%s423 + $0x14] sm:$0x1] %v442
      %v444 = vld [vmem:[%s423 + $0x18] sm:$0xf]
      %v445 = vsel %vm425, %v373, %v444
      %446 = vst [vmem:[%s423 + $0x18] sm:$0xf] %v445
      %v447 = vld [vmem:[%s423 + $0x1c] sm:$0x1]
      %v448 = vsel %vm280, %v374, %v447
      %449 = vst [vmem:[%s423 + $0x1c] sm:$0x1] %v448
      %v450 = vld [vmem:[%s423 + $0x20] sm:$0xf]
      %v451 = vsel %vm425, %v381, %v450
      %452 = vst [vmem:[%s423 + $0x20] sm:$0xf] %v451
      %v453 = vld [vmem:[%s423 + $0x24] sm:$0x1]
      %v454 = vsel %vm280, %v382, %v453
      %455 = vst [vmem:[%s423 + $0x24] sm:$0x1] %v454
      %v456 = vld [vmem:[%s423 + $0x28] sm:$0xf]
      %v457 = vsel %vm425, %v389, %v456
      %458 = vst [vmem:[%s423 + $0x28] sm:$0xf] %v457
      %v459 = vld [vmem:[%s423 + $0x2c] sm:$0x1]
      %v460 = vsel %vm280, %v390, %v459
      %461 = vst [vmem:[%s423 + $0x2c] sm:$0x1] %v460
      %v462 = vld [vmem:[%s423 + $0x30] sm:$0xf]
      %v463 = vsel %vm425, %v397, %v462
      %464 = vst [vmem:[%s423 + $0x30] sm:$0xf] %v463
      %v465 = vld [vmem:[%s423 + $0x34] sm:$0x1]
      %v466 = vsel %vm280, %v398, %v465
      %467 = vst [vmem:[%s423 + $0x34] sm:$0x1] %v466
      %v468 = vld [vmem:[%s423 + $0x38] sm:$0xf]
      %v469 = vsel %vm425, %v405, %v468
      %470 = vst [vmem:[%s423 + $0x38] sm:$0xf] %v469
      %v471 = vld [vmem:[%s423 + $0x3c] sm:$0x1]
      %v472 = vsel %vm280, %v406, %v471
      %473 = vst [vmem:[%s423 + $0x3c] sm:$0x1] %v472
      %v474 = vld [vmem:[#allocation2] sm:$0xf]
      %v475 = vld [vmem:[#allocation2 + $0x8] sm:$0xf]
      %v476 = vld [vmem:[#allocation2 + $0x10] sm:$0xf]
      %v477 = vld [vmem:[#allocation2 + $0x18] sm:$0xf]
      %v478 = vld [vmem:[#allocation2 + $0x20] sm:$0xf]
      %v479 = vld [vmem:[#allocation2 + $0x28] sm:$0xf]
      %v480 = vld [vmem:[#allocation2 + $0x30] sm:$0xf]
      %v481 = vld [vmem:[#allocation2 + $0x38] sm:$0xf]
      %v490 = vunpack.c.l.b16 %v474
      %v491 = vunpack.c.l.b16 %v475
      %v492 = vunpack.c.l.b16 %v476
      %v493 = vunpack.c.l.b16 %v477
      %v494 = vunpack.c.l.b16 %v478
      %v495 = vunpack.c.l.b16 %v479
      %v496 = vunpack.c.l.b16 %v480
      %v497 = vunpack.c.l.b16 %v481
      %v498 = vpack.c.b16 %v491, %v490
      %v499 = vpack.c.b16 %v493, %v492
      %v500 = vpack.c.b16 %v495, %v494
      %v501 = vpack.c.b16 %v497, %v496
      %vm506 = vcmask 31744
      %507 = vst.msk [vmem:[#allocation3] sm:$0xff] %vm506, %v498
      %508 = vst.msk [vmem:[#allocation3 + $0x8] sm:$0xff] %vm506, %v499
      %509 = vst.msk [vmem:[#allocation3 + $0x10] sm:$0xff] %vm506, %v500
      %510 = vst.msk [vmem:[#allocation3 + $0x18] sm:$0xff] %vm506, %v501
      %v511 = vld [vmem:[#allocation2] sm:$0xf]
      %v512 = vld [vmem:[#allocation2 + $0x4] sm:$0x1]
      %v513 = vld [vmem:[#allocation2 + $0x8] sm:$0xf]
      %v514 = vld [vmem:[#allocation2 + $0xc] sm:$0x1]
      %v515 = vld [vmem:[#allocation2 + $0x10] sm:$0xf]
      %v516 = vld [vmem:[#allocation2 + $0x14] sm:$0x1]
      %v517 = vld [vmem:[#allocation2 + $0x18] sm:$0xf]
      %v518 = vld [vmem:[#allocation2 + $0x1c] sm:$0x1]
      %v519 = vld [vmem:[#allocation2 + $0x20] sm:$0xf]
      %v520 = vld [vmem:[#allocation2 + $0x24] sm:$0x1]
      %v521 = vld [vmem:[#allocation2 + $0x28] sm:$0xf]
      %v522 = vld [vmem:[#allocation2 + $0x2c] sm:$0x1]
      %v523 = vld [vmem:[#allocation2 + $0x30] sm:$0xf]
      %v524 = vld [vmem:[#allocation2 + $0x34] sm:$0x1]
      %v525 = vld [vmem:[#allocation2 + $0x38] sm:$0xf]
      %v526 = vld [vmem:[#allocation2 + $0x3c] sm:$0x1]
      %vm527 = vsmask.f32 3328
      %vm528 = vsmask.f32 7440
      %vm529 = vmor %vm527, %vm528
      %v531 = vshrl.u32 %v511, 16
      %v533 = vrot.slane %v531, 4
      %v534 = vshll.u32 %v511, 16
      %v536 = vrot.slane %v534, 5
      %v537 = vor.u32 %v533, %v536
      %v538 = vrot.slane %v537, 4
      %v540 = vshll.u32 %v512, 16
      %v542 = vrot.slane %v540, 5
      %v543 = vsel %vm529, %v538, %v542
      %v545 = vshrl.u32 %v513, 16
      %v547 = vrot.slane %v545, 4
      %v548 = vshll.u32 %v513, 16
      %v550 = vrot.slane %v548, 5
      %v551 = vor.u32 %v547, %v550
      %v552 = vrot.slane %v551, 4
      %v554 = vshll.u32 %v514, 16
      %v556 = vrot.slane %v554, 5
      %v557 = vsel %vm529, %v552, %v556
      %v559 = vshrl.u32 %v515, 16
      %v561 = vrot.slane %v559, 4
      %v562 = vshll.u32 %v515, 16
      %v564 = vrot.slane %v562, 5
      %v565 = vor.u32 %v561, %v564
      %v566 = vrot.slane %v565, 4
      %v568 = vshll.u32 %v516, 16
      %v570 = vrot.slane %v568, 5
      %v571 = vsel %vm529, %v566, %v570
      %v573 = vshrl.u32 %v517, 16
      %v575 = vrot.slane %v573, 4
      %v576 = vshll.u32 %v517, 16
      %v578 = vrot.slane %v576, 5
      %v579 = vor.u32 %v575, %v578
      %v580 = vrot.slane %v579, 4
      %v582 = vshll.u32 %v518, 16
      %v584 = vrot.slane %v582, 5
      %v585 = vsel %vm529, %v580, %v584
      %v587 = vshrl.u32 %v519, 16
      %v589 = vrot.slane %v587, 4
      %v590 = vshll.u32 %v519, 16
      %v592 = vrot.slane %v590, 5
      %v593 = vor.u32 %v589, %v592
      %v594 = vrot.slane %v593, 4
      %v596 = vshll.u32 %v520, 16
      %v598 = vrot.slane %v596, 5
      %v599 = vsel %vm529, %v594, %v598
      %v601 = vshrl.u32 %v521, 16
      %v603 = vrot.slane %v601, 4
      %v604 = vshll.u32 %v521, 16
      %v606 = vrot.slane %v604, 5
      %v607 = vor.u32 %v603, %v606
      %v608 = vrot.slane %v607, 4
      %v610 = vshll.u32 %v522, 16
      %v612 = vrot.slane %v610, 5
      %v613 = vsel %vm529, %v608, %v612
      %v615 = vshrl.u32 %v523, 16
      %v617 = vrot.slane %v615, 4
      %v618 = vshll.u32 %v523, 16
      %v620 = vrot.slane %v618, 5
      %v621 = vor.u32 %v617, %v620
      %v622 = vrot.slane %v621, 4
      %v624 = vshll.u32 %v524, 16
      %v626 = vrot.slane %v624, 5
      %v627 = vsel %vm529, %v622, %v626
      %v629 = vshrl.u32 %v525, 16
      %v631 = vrot.slane %v629, 4
      %v632 = vshll.u32 %v525, 16
      %v634 = vrot.slane %v632, 5
      %v635 = vor.u32 %v631, %v634
      %v636 = vrot.slane %v635, 4
      %v638 = vshll.u32 %v526, 16
      %v640 = vrot.slane %v638, 5
      %v641 = vsel %vm529, %v636, %v640
      %v642 = vunpack.c.l.b16 %v543
      %v643 = vunpack.c.l.b16 %v557
      %v644 = vunpack.c.l.b16 %v571
      %v645 = vunpack.c.l.b16 %v585
      %v646 = vunpack.c.l.b16 %v599
      %v647 = vunpack.c.l.b16 %v613
      %v648 = vunpack.c.l.b16 %v627
      %v649 = vunpack.c.l.b16 %v641
      %v650 = vpack.c.b16 %v643, %v642
      %v651 = vpack.c.b16 %v645, %v644
      %v652 = vpack.c.b16 %v647, %v646
      %v653 = vpack.c.b16 %v649, %v648
      %654 = vrot.lane.b32.xlu0 %v650, 4
      %v655 = vpop.permute.xlu0 %654
      %656 = vrot.lane.b32.xlu0 %v651, 4
      %v657 = vpop.permute.xlu0 %656
      %658 = vrot.lane.b32.xlu0 %v652, 4
      %v659 = vpop.permute.xlu0 %658
      %660 = vrot.lane.b32.xlu0 %v653, 4
      %v661 = vpop.permute.xlu0 %660
      %vm666 = vcmask 64544
      %667 = vst.msk [vmem:[#allocation3] sm:$0xff] %vm666, %v655
      %668 = vst.msk [vmem:[#allocation3 + $0x8] sm:$0xff] %vm666, %v657
      %669 = vst.msk [vmem:[#allocation3 + $0x10] sm:$0xff] %vm666, %v659
      %670 = vst.msk [vmem:[#allocation3 + $0x18] sm:$0xff] %vm666, %v661
      %v671 = vld [vmem:[#allocation2] sm:$0xe]
      %v672 = vld [vmem:[#allocation2 + $0x4] sm:$0x1]
      %v673 = vld [vmem:[#allocation2 + $0x8] sm:$0xe]
      %v674 = vld [vmem:[#allocation2 + $0xc] sm:$0x1]
      %v675 = vld [vmem:[#allocation2 + $0x10] sm:$0xe]
      %v676 = vld [vmem:[#allocation2 + $0x14] sm:$0x1]
      %v677 = vld [vmem:[#allocation2 + $0x18] sm:$0xe]
      %v678 = vld [vmem:[#allocation2 + $0x1c] sm:$0x1]
      %v679 = vld [vmem:[#allocation2 + $0x20] sm:$0xe]
      %v680 = vld [vmem:[#allocation2 + $0x24] sm:$0x1]
      %v681 = vld [vmem:[#allocation2 + $0x28] sm:$0xe]
      %v682 = vld [vmem:[#allocation2 + $0x2c] sm:$0x1]
      %v683 = vld [vmem:[#allocation2 + $0x30] sm:$0xe]
      %v684 = vld [vmem:[#allocation2 + $0x34] sm:$0x1]
      %v685 = vld [vmem:[#allocation2 + $0x38] sm:$0xe]
      %v686 = vld [vmem:[#allocation2 + $0x3c] sm:$0x1]
      %vm703 = vcmask 1042432
      %vm704 = vcmask 1046532
      %vm705 = vmor %vm703, %vm704
      %v706 = vrot.slane %v671, 5
      %v707 = vrot.slane %v706, 4
      %v708 = vrot.slane %v672, 5
      %v709 = vsel %vm705, %v707, %v708
      %v710 = vrot.slane %v673, 5
      %v711 = vrot.slane %v710, 4
      %v712 = vrot.slane %v674, 5
      %v713 = vsel %vm705, %v711, %v712
      %v714 = vrot.slane %v675, 5
      %v715 = vrot.slane %v714, 4
      %v716 = vrot.slane %v676, 5
      %v717 = vsel %vm705, %v715, %v716
      %v718 = vrot.slane %v677, 5
      %v719 = vrot.slane %v718, 4
      %v720 = vrot.slane %v678, 5
      %v721 = vsel %vm705, %v719, %v720
      %v722 = vrot.slane %v679, 5
      %v723 = vrot.slane %v722, 4
      %v724 = vrot.slane %v680, 5
      %v725 = vsel %vm705, %v723, %v724
      %v726 = vrot.slane %v681, 5
      %v727 = vrot.slane %v726, 4
      %v728 = vrot.slane %v682, 5
      %v729 = vsel %vm705, %v727, %v728
      %v730 = vrot.slane %v683, 5
      %v731 = vrot.slane %v730, 4
      %v732 = vrot.slane %v684, 5
      %v733 = vsel %vm705, %v731, %v732
      %v734 = vrot.slane %v685, 5
      %v735 = vrot.slane %v734, 4
      %v736 = vrot.slane %v686, 5
      %v737 = vsel %vm705, %v735, %v736
      %v738 = vunpack.c.l.b16 %v709
      %v739 = vunpack.c.l.b16 %v713
      %v740 = vunpack.c.l.b16 %v717
      %v741 = vunpack.c.l.b16 %v721
      %v742 = vunpack.c.l.b16 %v725
      %v743 = vunpack.c.l.b16 %v729
      %v744 = vunpack.c.l.b16 %v733
      %v745 = vunpack.c.l.b16 %v737
      %v746 = vpack.c.b16 %v739, %v738
      %v747 = vpack.c.b16 %v741, %v740
      %v748 = vpack.c.b16 %v743, %v742
      %v749 = vpack.c.b16 %v745, %v744
      %750 = vrot.lane.b32.xlu0 %v746, 8
      %v751 = vpop.permute.xlu0 %750
      %752 = vrot.lane.b32.xlu0 %v747, 8
      %v753 = vpop.permute.xlu0 %752
      %754 = vrot.lane.b32.xlu0 %v748, 8
      %v755 = vpop.permute.xlu0 %754
      %756 = vrot.lane.b32.xlu0 %v749, 8
      %v757 = vpop.permute.xlu0 %756
      %vm762 = vcmask 97344
      %763 = vst.msk [vmem:[#allocation3] sm:$0xff] %vm762, %v751
      %764 = vst.msk [vmem:[#allocation3 + $0x8] sm:$0xff] %vm762, %v753
      %765 = vst.msk [vmem:[#allocation3 + $0x10] sm:$0xff] %vm762, %v755
      %766 = vst.msk [vmem:[#allocation3 + $0x18] sm:$0xff] %vm762, %v757
      %v767 = vld [vmem:[%s423] sm:$0xf]
      %v768 = vld [vmem:[%s423 + $0x8] sm:$0xf]
      %v769 = vld [vmem:[%s423 + $0x10] sm:$0xf]
      %v770 = vld [vmem:[%s423 + $0x18] sm:$0xf]
      %v771 = vld [vmem:[%s423 + $0x20] sm:$0xf]
      %v772 = vld [vmem:[%s423 + $0x28] sm:$0xf]
      %v773 = vld [vmem:[%s423 + $0x30] sm:$0xf]
      %v774 = vld [vmem:[%s423 + $0x38] sm:$0xf]
      %v783 = vunpack.c.l.b16 %v767
      %v784 = vunpack.c.l.b16 %v768
      %v785 = vunpack.c.l.b16 %v769
      %v786 = vunpack.c.l.b16 %v770
      %v787 = vunpack.c.l.b16 %v771
      %v788 = vunpack.c.l.b16 %v772
      %v789 = vunpack.c.l.b16 %v773
      %v790 = vunpack.c.l.b16 %v774
      %v791 = vpack.c.b16 %v784, %v783
      %v792 = vpack.c.b16 %v786, %v785
      %v793 = vpack.c.b16 %v788, %v787
      %v794 = vpack.c.b16 %v790, %v789
      %795 = vrot.lane.b32.xlu0 %v791, 12
      %v796 = vpop.permute.xlu0 %795
      %797 = vrot.lane.b32.xlu0 %v792, 12
      %v798 = vpop.permute.xlu0 %797
      %799 = vrot.lane.b32.xlu0 %v793, 12
      %v800 = vpop.permute.xlu0 %799
      %801 = vrot.lane.b32.xlu0 %v794, 12
      %v802 = vpop.permute.xlu0 %801
      %vm807 = vcmask 130144
      %808 = vst.msk [vmem:[#allocation3] sm:$0xff] %vm807, %v796
      %809 = vst.msk [vmem:[#allocation3 + $0x8] sm:$0xff] %vm807, %v798
      %810 = vst.msk [vmem:[#allocation3 + $0x10] sm:$0xff] %vm807, %v800
      %811 = vst.msk [vmem:[#allocation3 + $0x18] sm:$0xff] %vm807, %v802
      %v812 = vld [vmem:[%s423] sm:$0xf]
      %v813 = vld [vmem:[%s423 + $0x4] sm:$0x1]
      %v814 = vld [vmem:[%s423 + $0x8] sm:$0xf]
      %v815 = vld [vmem:[%s423 + $0xc] sm:$0x1]
      %v816 = vld [vmem:[%s423 + $0x10] sm:$0xf]
      %v817 = vld [vmem:[%s423 + $0x14] sm:$0x1]
      %v818 = vld [vmem:[%s423 + $0x18] sm:$0xf]
      %v819 = vld [vmem:[%s423 + $0x1c] sm:$0x1]
      %v820 = vld [vmem:[%s423 + $0x20] sm:$0xf]
      %v821 = vld [vmem:[%s423 + $0x24] sm:$0x1]
      %v822 = vld [vmem:[%s423 + $0x28] sm:$0xf]
      %v823 = vld [vmem:[%s423 + $0x2c] sm:$0x1]
      %v824 = vld [vmem:[%s423 + $0x30] sm:$0xf]
      %v825 = vld [vmem:[%s423 + $0x34] sm:$0x1]
      %v826 = vld [vmem:[%s423 + $0x38] sm:$0xf]
      %v827 = vld [vmem:[%s423 + $0x3c] sm:$0x1]
      %v829 = vshrl.u32 %v812, 16
      %v831 = vrot.slane %v829, 4
      %v832 = vshll.u32 %v812, 16
      %v834 = vrot.slane %v832, 5
      %v835 = vor.u32 %v831, %v834
      %v836 = vrot.slane %v835, 4
      %v838 = vshll.u32 %v813, 16
      %v840 = vrot.slane %v838, 5
      %v841 = vsel %vm529, %v836, %v840
      %v843 = vshrl.u32 %v814, 16
      %v845 = vrot.slane %v843, 4
      %v846 = vshll.u32 %v814, 16
      %v848 = vrot.slane %v846, 5
      %v849 = vor.u32 %v845, %v848
      %v850 = vrot.slane %v849, 4
      %v852 = vshll.u32 %v815, 16
      %v854 = vrot.slane %v852, 5
      %v855 = vsel %vm529, %v850, %v854
      %v857 = vshrl.u32 %v816, 16
      %v859 = vrot.slane %v857, 4
      %v860 = vshll.u32 %v816, 16
      %v862 = vrot.slane %v860, 5
      %v863 = vor.u32 %v859, %v862
      %v864 = vrot.slane %v863, 4
      %v866 = vshll.u32 %v817, 16
      %v868 = vrot.slane %v866, 5
      %v869 = vsel %vm529, %v864, %v868
      %v871 = vshrl.u32 %v818, 16
      %v873 = vrot.slane %v871, 4
      %v874 = vshll.u32 %v818, 16
      %v876 = vrot.slane %v874, 5
      %v877 = vor.u32 %v873, %v876
      %v878 = vrot.slane %v877, 4
      %v880 = vshll.u32 %v819, 16
      %v882 = vrot.slane %v880, 5
      %v883 = vsel %vm529, %v878, %v882
      %v885 = vshrl.u32 %v820, 16
      %v887 = vrot.slane %v885, 4
      %v888 = vshll.u32 %v820, 16
      %v890 = vrot.slane %v888, 5
      %v891 = vor.u32 %v887, %v890
      %v892 = vrot.slane %v891, 4
      %v894 = vshll.u32 %v821, 16
      %v896 = vrot.slane %v894, 5
      %v897 = vsel %vm529, %v892, %v896
      %v899 = vshrl.u32 %v822, 16
      %v901 = vrot.slane %v899, 4
      %v902 = vshll.u32 %v822, 16
      %v904 = vrot.slane %v902, 5
      %v905 = vor.u32 %v901, %v904
      %v906 = vrot.slane %v905, 4
      %v908 = vshll.u32 %v823, 16
      %v910 = vrot.slane %v908, 5
      %v911 = vsel %vm529, %v906, %v910
      %v913 = vshrl.u32 %v824, 16
      %v915 = vrot.slane %v913, 4
      %v916 = vshll.u32 %v824, 16
      %v918 = vrot.slane %v916, 5
      %v919 = vor.u32 %v915, %v918
      %v920 = vrot.slane %v919, 4
      %v922 = vshll.u32 %v825, 16
      %v924 = vrot.slane %v922, 5
      %v925 = vsel %vm529, %v920, %v924
      %v927 = vshrl.u32 %v826, 16
      %v929 = vrot.slane %v927, 4
      %v930 = vshll.u32 %v826, 16
      %v932 = vrot.slane %v930, 5
      %v933 = vor.u32 %v929, %v932
      %v934 = vrot.slane %v933, 4
      %v936 = vshll.u32 %v827, 16
      %v938 = vrot.slane %v936, 5
      %v939 = vsel %vm529, %v934, %v938
      %v940 = vunpack.c.l.b16 %v841
      %v941 = vunpack.c.l.b16 %v855
      %v942 = vunpack.c.l.b16 %v869
      %v943 = vunpack.c.l.b16 %v883
      %v944 = vunpack.c.l.b16 %v897
      %v945 = vunpack.c.l.b16 %v911
      %v946 = vunpack.c.l.b16 %v925
      %v947 = vunpack.c.l.b16 %v939
      %v948 = vpack.c.b16 %v941, %v940
      %v949 = vpack.c.b16 %v943, %v942
      %v950 = vpack.c.b16 %v945, %v944
      %v951 = vpack.c.b16 %v947, %v946
      %952 = vrot.lane.b32.xlu0 %v948, 16
      %v953 = vpop.permute.xlu0 %952
      %954 = vrot.lane.b32.xlu0 %v949, 16
      %v955 = vpop.permute.xlu0 %954
      %956 = vrot.lane.b32.xlu0 %v950, 16
      %v957 = vpop.permute.xlu0 %956
      %958 = vrot.lane.b32.xlu0 %v951, 16
      %v959 = vpop.permute.xlu0 %958
      %vm964 = vcmask 162944
      %965 = vst.msk [vmem:[#allocation3] sm:$0xff] %vm964, %v953
      %966 = vst.msk [vmem:[#allocation3 + $0x8] sm:$0xff] %vm964, %v955
      %967 = vst.msk [vmem:[#allocation3 + $0x10] sm:$0xff] %vm964, %v957
      %968 = vst.msk [vmem:[#allocation3 + $0x18] sm:$0xff] %vm964, %v959
      %v969 = vld [vmem:[%s423] sm:$0xe]
      %v970 = vld [vmem:[%s423 + $0x4] sm:$0x1]
      %v971 = vld [vmem:[%s423 + $0x8] sm:$0xe]
      %v972 = vld [vmem:[%s423 + $0xc] sm:$0x1]
      %v973 = vld [vmem:[%s423 + $0x10] sm:$0xe]
      %v974 = vld [vmem:[%s423 + $0x14] sm:$0x1]
      %v975 = vld [vmem:[%s423 + $0x18] sm:$0xe]
      %v976 = vld [vmem:[%s423 + $0x1c] sm:$0x1]
      %v977 = vld [vmem:[%s423 + $0x20] sm:$0xe]
      %v978 = vld [vmem:[%s423 + $0x24] sm:$0x1]
      %v979 = vld [vmem:[%s423 + $0x28] sm:$0xe]
      %v980 = vld [vmem:[%s423 + $0x2c] sm:$0x1]
      %v981 = vld [vmem:[%s423 + $0x30] sm:$0xe]
      %v982 = vld [vmem:[%s423 + $0x34] sm:$0x1]
      %v983 = vld [vmem:[%s423 + $0x38] sm:$0xe]
      %v984 = vld [vmem:[%s423 + $0x3c] sm:$0x1]
      %v1001 = vrot.slane %v969, 5
      %v1002 = vrot.slane %v1001, 4
      %v1003 = vrot.slane %v970, 5
      %v1004 = vsel %vm705, %v1002, %v1003
      %v1005 = vrot.slane %v971, 5
      %v1006 = vrot.slane %v1005, 4
      %v1007 = vrot.slane %v972, 5
      %v1008 = vsel %vm705, %v1006, %v1007
      %v1009 = vrot.slane %v973, 5
      %v1010 = vrot.slane %v1009, 4
      %v1011 = vrot.slane %v974, 5
      %v1012 = vsel %vm705, %v1010, %v1011
      %v1013 = vrot.slane %v975, 5
      %v1014 = vrot.slane %v1013, 4
      %v1015 = vrot.slane %v976, 5
      %v1016 = vsel %vm705, %v1014, %v1015
      %v1017 = vrot.slane %v977, 5
      %v1018 = vrot.slane %v1017, 4
      %v1019 = vrot.slane %v978, 5
      %v1020 = vsel %vm705, %v1018, %v1019
      %v1021 = vrot.slane %v979, 5
      %v1022 = vrot.slane %v1021, 4
      %v1023 = vrot.slane %v980, 5
      %v1024 = vsel %vm705, %v1022, %v1023
      %v1025 = vrot.slane %v981, 5
      %v1026 = vrot.slane %v1025, 4
      %v1027 = vrot.slane %v982, 5
      %v1028 = vsel %vm705, %v1026, %v1027
      %v1029 = vrot.slane %v983, 5
      %v1030 = vrot.slane %v1029, 4
      %v1031 = vrot.slane %v984, 5
      %v1032 = vsel %vm705, %v1030, %v1031
      %v1033 = vunpack.c.l.b16 %v1004
      %v1034 = vunpack.c.l.b16 %v1008
      %v1035 = vunpack.c.l.b16 %v1012
      %v1036 = vunpack.c.l.b16 %v1016
      %v1037 = vunpack.c.l.b16 %v1020
      %v1038 = vunpack.c.l.b16 %v1024
      %v1039 = vunpack.c.l.b16 %v1028
      %v1040 = vunpack.c.l.b16 %v1032
      %v1041 = vpack.c.b16 %v1034, %v1033
      %v1042 = vpack.c.b16 %v1036, %v1035
      %v1043 = vpack.c.b16 %v1038, %v1037
      %v1044 = vpack.c.b16 %v1040, %v1039
      %1045 = vrot.lane.b32.xlu0 %v1041, 20
      %v1046 = vpop.permute.xlu0 %1045
      %1047 = vrot.lane.b32.xlu0 %v1042, 20
      %v1048 = vpop.permute.xlu0 %1047
      %1049 = vrot.lane.b32.xlu0 %v1043, 20
      %v1050 = vpop.permute.xlu0 %1049
      %1051 = vrot.lane.b32.xlu0 %v1044, 20
      %v1052 = vpop.permute.xlu0 %1051
      %vm1057 = vcmask 195744
      %1058 = vst.msk [vmem:[#allocation3] sm:$0xff] %vm1057, %v1046
      %1059 = vst.msk [vmem:[#allocation3 + $0x8] sm:$0xff] %vm1057, %v1048
      %1060 = vst.msk [vmem:[#allocation3 + $0x10] sm:$0xff] %vm1057, %v1050
      %1061 = vst.msk [vmem:[#allocation3 + $0x18] sm:$0xff] %vm1057, %v1052
      %s1062 = scalar_lea.vmem [#allocation2], 16
      %v1063 = vld [vmem:[%s1062] sm:$0xf]
      %v1064 = vld [vmem:[%s1062 + $0x8] sm:$0xf]
      %v1065 = vld [vmem:[%s1062 + $0x10] sm:$0xf]
      %v1066 = vld [vmem:[%s1062 + $0x18] sm:$0xf]
      %v1067 = vld [vmem:[%s1062 + $0x20] sm:$0xf]
      %v1068 = vld [vmem:[%s1062 + $0x28] sm:$0xf]
      %v1069 = vld [vmem:[%s1062 + $0x30] sm:$0xf]
      %v1070 = vld [vmem:[%s1062 + $0x38] sm:$0xf]
      %v1079 = vunpack.c.l.b16 %v1063
      %v1080 = vunpack.c.l.b16 %v1064
      %v1081 = vunpack.c.l.b16 %v1065
      %v1082 = vunpack.c.l.b16 %v1066
      %v1083 = vunpack.c.l.b16 %v1067
      %v1084 = vunpack.c.l.b16 %v1068
      %v1085 = vunpack.c.l.b16 %v1069
      %v1086 = vunpack.c.l.b16 %v1070
      %v1087 = vpack.c.b16 %v1080, %v1079
      %v1088 = vpack.c.b16 %v1082, %v1081
      %v1089 = vpack.c.b16 %v1084, %v1083
      %v1090 = vpack.c.b16 %v1086, %v1085
      %1091 = vrot.lane.b32.xlu0 %v1087, 24
      %v1092 = vpop.permute.xlu0 %1091
      %1093 = vrot.lane.b32.xlu0 %v1088, 24
      %v1094 = vpop.permute.xlu0 %1093
      %1095 = vrot.lane.b32.xlu0 %v1089, 24
      %v1096 = vpop.permute.xlu0 %1095
      %1097 = vrot.lane.b32.xlu0 %v1090, 24
      %v1098 = vpop.permute.xlu0 %1097
      %vm1103 = vcmask 228544
      %1104 = vst.msk [vmem:[#allocation3] sm:$0xff] %vm1103, %v1092
      %1105 = vst.msk [vmem:[#allocation3 + $0x8] sm:$0xff] %vm1103, %v1094
      %1106 = vst.msk [vmem:[#allocation3 + $0x10] sm:$0xff] %vm1103, %v1096
      %1107 = vst.msk [vmem:[#allocation3 + $0x18] sm:$0xff] %vm1103, %v1098
      %v1108 = vld [vmem:[%s1062] sm:$0xf]
      %v1109 = vld [vmem:[%s1062 + $0x4] sm:$0x1]
      %v1110 = vld [vmem:[%s1062 + $0x8] sm:$0xf]
      %v1111 = vld [vmem:[%s1062 + $0xc] sm:$0x1]
      %v1112 = vld [vmem:[%s1062 + $0x10] sm:$0xf]
      %v1113 = vld [vmem:[%s1062 + $0x14] sm:$0x1]
      %v1114 = vld [vmem:[%s1062 + $0x18] sm:$0xf]
      %v1115 = vld [vmem:[%s1062 + $0x1c] sm:$0x1]
      %v1116 = vld [vmem:[%s1062 + $0x20] sm:$0xf]
      %v1117 = vld [vmem:[%s1062 + $0x24] sm:$0x1]
      %v1118 = vld [vmem:[%s1062 + $0x28] sm:$0xf]
      %v1119 = vld [vmem:[%s1062 + $0x2c] sm:$0x1]
      %v1120 = vld [vmem:[%s1062 + $0x30] sm:$0xf]
      %v1121 = vld [vmem:[%s1062 + $0x34] sm:$0x1]
      %v1122 = vld [vmem:[%s1062 + $0x38] sm:$0xf]
      %v1123 = vld [vmem:[%s1062 + $0x3c] sm:$0x1]
      %v1125 = vshrl.u32 %v1108, 16
      %v1127 = vrot.slane %v1125, 4
      %v1128 = vshll.u32 %v1108, 16
      %v1130 = vrot.slane %v1128, 5
      %v1131 = vor.u32 %v1127, %v1130
      %v1132 = vrot.slane %v1131, 4
      %v1134 = vshll.u32 %v1109, 16
      %v1136 = vrot.slane %v1134, 5
      %v1137 = vsel %vm529, %v1132, %v1136
      %v1139 = vshrl.u32 %v1110, 16
      %v1141 = vrot.slane %v1139, 4
      %v1142 = vshll.u32 %v1110, 16
      %v1144 = vrot.slane %v1142, 5
      %v1145 = vor.u32 %v1141, %v1144
      %v1146 = vrot.slane %v1145, 4
      %v1148 = vshll.u32 %v1111, 16
      %v1150 = vrot.slane %v1148, 5
      %v1151 = vsel %vm529, %v1146, %v1150
      %v1153 = vshrl.u32 %v1112, 16
      %v1155 = vrot.slane %v1153, 4
      %v1156 = vshll.u32 %v1112, 16
      %v1158 = vrot.slane %v1156, 5
      %v1159 = vor.u32 %v1155, %v1158
      %v1160 = vrot.slane %v1159, 4
      %v1162 = vshll.u32 %v1113, 16
      %v1164 = vrot.slane %v1162, 5
      %v1165 = vsel %vm529, %v1160, %v1164
      %v1167 = vshrl.u32 %v1114, 16
      %v1169 = vrot.slane %v1167, 4
      %v1170 = vshll.u32 %v1114, 16
      %v1172 = vrot.slane %v1170, 5
      %v1173 = vor.u32 %v1169, %v1172
      %v1174 = vrot.slane %v1173, 4
      %v1176 = vshll.u32 %v1115, 16
      %v1178 = vrot.slane %v1176, 5
      %v1179 = vsel %vm529, %v1174, %v1178
      %v1181 = vshrl.u32 %v1116, 16
      %v1183 = vrot.slane %v1181, 4
      %v1184 = vshll.u32 %v1116, 16
      %v1186 = vrot.slane %v1184, 5
      %v1187 = vor.u32 %v1183, %v1186
      %v1188 = vrot.slane %v1187, 4
      %v1190 = vshll.u32 %v1117, 16
      %v1192 = vrot.slane %v1190, 5
      %v1193 = vsel %vm529, %v1188, %v1192
      %v1195 = vshrl.u32 %v1118, 16
      %v1197 = vrot.slane %v1195, 4
      %v1198 = vshll.u32 %v1118, 16
      %v1200 = vrot.slane %v1198, 5
      %v1201 = vor.u32 %v1197, %v1200
      %v1202 = vrot.slane %v1201, 4
      %v1204 = vshll.u32 %v1119, 16
      %v1206 = vrot.slane %v1204, 5
      %v1207 = vsel %vm529, %v1202, %v1206
      %v1209 = vshrl.u32 %v1120, 16
      %v1211 = vrot.slane %v1209, 4
      %v1212 = vshll.u32 %v1120, 16
      %v1214 = vrot.slane %v1212, 5
      %v1215 = vor.u32 %v1211, %v1214
      %v1216 = vrot.slane %v1215, 4
      %v1218 = vshll.u32 %v1121, 16
      %v1220 = vrot.slane %v1218, 5
      %v1221 = vsel %vm529, %v1216, %v1220
      %v1223 = vshrl.u32 %v1122, 16
      %v1225 = vrot.slane %v1223, 4
      %v1226 = vshll.u32 %v1122, 16
      %v1228 = vrot.slane %v1226, 5
      %v1229 = vor.u32 %v1225, %v1228
      %v1230 = vrot.slane %v1229, 4
      %v1232 = vshll.u32 %v1123, 16
      %v1234 = vrot.slane %v1232, 5
      %v1235 = vsel %vm529, %v1230, %v1234
      %v1236 = vunpack.c.l.b16 %v1137
      %v1237 = vunpack.c.l.b16 %v1151
      %v1238 = vunpack.c.l.b16 %v1165
      %v1239 = vunpack.c.l.b16 %v1179
      %v1240 = vunpack.c.l.b16 %v1193
      %v1241 = vunpack.c.l.b16 %v1207
      %v1242 = vunpack.c.l.b16 %v1221
      %v1243 = vunpack.c.l.b16 %v1235
      %v1244 = vpack.c.b16 %v1237, %v1236
      %v1245 = vpack.c.b16 %v1239, %v1238
      %v1246 = vpack.c.b16 %v1241, %v1240
      %v1247 = vpack.c.b16 %v1243, %v1242
      %1248 = vrot.lane.b32.xlu0 %v1244, 28
      %v1249 = vpop.permute.xlu0 %1248
      %1250 = vrot.lane.b32.xlu0 %v1245, 28
      %v1251 = vpop.permute.xlu0 %1250
      %1252 = vrot.lane.b32.xlu0 %v1246, 28
      %v1253 = vpop.permute.xlu0 %1252
      %1254 = vrot.lane.b32.xlu0 %v1247, 28
      %v1255 = vpop.permute.xlu0 %1254
      %vm1260 = vcmask 261344
      %1261 = vst.msk [vmem:[#allocation3] sm:$0xff] %vm1260, %v1249
      %1262 = vst.msk [vmem:[#allocation3 + $0x8] sm:$0xff] %vm1260, %v1251
      %1263 = vst.msk [vmem:[#allocation3 + $0x10] sm:$0xff] %vm1260, %v1253
      %1264 = vst.msk [vmem:[#allocation3 + $0x18] sm:$0xff] %vm1260, %v1255
      %v1265 = vld [vmem:[%s1062] sm:$0xe]
      %v1266 = vld [vmem:[%s1062 + $0x4] sm:$0x1]
      %v1267 = vld [vmem:[%s1062 + $0x8] sm:$0xe]
      %v1268 = vld [vmem:[%s1062 + $0xc] sm:$0x1]
      %v1269 = vld [vmem:[%s1062 + $0x10] sm:$0xe]
      %v1270 = vld [vmem:[%s1062 + $0x14] sm:$0x1]
      %v1271 = vld [vmem:[%s1062 + $0x18] sm:$0xe]
      %v1272 = vld [vmem:[%s1062 + $0x1c] sm:$0x1]
      %v1273 = vld [vmem:[%s1062 + $0x20] sm:$0xe]
      %v1274 = vld [vmem:[%s1062 + $0x24] sm:$0x1]
      %v1275 = vld [vmem:[%s1062 + $0x28] sm:$0xe]
      %v1276 = vld [vmem:[%s1062 + $0x2c] sm:$0x1]
      %v1277 = vld [vmem:[%s1062 + $0x30] sm:$0xe]
      %v1278 = vld [vmem:[%s1062 + $0x34] sm:$0x1]
      %v1279 = vld [vmem:[%s1062 + $0x38] sm:$0xe]
      %v1280 = vld [vmem:[%s1062 + $0x3c] sm:$0x1]
      %v1297 = vrot.slane %v1265, 5
      %v1298 = vrot.slane %v1297, 4
      %v1299 = vrot.slane %v1266, 5
      %v1300 = vsel %vm705, %v1298, %v1299
      %v1301 = vrot.slane %v1267, 5
      %v1302 = vrot.slane %v1301, 4
      %v1303 = vrot.slane %v1268, 5
      %v1304 = vsel %vm705, %v1302, %v1303
      %v1305 = vrot.slane %v1269, 5
      %v1306 = vrot.slane %v1305, 4
      %v1307 = vrot.slane %v1270, 5
      %v1308 = vsel %vm705, %v1306, %v1307
      %v1309 = vrot.slane %v1271, 5
      %v1310 = vrot.slane %v1309, 4
      %v1311 = vrot.slane %v1272, 5
      %v1312 = vsel %vm705, %v1310, %v1311
      %v1313 = vrot.slane %v1273, 5
      %v1314 = vrot.slane %v1313, 4
      %v1315 = vrot.slane %v1274, 5
      %v1316 = vsel %vm705, %v1314, %v1315
      %v1317 = vrot.slane %v1275, 5
      %v1318 = vrot.slane %v1317, 4
      %v1319 = vrot.slane %v1276, 5
      %v1320 = vsel %vm705, %v1318, %v1319
      %v1321 = vrot.slane %v1277, 5
      %v1322 = vrot.slane %v1321, 4
      %v1323 = vrot.slane %v1278, 5
      %v1324 = vsel %vm705, %v1322, %v1323
      %v1325 = vrot.slane %v1279, 5
      %v1326 = vrot.slane %v1325, 4
      %v1327 = vrot.slane %v1280, 5
      %v1328 = vsel %vm705, %v1326, %v1327
      %v1329 = vunpack.c.l.b16 %v1300
      %v1330 = vunpack.c.l.b16 %v1304
      %v1331 = vunpack.c.l.b16 %v1308
      %v1332 = vunpack.c.l.b16 %v1312
      %v1333 = vunpack.c.l.b16 %v1316
      %v1334 = vunpack.c.l.b16 %v1320
      %v1335 = vunpack.c.l.b16 %v1324
      %v1336 = vunpack.c.l.b16 %v1328
      %v1337 = vpack.c.b16 %v1330, %v1329
      %v1338 = vpack.c.b16 %v1332, %v1331
      %v1339 = vpack.c.b16 %v1334, %v1333
      %v1340 = vpack.c.b16 %v1336, %v1335
      %1341 = vrot.lane.b32.xlu0 %v1337, 32
      %v1342 = vpop.permute.xlu0 %1341
      %1343 = vrot.lane.b32.xlu0 %v1338, 32
      %v1344 = vpop.permute.xlu0 %1343
      %1345 = vrot.lane.b32.xlu0 %v1339, 32
      %v1346 = vpop.permute.xlu0 %1345
      %1347 = vrot.lane.b32.xlu0 %v1340, 32
      %v1348 = vpop.permute.xlu0 %1347
      %vm1353 = vcmask 294144
      %1354 = vst.msk [vmem:[#allocation3] sm:$0xff] %vm1353, %v1342
      %1355 = vst.msk [vmem:[#allocation3 + $0x8] sm:$0xff] %vm1353, %v1344
      %1356 = vst.msk [vmem:[#allocation3 + $0x10] sm:$0xff] %vm1353, %v1346
      %1357 = vst.msk [vmem:[#allocation3 + $0x18] sm:$0xff] %vm1353, %v1348
      %v1358 = vld [vmem:[#allocation3] sm:$0xff]
      %v1359 = vld [vmem:[#allocation3 + $0x8] sm:$0xff]
      %v1360 = vld [vmem:[#allocation3 + $0x10] sm:$0xff]
      %v1361 = vld [vmem:[#allocation3 + $0x18] sm:$0xff]
      %v1362 = vld [vmem:[%s1] sm:$0xf]
      %v1363 = vld [vmem:[%s1 + $0x4] sm:$0xf]
      %v1364 = vld [vmem:[%s1 + $0x8] sm:$0xf]
      %v1365 = vld [vmem:[%s1 + $0xc] sm:$0xf]
      %v1366 = vld [vmem:[%s1 + $0x10] sm:$0x3]
      %v1372 = vunpack.c.l.b16 %v1362
      %v1373 = vunpack.c.l.b16 %v1363
      %v1374 = vunpack.c.l.b16 %v1364
      %v1375 = vunpack.c.l.b16 %v1365
      %v1376 = vunpack.c.l.b16 %v1366
      %v1377 = vpack.c.b16 %v1373, %v1372
      %v1378 = vpack.c.b16 %v1375, %v1374
      %v1379 = vpack.c.b16 %v1376, %v1376
      %vm1382 = vcmask 293888
      %v1384 = vsel %vm1382, %v1358, 0
      %v1387 = vsel %vm1382, %v1359, 0
      %v1390 = vsel %vm1382, %v1360, 0
      %v1393 = vsel %vm1382, %v1361, 0
      %vm1395 = vcmask 1041408
      %v1397 = vsel %vm1395, %v1379, 0
      %1399 = vmatprep.subr.bf16.mxu0 0
      %1400 = vmatpush1.bf16.msra.mxu0 %v1377
      %1401 = vmatprep.subr.bf16.mxu0 0
      %1402 = vmatpush1.bf16.msra.mxu0 %v1378
      %1403 = vmatprep.subr.bf16.mxu0 0
      %1404 = vmatpush1.bf16.msra.mxu0 %v1397
      %1405 = vmatprep.subr.bf16.mxu0 0
      %1406 = vmatpush1.bf16.msra.mxu0 0
      %1407 = vmatprep.subr.bf16.mxu0 0
      %1408 = vmatpush1.bf16.msra.mxu0 0
      %1409 = vmatprep.subr.bf16.mxu0 0
      %1410 = vmatpush1.bf16.msra.mxu0 0
      %1411 = vmatprep.subr.bf16.mxu0 0
      %1412 = vmatpush1.bf16.msra.mxu0 0
      %1413 = vmatprep.subr.bf16.mxu0 0
      %1414 = vmatpush1.bf16.msra.mxu0 0
      %1415 = vmatprep.subr.bf16.mxu0 0
      %1416 = vmatpush1.bf16.msra.mxu0 0
      %1417 = vmatprep.subr.bf16.mxu0 0
      %1418 = vmatpush1.bf16.msra.mxu0 0
      %1419 = vmatprep.subr.bf16.mxu0 0
      %1420 = vmatpush1.bf16.msra.mxu0 0
      %1421 = vmatprep.subr.bf16.mxu0 0
      %1422 = vmatpush1.bf16.msra.mxu0 0
      %1423 = vmatprep.subr.bf16.mxu0 0
      %1424 = vmatpush1.bf16.msra.mxu0 0
      %1425 = vmatprep.subr.bf16.mxu0 0
      %1426 = vmatpush1.bf16.msra.mxu0 0
      %1427 = vmatprep.subr.bf16.mxu0 0
      %1428 = vmatpush1.bf16.msra.mxu0 0
      %1429 = vmatprep.subr.bf16.mxu0 0
      %1430 = vmatpush1.bf16.msra.mxu0 0
      %1431 = vmatprep.mubr.bf16.mxu0 0
      %1432 = vmatmul.mubr.bf16.gmra.mrb[0].mxu0 %v1384
      %v1433 = vpop.f32.mrb[0].mxu0
      %v1434 = vadd.f32 0.0, %v1433
      %v1435 = vpop.f32.mrb[0].mxu0
      %v1436 = vpop.f32.mrb[0].mxu0
      %v1437 = vadd.f32 0.0, %v1436
      %v1438 = vpop.f32.mrb[0].mxu0
      %1439 = vmatprep.mubr.bf16.mxu0 0
      %1440 = vmatmul.mubr.bf16.gmra.mrb[0].mxu0 %v1387
      %v1441 = vpop.f32.mrb[0].mxu0
      %v1442 = vadd.f32 0.0, %v1441
      %v1443 = vpop.f32.mrb[0].mxu0
      %v1444 = vpop.f32.mrb[0].mxu0
      %v1445 = vadd.f32 0.0, %v1444
      %v1446 = vpop.f32.mrb[0].mxu0
      %1447 = vmatprep.mubr.bf16.mxu0 0
      %1448 = vmatmul.mubr.bf16.gmra.mrb[0].mxu0 %v1390
      %v1449 = vpop.f32.mrb[0].mxu0
      %v1450 = vadd.f32 0.0, %v1449
      %v1451 = vpop.f32.mrb[0].mxu0
      %v1452 = vpop.f32.mrb[0].mxu0
      %v1453 = vadd.f32 0.0, %v1452
      %v1454 = vpop.f32.mrb[0].mxu0
      %1455 = vmatprep.mubr.bf16.mxu0 0
      %1456 = vmatmul.mubr.bf16.gmra.mrb[0].mxu0 %v1393
      %v1457 = vpop.f32.mrb[0].mxu0
      %v1458 = vadd.f32 0.0, %v1457
      %v1459 = vpop.f32.mrb[0].mxu0
      %v1460 = vpop.f32.mrb[0].mxu0
      %v1461 = vadd.f32 0.0, %v1460
      %v1462 = vpop.f32.mrb[0].mxu0
      %1463 = vdwg.mxu0
      %vm1464 = vcmask 64512
      %1465 = vst.msk [vmem:[%s177] sm:$0xff] %vm1464, %v1434
      %1466 = vst.msk [vmem:[%s177 + $0x8] sm:$0xff] %vm1464, %v1437
      %1467 = vst.msk [vmem:[%s177 + $0x10] sm:$0xff] %vm1464, %v1442
      %1468 = vst.msk [vmem:[%s177 + $0x18] sm:$0xff] %vm1464, %v1445
      %1469 = vst.msk [vmem:[%s177 + $0x20] sm:$0xff] %vm1464, %v1450
      %1470 = vst.msk [vmem:[%s177 + $0x28] sm:$0xff] %vm1464, %v1453
      %1471 = vst.msk [vmem:[%s177 + $0x30] sm:$0xff] %vm1464, %v1458
      %1472 = vst.msk [vmem:[%s177 + $0x38] sm:$0xff] %vm1464, %v1461
      %v1473 = vsel %vm1464, %v1434, 0.0
      %v1474 = vsel %vm1464, %v1437, 0.0
      %v1475 = vadd.f32 %v1473, %v1474
      %v1476 = vsel %vm1464, %v1442, 0.0
      %v1477 = vadd.f32 %v1475, %v1476
      %v1478 = vsel %vm1464, %v1445, 0.0
      %v1479 = vadd.f32 %v1477, %v1478
      %v1480 = vsel %vm1464, %v1450, 0.0
      %v1481 = vadd.f32 %v1479, %v1480
      %v1482 = vsel %vm1464, %v1453, 0.0
      %v1483 = vadd.f32 %v1481, %v1482
      %v1484 = vsel %vm1464, %v1458, 0.0
      %v1485 = vadd.f32 %v1483, %v1484
      %v1486 = vsel %vm1464, %v1461, 0.0
      %v1487 = vadd.f32 %v1485, %v1486
      %v1488 = vrot.slane %v1487, 4
      %v1489 = vadd.f32 %v1487, %v1488
      %v1490 = vrot.slane %v1489, 2
      %v1491 = vadd.f32 %v1489, %v1490
      %v1492 = vrot.slane %v1491, 1
      %v1493 = vadd.f32 %v1491, %v1492
      %vm1494 = vcmask 57344
      %1495 = vst.msk [vmem:[%s181] sm:$0x1] %vm1494, %v1493
      %v1496 = vmul.f32 %v1434, %v1434
      %v1497 = vmul.f32 %v1437, %v1437
      %v1498 = vmul.f32 %v1442, %v1442
      %v1499 = vmul.f32 %v1445, %v1445
      %v1500 = vmul.f32 %v1450, %v1450
      %v1501 = vmul.f32 %v1453, %v1453
      %v1502 = vmul.f32 %v1458, %v1458
      %v1503 = vmul.f32 %v1461, %v1461
      %v1504 = vsel %vm1464, %v1496, 0.0
      %v1505 = vsel %vm1464, %v1497, 0.0
      %v1506 = vadd.f32 %v1504, %v1505
      %v1507 = vsel %vm1464, %v1498, 0.0
      %v1508 = vadd.f32 %v1506, %v1507
      %v1509 = vsel %vm1464, %v1499, 0.0
      %v1510 = vadd.f32 %v1508, %v1509
      %v1511 = vsel %vm1464, %v1500, 0.0
      %v1512 = vadd.f32 %v1510, %v1511
      %v1513 = vsel %vm1464, %v1501, 0.0
      %v1514 = vadd.f32 %v1512, %v1513
      %v1515 = vsel %vm1464, %v1502, 0.0
      %v1516 = vadd.f32 %v1514, %v1515
      %v1517 = vsel %vm1464, %v1503, 0.0
      %v1518 = vadd.f32 %v1516, %v1517
      %v1519 = vrot.slane %v1518, 4
      %v1520 = vadd.f32 %v1518, %v1519
      %v1521 = vrot.slane %v1520, 2
      %v1522 = vadd.f32 %v1520, %v1521
      %v1523 = vrot.slane %v1522, 1
      %v1524 = vadd.f32 %v1522, %v1523
      %1525 = vst.msk [vmem:[%s181 + $0x1] sm:$0x1] %vm1494, %v1524
      %p1526 = scmp.lt.s32.totalorder %s15, 1
      %s1527 = scalar_select %p1526, %s15, 1
      %s1528 = smul.addr %s1527, 8
      %s1529 = smul.addr %s1528, 8
      %s1530 = scalar_lea.vmem %s2, %s1529
      %p1531 = scmp.lt.s32.totalorder %s15, 1
      %s1532 = scalar_select %p1531, %s15, 1
      %s1533 = smul.addr %s1532, 2
      %s1534 = scalar_lea.vmem %s3, %s1533
      // Predicated region
      $region29: #{down_forward.3} parent=27 // pred_check
        %p1535 = pneg %p80
      $region30: #{down_forward.3} parent=27 // pred_check_branch
        %1537 = sbr.rel (%p1535) target = $region32
      $region31: #{down_forward.3} parent=27 // pred_region
        _
      $region32: #{down_forward.3} parent=27 // pred_fallthru
        _
      // Predicated region
      $region33: #{down_forward.3} parent=27 // pred_check
        %p1538 = pneg %p106
      $region34: #{down_forward.3} parent=27 // pred_check_branch
        %1540 = sbr.rel (%p1538) target = $region36
      $region35: #{down_forward.3} parent=27 // pred_region
        _
      $region36: #{down_forward.3} parent=27 // pred_fallthru
        _
    $region28: #{down_forward.3} parent=5 // pred_fallthru
      _
    %p1541 = scmp.le.s32.totalorder 2, %s10
    // Predicated region
    $region37: #{down_forward.3} parent=5 // pred_check
      %p1542 = pneg %p1541
    $region38: #{down_forward.3} parent=5 // pred_check_branch
      %1544 = sbr.rel (%p1542) target = $region40
    $region39: #{down_forward.3} parent=5 // pred_region
      %s1545 = ssub.s32 %s10, 2
      // Predicated region
      $region41: #{down_forward.3} parent=39 // pred_check
        %p1546 = pneg %p86
      $region42: #{down_forward.3} parent=39 // pred_check_branch
        %1548 = sbr.rel (%p1546) target = $region44
      $region43: #{down_forward.3} parent=39 // pred_region
        %p1549 = scmp.lt.s32.totalorder %s16, 1
        %s1550 = scalar_select %p1549, %s16, 1
        %s1551 = smul.addr %s1550, 8
        %s1552 = smul.addr %s1551, 8
        %s1553 = scalar_lea.vmem %s2, %s1552
      $region44: #{down_forward.3} parent=39 // pred_fallthru
        _
      // Predicated region
      $region45: #{down_forward.3} parent=39 // pred_check
        %p1554 = pneg %p112
      $region46: #{down_forward.3} parent=39 // pred_check_branch
        %1556 = sbr.rel (%p1554) target = $region48
      $region47: #{down_forward.3} parent=39 // pred_region
        %p1557 = scmp.lt.s32.totalorder %s16, 1
        %s1558 = scalar_select %p1557, %s16, 1
        %s1559 = smul.addr %s1558, 2
        %s1560 = scalar_lea.vmem %s3, %s1559
      $region48: #{down_forward.3} parent=39 // pred_fallthru
        _
    $region40: #{down_forward.3} parent=5 // pred_fallthru
      _
  $region6: #{down_forward.3} parent=0 // loop_footer
    %s14 = sadd.s32 1, %s10
  $region7: #{down_forward.3} parent=0 // loop_footer_branch
    %9 = sbr.rel target = $region3
  $region8: #{down_forward.3} parent=0 // loop_exit
    _

</llo_original>
